<compile_context>
chip_gen: v5e
topology: v5e:2x2
jax: 0.10.0
libtpu: 0.0.40
codegen_flags: <defaults>
</compile_context>

<pallas_src>
import functools
import math

import jax
import jax.numpy as jnp
from jax import lax
from jax.experimental import pallas as pl
from jax.experimental.pallas import tpu as pltpu

# ----------------------------- configuration -------------------------------
SRC_DIM = 16
TGT_DIM = 16
D_MODEL = 32
NUM_HEADS = 4
ENC_LAYERS = 2
DEC_LAYERS = 2
D_FF = 4 * D_MODEL
B = 2
S_SRC = 8
S_TGT = 8
NEG_INF = -1e9
LN_EPS = 1e-5


def _vmem_spec():
    # whole array resident in VMEM, no blocking / pipelining (arrays are tiny)
    return pl.BlockSpec(memory_space=pltpu.MemorySpace.VMEM)


# ---------------- in-kernel helpers (operate on traced values) --------------
def _layernorm(x, g, b):
    mu = jnp.mean(x, axis=-1, keepdims=True)
    xc = x - mu
    var = jnp.mean(xc * xc, axis=-1, keepdims=True)
    return xc * lax.rsqrt(var + LN_EPS) * g + b


def _mha(q, k, v, mask_add, *, num_heads):
    """Multi-head attention over flattened (batch*seq) rows.

    q: (Mq, D), k/v: (Mk, D). mask_add: (Mq, Mk) additive mask that already
    encodes the batch block-diagonal structure (cross-batch entries = -1e9),
    so no per-batch loop is needed. Per-head outputs stay in registers and
    are concatenated lane-dense (no scratch stores).
    """
    D = q.shape[-1]
    Dh = D // num_heads
    scale = 1.0 / math.sqrt(Dh)
    outs = []
    for h in range(num_heads):
        sl = slice(h * Dh, (h + 1) * Dh)
        qh, kh, vh = q[:, sl], k[:, sl], v[:, sl]
        # contract the feature dim of both operands -> no explicit k.T
        s = lax.dot_general(qh, kh, (((1,), (1,)), ((), ())),
                            preferred_element_type=jnp.float32) * scale + mask_add
        s = s - jnp.max(s, axis=-1, keepdims=True)
        p = jnp.exp(s)
        p = p * pl.reciprocal(jnp.sum(p, axis=-1, keepdims=True), approx=True)
        outs.append(jnp.dot(p, vh, preferred_element_type=jnp.float32))
    return jnp.concatenate(outs, axis=-1)


# ------------------------------ fused kernel --------------------------------
def fused_forward_kernel(
        enc_x_ref, dec_x_ref, pe_src_ref, pe_tgt_ref,
        enc_self_mask_ref, dec_self_mask_ref, cross_mask_ref,
        enc_in_w_ref, enc_in_b_ref,
        e_wqkv_ref, e_bqkv_ref, e_wo_ref, e_bo_ref, e_g1_ref, e_b1_ref,
        e_w1_ref, e_fb1_ref, e_w2_ref, e_fb2_ref, e_g2_ref, e_b2_ref,
        dec_in_w_ref, dec_in_b_ref,
        d_swqkv_ref, d_sbqkv_ref, d_swo_ref, d_sbo_ref, d_g1_ref, d_b1_ref,
        d_cwq_ref, d_cbq_ref, d_cwkv_ref, d_cbkv_ref, d_cwo_ref, d_cbo_ref,
        d_g2_ref, d_b2_ref,
        d_w1_ref, d_fb1_ref, d_w2_ref, d_fb2_ref, d_g3_ref, d_b3_ref,
        out_w_ref, out_b_ref,
        o_ref, *, num_heads):
    D = e_wqkv_ref.shape[1]
    emb_scale = math.sqrt(D)
    enc_self_mask = enc_self_mask_ref[...]
    dec_self_mask = dec_self_mask_ref[...]
    cross_mask = cross_mask_ref[...]

    # ------------------------------ encoder ---------------------------------
    h = (jnp.dot(enc_x_ref[...], enc_in_w_ref[...],
                 preferred_element_type=jnp.float32)
         + enc_in_b_ref[...]) * emb_scale + pe_src_ref[...]
    for l in range(e_wqkv_ref.shape[0]):                       # unrolled layers
        qkv = (jnp.dot(h, e_wqkv_ref[l], preferred_element_type=jnp.float32)
               + e_bqkv_ref[l])
        a = _mha(qkv[:, 0:D], qkv[:, D:2 * D], qkv[:, 2 * D:3 * D],
                 enc_self_mask, num_heads=num_heads)
        a = jnp.dot(a, e_wo_ref[l], preferred_element_type=jnp.float32) + e_bo_ref[l]
        h = _layernorm(h + a, e_g1_ref[l], e_b1_ref[l])
        f = jnp.maximum(
            jnp.dot(h, e_w1_ref[l], preferred_element_type=jnp.float32) + e_fb1_ref[l],
            0.0)
        f = jnp.dot(f, e_w2_ref[l], preferred_element_type=jnp.float32) + e_fb2_ref[l]
        h = _layernorm(h + f, e_g2_ref[l], e_b2_ref[l])
    enc_h = h                                                   # (B*S_src, D)

    # ------------------------------ decoder ---------------------------------
    h = (jnp.dot(dec_x_ref[...], dec_in_w_ref[...],
                 preferred_element_type=jnp.float32)
         + dec_in_b_ref[...]) * emb_scale + pe_tgt_ref[...]
    for l in range(d_swqkv_ref.shape[0]):                      # unrolled layers
        # masked self-attention
        qkv = (jnp.dot(h, d_swqkv_ref[l], preferred_element_type=jnp.float32)
               + d_sbqkv_ref[l])
        a = _mha(qkv[:, 0:D], qkv[:, D:2 * D], qkv[:, 2 * D:3 * D],
                 dec_self_mask, num_heads=num_heads)
        a = jnp.dot(a, d_swo_ref[l], preferred_element_type=jnp.float32) + d_sbo_ref[l]
        h = _layernorm(h + a, d_g1_ref[l], d_b1_ref[l])

        # cross-attention over encoder outputs
        q = jnp.dot(h, d_cwq_ref[l], preferred_element_type=jnp.float32) + d_cbq_ref[l]
        kv = (jnp.dot(enc_h, d_cwkv_ref[l], preferred_element_type=jnp.float32)
              + d_cbkv_ref[l])
        c = _mha(q, kv[:, 0:D], kv[:, D:2 * D], cross_mask, num_heads=num_heads)
        c = jnp.dot(c, d_cwo_ref[l], preferred_element_type=jnp.float32) + d_cbo_ref[l]
        h = _layernorm(h + c, d_g2_ref[l], d_b2_ref[l])

        # feed-forward
        f = jnp.maximum(
            jnp.dot(h, d_w1_ref[l], preferred_element_type=jnp.float32) + d_fb1_ref[l],
            0.0)
        f = jnp.dot(f, d_w2_ref[l], preferred_element_type=jnp.float32) + d_fb2_ref[l]
        h = _layernorm(h + f, d_g3_ref[l], d_b3_ref[l])

    o_ref[...] = (jnp.dot(h, out_w_ref[...], preferred_element_type=jnp.float32)
                  + out_b_ref[...]).astype(o_ref.dtype)


# ----------------------------- kernel wrapper --------------------------------
def fused_forward(params, enc_x2d, dec_x2d, pe_src2d, pe_tgt2d,
                  enc_self_mask, dec_self_mask, cross_mask):
    enc_s = params["enc_stack"]
    dec_s = params["dec_stack"]
    args = (enc_x2d, dec_x2d, pe_src2d, pe_tgt2d,
            enc_self_mask, dec_self_mask, cross_mask,
            params["enc_in"]["w"], params["enc_in"]["b"],
            enc_s["wqkv"], enc_s["bqkv"], enc_s["wo"], enc_s["bo"],
            enc_s["g1"], enc_s["b1"],
            enc_s["w1"], enc_s["fb1"], enc_s["w2"], enc_s["fb2"],
            enc_s["g2"], enc_s["b2"],
            params["dec_in"]["w"], params["dec_in"]["b"],
            dec_s["swqkv"], dec_s["sbqkv"], dec_s["swo"], dec_s["sbo"],
            dec_s["g1"], dec_s["b1"],
            dec_s["cwq"], dec_s["cbq"], dec_s["cwkv"], dec_s["cbkv"],
            dec_s["cwo"], dec_s["cbo"], dec_s["g2"], dec_s["b2"],
            dec_s["w1"], dec_s["fb1"], dec_s["w2"], dec_s["fb2"],
            dec_s["g3"], dec_s["b3"],
            params["out"]["w"], params["out"]["b"])
    Mt = dec_x2d.shape[0]
    return pl.pallas_call(
        functools.partial(fused_forward_kernel, num_heads=NUM_HEADS),
        out_shape=jax.ShapeDtypeStruct((Mt, TGT_DIM), jnp.float32),
        in_specs=[_vmem_spec()] * len(args),
        out_specs=_vmem_spec(),
    )(*args)


# ----------------------------- masks / glue ----------------------------------
def _block_diag_add(per_batch_add):
    """(B, Sq, Sk) additive masks -> (B*Sq, B*Sk) block-diagonal additive mask.

    Diagonal blocks keep the per-batch mask; off-diagonal (cross-batch)
    positions get NEG_INF so attention over flattened rows never crosses
    batch boundaries.
    """
    Bb, Sq, Sk = per_batch_add.shape
    eye = jnp.eye(Bb, dtype=per_batch_add.dtype)
    full = (eye[:, None, :, None] * (per_batch_add[:, :, None, :] - NEG_INF)
            + NEG_INF)
    return full.reshape(Bb * Sq, Bb * Sk)


def seq2seq_transformer_forward(params, enc_input, dec_input, enc_mask, dec_mask,
                                pe_src2d, pe_tgt2d):
    Bb, Ss, _ = enc_input.shape
    St = dec_input.shape[1]
    # boolean masks -> additive masks (0 where allowed, -1e9 where masked)
    key_add = jnp.where(enc_mask, 0.0, NEG_INF).astype(jnp.float32)        # (B, Ss)
    enc_self = _block_diag_add(jnp.broadcast_to(key_add[:, None, :], (Bb, Ss, Ss)))
    cross = _block_diag_add(jnp.broadcast_to(key_add[:, None, :], (Bb, St, Ss)))
    dec_self = _block_diag_add(jnp.where(dec_mask, 0.0, NEG_INF).astype(jnp.float32))
    out2d = fused_forward(params,
                          enc_input.reshape(Bb * Ss, -1),
                          dec_input.reshape(Bb * St, -1),
                          pe_src2d, pe_tgt2d, enc_self, dec_self, cross)
    return out2d.reshape(Bb, St, TGT_DIM)


# ----------------------------- parameter init --------------------------------
def _keygen(seed=0):
    key = jax.random.PRNGKey(seed)
    while True:
        key, sub = jax.random.split(key)
        yield sub


def _init_linear(keys, in_dim, out_dim):
    lim = 1.0 / math.sqrt(in_dim)
    w = jax.random.uniform(next(keys), (in_dim, out_dim), jnp.float32, -lim, lim)
    b = jax.random.uniform(next(keys), (1, out_dim), jnp.float32, -lim, lim)
    return w, b


def _ln_pair(d):
    return jnp.ones((1, d), jnp.float32), jnp.zeros((1, d), jnp.float32)


def _init_enc_stack(keys, n_layers, d, dff):
    names = ("wqkv", "bqkv", "wo", "bo", "g1", "b1",
             "w1", "fb1", "w2", "fb2", "g2", "b2")
    acc = {k: [] for k in names}
    for _ in range(n_layers):
        wq, bq = _init_linear(keys, d, d)
        wk, bk = _init_linear(keys, d, d)
        wv, bv = _init_linear(keys, d, d)
        wo, bo = _init_linear(keys, d, d)
        acc["wqkv"].append(jnp.concatenate([wq, wk, wv], axis=1))
        acc["bqkv"].append(jnp.concatenate([bq, bk, bv], axis=1))
        acc["wo"].append(wo)
        acc["bo"].append(bo)
        g1, b1 = _ln_pair(d)
        acc["g1"].append(g1)
        acc["b1"].append(b1)
        w1, fb1 = _init_linear(keys, d, dff)
        w2, fb2 = _init_linear(keys, dff, d)
        acc["w1"].append(w1)
        acc["fb1"].append(fb1)
        acc["w2"].append(w2)
        acc["fb2"].append(fb2)
        g2, b2 = _ln_pair(d)
        acc["g2"].append(g2)
        acc["b2"].append(b2)
    return {k: jnp.stack(v) for k, v in acc.items()}


def _init_dec_stack(keys, n_layers, d, dff):
    names = ("swqkv", "sbqkv", "swo", "sbo", "g1", "b1",
             "cwq", "cbq", "cwkv", "cbkv", "cwo", "cbo", "g2", "b2",
             "w1", "fb1", "w2", "fb2", "g3", "b3")
    acc = {k: [] for k in names}
    for _ in range(n_layers):
        wq, bq = _init_linear(keys, d, d)
        wk, bk = _init_linear(keys, d, d)
        wv, bv = _init_linear(keys, d, d)
        wo, bo = _init_linear(keys, d, d)
        acc["swqkv"].append(jnp.concatenate([wq, wk, wv], axis=1))
        acc["sbqkv"].append(jnp.concatenate([bq, bk, bv], axis=1))
        acc["swo"].append(wo)
        acc["sbo"].append(bo)
        g1, b1 = _ln_pair(d)
        acc["g1"].append(g1)
        acc["b1"].append(b1)
        cwq, cbq = _init_linear(keys, d, d)
        cwk, cbk = _init_linear(keys, d, d)
        cwv, cbv = _init_linear(keys, d, d)
        cwo, cbo = _init_linear(keys, d, d)
        acc["cwq"].append(cwq)
        acc["cbq"].append(cbq)
        acc["cwkv"].append(jnp.concatenate([cwk, cwv], axis=1))
        acc["cbkv"].append(jnp.concatenate([cbk, cbv], axis=1))
        acc["cwo"].append(cwo)
        acc["cbo"].append(cbo)
        g2, b2 = _ln_pair(d)
        acc["g2"].append(g2)
        acc["b2"].append(b2)
        w1, fb1 = _init_linear(keys, d, dff)
        w2, fb2 = _init_linear(keys, dff, d)
        acc["w1"].append(w1)
        acc["fb1"].append(fb1)
        acc["w2"].append(w2)
        acc["fb2"].append(fb2)
        g3, b3 = _ln_pair(d)
        acc["g3"].append(g3)
        acc["b3"].append(b3)
    return {k: jnp.stack(v) for k, v in acc.items()}


def init_params():
    keys = _keygen(0)
    enc_in_w, enc_in_b = _init_linear(keys, SRC_DIM, D_MODEL)
    enc_stack = _init_enc_stack(keys, ENC_LAYERS, D_MODEL, D_FF)
    dec_in_w, dec_in_b = _init_linear(keys, TGT_DIM, D_MODEL)
    dec_stack = _init_dec_stack(keys, DEC_LAYERS, D_MODEL, D_FF)
    out_w, out_b = _init_linear(keys, D_MODEL, TGT_DIM)
    return {"enc_in": {"w": enc_in_w, "b": enc_in_b},
            "enc_stack": enc_stack,
            "dec_in": {"w": dec_in_w, "b": dec_in_b},
            "dec_stack": dec_stack,
            "out": {"w": out_w, "b": out_b}}


def sinusoidal_pe(S, D):
    pos = jnp.arange(S, dtype=jnp.float32)[:, None]
    i = jnp.arange(D // 2, dtype=jnp.float32)[None, :]
    angle = pos / jnp.power(10000.0, 2.0 * i / D)
    pe = jnp.zeros((S, D), jnp.float32)
    pe = pe.at[:, 0::2].set(jnp.sin(angle))
    pe = pe.at[:, 1::2].set(jnp.cos(angle))
    return pe


# TODO(synk): the nn.Module's registered buffers (train_step, epoch, warmup_steps,
# betas) only affect the optimizer/LR schedule, not the forward pass, so they are omitted.

# ----------------------------------- main -----------------------------------
if __name__ == "__main__":
    params = init_params()

    # positional encodings precomputed once outside the jitted hot path
    pe_src = jnp.tile(sinusoidal_pe(S_SRC, D_MODEL), (B, 1))   # (B*S_src, D)
    pe_tgt = jnp.tile(sinusoidal_pe(S_TGT, D_MODEL), (B, 1))   # (B*S_tgt, D)

    key = jax.random.PRNGKey(0)
    k1, k2 = jax.random.split(key)
    enc_input = jax.random.normal(k1, (B, S_SRC, SRC_DIM), jnp.float32)
    dec_input = jax.random.normal(k2, (B, S_TGT, TGT_DIM), jnp.float32)

    # padding mask for source: batch 1 has its last two positions padded
    enc_mask = jnp.ones((B, S_SRC), dtype=bool).at[1, -2:].set(False)
    # causal mask for target self-attention
    causal = jnp.tril(jnp.ones((S_TGT, S_TGT), dtype=bool))
    dec_mask = jnp.broadcast_to(causal[None], (B, S_TGT, S_TGT))

    fwd = jax.jit(seq2seq_transformer_forward)
    out = fwd(params, enc_input, dec_input, enc_mask, dec_mask, pe_src, pe_tgt)
    jax.block_until_ready(out)

    assert out.shape == (B, S_TGT, TGT_DIM)
    assert bool(jnp.all(jnp.isfinite(out)))
    print("KERNEL_OK")
</pallas_src>

<mosaic_0001>
module attributes {stable_mosaic.version = 11 : i64} {
  func.func @fused_forward_kernel(%arg0: memref<16x16xf32, #tpu.memory_space<vmem>>, %arg1: memref<16x16xf32, #tpu.memory_space<vmem>>, %arg2: memref<16x32xf32, #tpu.memory_space<vmem>>, %arg3: memref<16x32xf32, #tpu.memory_space<vmem>>, %arg4: memref<16x16xf32, #tpu.memory_space<vmem>>, %arg5: memref<16x16xf32, #tpu.memory_space<vmem>>, %arg6: memref<16x16xf32, #tpu.memory_space<vmem>>, %arg7: memref<16x32xf32, #tpu.memory_space<vmem>>, %arg8: memref<1x32xf32, #tpu.memory_space<vmem>>, %arg9: memref<2x32x96xf32, #tpu.memory_space<vmem>>, %arg10: memref<2x1x96xf32, #tpu.memory_space<vmem>>, %arg11: memref<2x32x32xf32, #tpu.memory_space<vmem>>, %arg12: memref<2x1x32xf32, #tpu.memory_space<vmem>>, %arg13: memref<2x1x32xf32, #tpu.memory_space<vmem>>, %arg14: memref<2x1x32xf32, #tpu.memory_space<vmem>>, %arg15: memref<2x32x128xf32, #tpu.memory_space<vmem>>, %arg16: memref<2x1x128xf32, #tpu.memory_space<vmem>>, %arg17: memref<2x128x32xf32, #tpu.memory_space<vmem>>, %arg18: memref<2x1x32xf32, #tpu.memory_space<vmem>>, %arg19: memref<2x1x32xf32, #tpu.memory_space<vmem>>, %arg20: memref<2x1x32xf32, #tpu.memory_space<vmem>>, %arg21: memref<16x32xf32, #tpu.memory_space<vmem>>, %arg22: memref<1x32xf32, #tpu.memory_space<vmem>>, %arg23: memref<2x32x96xf32, #tpu.memory_space<vmem>>, %arg24: memref<2x1x96xf32, #tpu.memory_space<vmem>>, %arg25: memref<2x32x32xf32, #tpu.memory_space<vmem>>, %arg26: memref<2x1x32xf32, #tpu.memory_space<vmem>>, %arg27: memref<2x1x32xf32, #tpu.memory_space<vmem>>, %arg28: memref<2x1x32xf32, #tpu.memory_space<vmem>>, %arg29: memref<2x32x32xf32, #tpu.memory_space<vmem>>, %arg30: memref<2x1x32xf32, #tpu.memory_space<vmem>>, %arg31: memref<2x32x64xf32, #tpu.memory_space<vmem>>, %arg32: memref<2x1x64xf32, #tpu.memory_space<vmem>>, %arg33: memref<2x32x32xf32, #tpu.memory_space<vmem>>, %arg34: memref<2x1x32xf32, #tpu.memory_space<vmem>>, %arg35: memref<2x1x32xf32, #tpu.memory_space<vmem>>, %arg36: memref<2x1x32xf32, #tpu.memory_space<vmem>>, %arg37: memref<2x32x128xf32, #tpu.memory_space<vmem>>, %arg38: memref<2x1x128xf32, #tpu.memory_space<vmem>>, %arg39: memref<2x128x32xf32, #tpu.memory_space<vmem>>, %arg40: memref<2x1x32xf32, #tpu.memory_space<vmem>>, %arg41: memref<2x1x32xf32, #tpu.memory_space<vmem>>, %arg42: memref<2x1x32xf32, #tpu.memory_space<vmem>>, %arg43: memref<32x16xf32, #tpu.memory_space<vmem>>, %arg44: memref<1x16xf32, #tpu.memory_space<vmem>>, %arg45: memref<16x16xf32, #tpu.memory_space<vmem>>) attributes {dimension_semantics = [], scalar_prefetch = 0 : i64, scratch_operands = 0 : i64, tpu.core_type = #tpu.core_type<tc>} {
    %c0 = arith.constant 0 : index
    %c0_0 = arith.constant 0 : index
    %0 = vector.load %arg4[%c0, %c0_0] : memref<16x16xf32, #tpu.memory_space<vmem>>, vector<16x16xf32>
    %c0_1 = arith.constant 0 : index
    %c0_2 = arith.constant 0 : index
    %1 = vector.load %arg5[%c0_1, %c0_2] : memref<16x16xf32, #tpu.memory_space<vmem>>, vector<16x16xf32>
    %c0_3 = arith.constant 0 : index
    %c0_4 = arith.constant 0 : index
    %2 = vector.load %arg6[%c0_3, %c0_4] : memref<16x16xf32, #tpu.memory_space<vmem>>, vector<16x16xf32>
    %c0_5 = arith.constant 0 : index
    %c0_6 = arith.constant 0 : index
    %3 = vector.load %arg0[%c0_5, %c0_6] : memref<16x16xf32, #tpu.memory_space<vmem>>, vector<16x16xf32>
    %c0_7 = arith.constant 0 : index
    %c0_8 = arith.constant 0 : index
    %4 = vector.load %arg7[%c0_7, %c0_8] : memref<16x32xf32, #tpu.memory_space<vmem>>, vector<16x32xf32>
    %cst = arith.constant dense<0.000000e+00> : vector<16x32xf32>
    %5 = tpu.matmul %3, %4, %cst {dimension_numbers = #tpu.dot_dimension_numbers<[1], [0], [0], [1], [0, 0, 1, 1], [], []>} : vector<16x16xf32>, vector<16x32xf32>, vector<16x32xf32> -> vector<16x32xf32>
    %c0_9 = arith.constant 0 : index
    %c0_10 = arith.constant 0 : index
    %6 = vector.load %arg8[%c0_9, %c0_10] : memref<1x32xf32, #tpu.memory_space<vmem>>, vector<1x32xf32>
    %7 = vector.broadcast %6 : vector<1x32xf32> to vector<16x32xf32>
    %8 = arith.addf %5, %7 : vector<16x32xf32>
    %cst_11 = arith.constant 5.65685415 : f32
    %9 = vector.broadcast %cst_11 : f32 to vector<16x32xf32>
    %10 = arith.mulf %8, %9 : vector<16x32xf32>
    %c0_12 = arith.constant 0 : index
    %c0_13 = arith.constant 0 : index
    %11 = vector.load %arg2[%c0_12, %c0_13] : memref<16x32xf32, #tpu.memory_space<vmem>>, vector<16x32xf32>
    %12 = arith.addf %10, %11 : vector<16x32xf32>
    %c0_14 = arith.constant 0 : index
    %c0_15 = arith.constant 0 : index
    %c0_16 = arith.constant 0 : index
    %13 = vector.load %arg9[%c0_14, %c0_15, %c0_16] : memref<2x32x96xf32, #tpu.memory_space<vmem>>, vector<1x32x96xf32>
    %14 = vector.shape_cast %13 : vector<1x32x96xf32> to vector<32x96xf32>
    %cst_17 = arith.constant dense<0.000000e+00> : vector<16x96xf32>
    %15 = tpu.matmul %12, %14, %cst_17 {dimension_numbers = #tpu.dot_dimension_numbers<[1], [0], [0], [1], [0, 0, 1, 1], [], []>} : vector<16x32xf32>, vector<32x96xf32>, vector<16x96xf32> -> vector<16x96xf32>
    %c0_18 = arith.constant 0 : index
    %c0_19 = arith.constant 0 : index
    %c0_20 = arith.constant 0 : index
    %16 = vector.load %arg10[%c0_18, %c0_19, %c0_20] : memref<2x1x96xf32, #tpu.memory_space<vmem>>, vector<1x1x96xf32>
    %17 = vector.shape_cast %16 : vector<1x1x96xf32> to vector<1x96xf32>
    %18 = vector.broadcast %17 : vector<1x96xf32> to vector<16x96xf32>
    %19 = arith.addf %15, %18 : vector<16x96xf32>
    %20 = vector.extract_strided_slice %19 {offsets = [0, 0], sizes = [16, 32], strides = [1, 1]} : vector<16x96xf32> to vector<16x32xf32>
    %21 = vector.extract_strided_slice %19 {offsets = [0, 32], sizes = [16, 32], strides = [1, 1]} : vector<16x96xf32> to vector<16x32xf32>
    %22 = vector.extract_strided_slice %19 {offsets = [0, 64], sizes = [16, 32], strides = [1, 1]} : vector<16x96xf32> to vector<16x32xf32>
    %23 = vector.extract_strided_slice %20 {offsets = [0, 0], sizes = [16, 8], strides = [1, 1]} : vector<16x32xf32> to vector<16x8xf32>
    %24 = vector.extract_strided_slice %21 {offsets = [0, 0], sizes = [16, 8], strides = [1, 1]} : vector<16x32xf32> to vector<16x8xf32>
    %25 = vector.extract_strided_slice %22 {offsets = [0, 0], sizes = [16, 8], strides = [1, 1]} : vector<16x32xf32> to vector<16x8xf32>
    %cst_21 = arith.constant dense<0.000000e+00> : vector<16x16xf32>
    %26 = tpu.matmul %23, %24, %cst_21 {dimension_numbers = #tpu.dot_dimension_numbers<[1], [1], [0], [0], [0, 0, 1, 0], [], []>} : vector<16x8xf32>, vector<16x8xf32>, vector<16x16xf32> -> vector<16x16xf32>
    %cst_22 = arith.constant 0.353553385 : f32
    %27 = vector.broadcast %cst_22 : f32 to vector<16x16xf32>
    %28 = arith.mulf %26, %27 : vector<16x16xf32>
    %29 = arith.addf %28, %0 : vector<16x16xf32>
    %cst_23 = arith.constant dense<0xFF800000> : vector<16xf32>
    %30 = vector.multi_reduction <maximumf>, %29, %cst_23 [1] : vector<16x16xf32> to vector<16xf32>
    %31 = vector.shape_cast %30 : vector<16xf32> to vector<16x1xf32>
    %32 = vector.broadcast %31 : vector<16x1xf32> to vector<16x16xf32>
    %33 = arith.subf %29, %32 : vector<16x16xf32>
    %34 = math.exp %33 : vector<16x16xf32>
    %cst_24 = arith.constant dense<0.000000e+00> : vector<16xf32>
    %35 = vector.multi_reduction <add>, %34, %cst_24 [1] : vector<16x16xf32> to vector<16xf32>
    %36 = vector.shape_cast %35 : vector<16xf32> to vector<16x1xf32>
    %37 = tpu.reciprocal %36 {approx = true} : vector<16x1xf32> -> vector<16x1xf32>
    %38 = vector.broadcast %37 : vector<16x1xf32> to vector<16x16xf32>
    %39 = arith.mulf %34, %38 : vector<16x16xf32>
    %cst_25 = arith.constant dense<0.000000e+00> : vector<16x8xf32>
    %40 = tpu.matmul %39, %25, %cst_25 {dimension_numbers = #tpu.dot_dimension_numbers<[1], [0], [0], [1], [0, 0, 1, 1], [], []>} : vector<16x16xf32>, vector<16x8xf32>, vector<16x8xf32> -> vector<16x8xf32>
    %41 = vector.extract_strided_slice %20 {offsets = [0, 8], sizes = [16, 8], strides = [1, 1]} : vector<16x32xf32> to vector<16x8xf32>
    %42 = vector.extract_strided_slice %21 {offsets = [0, 8], sizes = [16, 8], strides = [1, 1]} : vector<16x32xf32> to vector<16x8xf32>
    %43 = vector.extract_strided_slice %22 {offsets = [0, 8], sizes = [16, 8], strides = [1, 1]} : vector<16x32xf32> to vector<16x8xf32>
    %cst_26 = arith.constant dense<0.000000e+00> : vector<16x16xf32>
    %44 = tpu.matmul %41, %42, %cst_26 {dimension_numbers = #tpu.dot_dimension_numbers<[1], [1], [0], [0], [0, 0, 1, 0], [], []>} : vector<16x8xf32>, vector<16x8xf32>, vector<16x16xf32> -> vector<16x16xf32>
    %cst_27 = arith.constant 0.353553385 : f32
    %45 = vector.broadcast %cst_27 : f32 to vector<16x16xf32>
    %46 = arith.mulf %44, %45 : vector<16x16xf32>
    %47 = arith.addf %46, %0 : vector<16x16xf32>
    %cst_28 = arith.constant dense<0xFF800000> : vector<16xf32>
    %48 = vector.multi_reduction <maximumf>, %47, %cst_28 [1] : vector<16x16xf32> to vector<16xf32>
    %49 = vector.shape_cast %48 : vector<16xf32> to vector<16x1xf32>
    %50 = vector.broadcast %49 : vector<16x1xf32> to vector<16x16xf32>
    %51 = arith.subf %47, %50 : vector<16x16xf32>
    %52 = math.exp %51 : vector<16x16xf32>
    %cst_29 = arith.constant dense<0.000000e+00> : vector<16xf32>
    %53 = vector.multi_reduction <add>, %52, %cst_29 [1] : vector<16x16xf32> to vector<16xf32>
    %54 = vector.shape_cast %53 : vector<16xf32> to vector<16x1xf32>
    %55 = tpu.reciprocal %54 {approx = true} : vector<16x1xf32> -> vector<16x1xf32>
    %56 = vector.broadcast %55 : vector<16x1xf32> to vector<16x16xf32>
    %57 = arith.mulf %52, %56 : vector<16x16xf32>
    %cst_30 = arith.constant dense<0.000000e+00> : vector<16x8xf32>
    %58 = tpu.matmul %57, %43, %cst_30 {dimension_numbers = #tpu.dot_dimension_numbers<[1], [0], [0], [1], [0, 0, 1, 1], [], []>} : vector<16x16xf32>, vector<16x8xf32>, vector<16x8xf32> -> vector<16x8xf32>
    %59 = vector.extract_strided_slice %20 {offsets = [0, 16], sizes = [16, 8], strides = [1, 1]} : vector<16x32xf32> to vector<16x8xf32>
    %60 = vector.extract_strided_slice %21 {offsets = [0, 16], sizes = [16, 8], strides = [1, 1]} : vector<16x32xf32> to vector<16x8xf32>
    %61 = vector.extract_strided_slice %22 {offsets = [0, 16], sizes = [16, 8], strides = [1, 1]} : vector<16x32xf32> to vector<16x8xf32>
    %cst_31 = arith.constant dense<0.000000e+00> : vector<16x16xf32>
    %62 = tpu.matmul %59, %60, %cst_31 {dimension_numbers = #tpu.dot_dimension_numbers<[1], [1], [0], [0], [0, 0, 1, 0], [], []>} : vector<16x8xf32>, vector<16x8xf32>, vector<16x16xf32> -> vector<16x16xf32>
    %cst_32 = arith.constant 0.353553385 : f32
    %63 = vector.broadcast %cst_32 : f32 to vector<16x16xf32>
    %64 = arith.mulf %62, %63 : vector<16x16xf32>
    %65 = arith.addf %64, %0 : vector<16x16xf32>
    %cst_33 = arith.constant dense<0xFF800000> : vector<16xf32>
    %66 = vector.multi_reduction <maximumf>, %65, %cst_33 [1] : vector<16x16xf32> to vector<16xf32>
    %67 = vector.shape_cast %66 : vector<16xf32> to vector<16x1xf32>
    %68 = vector.broadcast %67 : vector<16x1xf32> to vector<16x16xf32>
    %69 = arith.subf %65, %68 : vector<16x16xf32>
    %70 = math.exp %69 : vector<16x16xf32>
    %cst_34 = arith.constant dense<0.000000e+00> : vector<16xf32>
    %71 = vector.multi_reduction <add>, %70, %cst_34 [1] : vector<16x16xf32> to vector<16xf32>
    %72 = vector.shape_cast %71 : vector<16xf32> to vector<16x1xf32>
    %73 = tpu.reciprocal %72 {approx = true} : vector<16x1xf32> -> vector<16x1xf32>
    %74 = vector.broadcast %73 : vector<16x1xf32> to vector<16x16xf32>
    %75 = arith.mulf %70, %74 : vector<16x16xf32>
    %cst_35 = arith.constant dense<0.000000e+00> : vector<16x8xf32>
    %76 = tpu.matmul %75, %61, %cst_35 {dimension_numbers = #tpu.dot_dimension_numbers<[1], [0], [0], [1], [0, 0, 1, 1], [], []>} : vector<16x16xf32>, vector<16x8xf32>, vector<16x8xf32> -> vector<16x8xf32>
    %77 = vector.extract_strided_slice %20 {offsets = [0, 24], sizes = [16, 8], strides = [1, 1]} : vector<16x32xf32> to vector<16x8xf32>
    %78 = vector.extract_strided_slice %21 {offsets = [0, 24], sizes = [16, 8], strides = [1, 1]} : vector<16x32xf32> to vector<16x8xf32>
    %79 = vector.extract_strided_slice %22 {offsets = [0, 24], sizes = [16, 8], strides = [1, 1]} : vector<16x32xf32> to vector<16x8xf32>
    %cst_36 = arith.constant dense<0.000000e+00> : vector<16x16xf32>
    %80 = tpu.matmul %77, %78, %cst_36 {dimension_numbers = #tpu.dot_dimension_numbers<[1], [1], [0], [0], [0, 0, 1, 0], [], []>} : vector<16x8xf32>, vector<16x8xf32>, vector<16x16xf32> -> vector<16x16xf32>
    %cst_37 = arith.constant 0.353553385 : f32
    %81 = vector.broadcast %cst_37 : f32 to vector<16x16xf32>
    %82 = arith.mulf %80, %81 : vector<16x16xf32>
    %83 = arith.addf %82, %0 : vector<16x16xf32>
    %cst_38 = arith.constant dense<0xFF800000> : vector<16xf32>
    %84 = vector.multi_reduction <maximumf>, %83, %cst_38 [1] : vector<16x16xf32> to vector<16xf32>
    %85 = vector.shape_cast %84 : vector<16xf32> to vector<16x1xf32>
    %86 = vector.broadcast %85 : vector<16x1xf32> to vector<16x16xf32>
    %87 = arith.subf %83, %86 : vector<16x16xf32>
    %88 = math.exp %87 : vector<16x16xf32>
    %cst_39 = arith.constant dense<0.000000e+00> : vector<16xf32>
    %89 = vector.multi_reduction <add>, %88, %cst_39 [1] : vector<16x16xf32> to vector<16xf32>
    %90 = vector.shape_cast %89 : vector<16xf32> to vector<16x1xf32>
    %91 = tpu.reciprocal %90 {approx = true} : vector<16x1xf32> -> vector<16x1xf32>
    %92 = vector.broadcast %91 : vector<16x1xf32> to vector<16x16xf32>
    %93 = arith.mulf %88, %92 : vector<16x16xf32>
    %cst_40 = arith.constant dense<0.000000e+00> : vector<16x8xf32>
    %94 = tpu.matmul %93, %79, %cst_40 {dimension_numbers = #tpu.dot_dimension_numbers<[1], [0], [0], [1], [0, 0, 1, 1], [], []>} : vector<16x16xf32>, vector<16x8xf32>, vector<16x8xf32> -> vector<16x8xf32>
    %95 = tpu.concatenate %40, %58, %76, %94 in 1 : vector<16x8xf32>, vector<16x8xf32>, vector<16x8xf32>, vector<16x8xf32> -> vector<16x32xf32>
    %c0_41 = arith.constant 0 : index
    %c0_42 = arith.constant 0 : index
    %c0_43 = arith.constant 0 : index
    %96 = vector.load %arg11[%c0_41, %c0_42, %c0_43] : memref<2x32x32xf32, #tpu.memory_space<vmem>>, vector<1x32x32xf32>
    %97 = vector.shape_cast %96 : vector<1x32x32xf32> to vector<32x32xf32>
    %cst_44 = arith.constant dense<0.000000e+00> : vector<16x32xf32>
    %98 = tpu.matmul %95, %97, %cst_44 {dimension_numbers = #tpu.dot_dimension_numbers<[1], [0], [0], [1], [0, 0, 1, 1], [], []>} : vector<16x32xf32>, vector<32x32xf32>, vector<16x32xf32> -> vector<16x32xf32>
    %c0_45 = arith.constant 0 : index
    %c0_46 = arith.constant 0 : index
    %c0_47 = arith.constant 0 : index
    %99 = vector.load %arg12[%c0_45, %c0_46, %c0_47] : memref<2x1x32xf32, #tpu.memory_space<vmem>>, vector<1x1x32xf32>
    %100 = vector.shape_cast %99 : vector<1x1x32xf32> to vector<1x32xf32>
    %101 = vector.broadcast %100 : vector<1x32xf32> to vector<16x32xf32>
    %102 = arith.addf %98, %101 : vector<16x32xf32>
    %103 = arith.addf %12, %102 : vector<16x32xf32>
    %c0_48 = arith.constant 0 : index
    %c0_49 = arith.constant 0 : index
    %c0_50 = arith.constant 0 : index
    %104 = vector.load %arg13[%c0_48, %c0_49, %c0_50] : memref<2x1x32xf32, #tpu.memory_space<vmem>>, vector<1x1x32xf32>
    %105 = vector.shape_cast %104 : vector<1x1x32xf32> to vector<1x32xf32>
    %c0_51 = arith.constant 0 : index
    %c0_52 = arith.constant 0 : index
    %c0_53 = arith.constant 0 : index
    %106 = vector.load %arg14[%c0_51, %c0_52, %c0_53] : memref<2x1x32xf32, #tpu.memory_space<vmem>>, vector<1x1x32xf32>
    %107 = vector.shape_cast %106 : vector<1x1x32xf32> to vector<1x32xf32>
    %cst_54 = arith.constant dense<0.000000e+00> : vector<16xf32>
    %108 = vector.multi_reduction <add>, %103, %cst_54 [1] : vector<16x32xf32> to vector<16xf32>
    %109 = vector.shape_cast %108 : vector<16xf32> to vector<16x1xf32>
    %cst_55 = arith.constant 3.200000e+01 : f32
    %110 = vector.broadcast %cst_55 : f32 to vector<16x1xf32>
    %111 = arith.divf %109, %110 : vector<16x1xf32>
    %112 = vector.broadcast %111 : vector<16x1xf32> to vector<16x32xf32>
    %113 = arith.subf %103, %112 : vector<16x32xf32>
    %114 = arith.mulf %113, %113 : vector<16x32xf32>
    %cst_56 = arith.constant dense<0.000000e+00> : vector<16xf32>
    %115 = vector.multi_reduction <add>, %114, %cst_56 [1] : vector<16x32xf32> to vector<16xf32>
    %116 = vector.shape_cast %115 : vector<16xf32> to vector<16x1xf32>
    %cst_57 = arith.constant 3.200000e+01 : f32
    %117 = vector.broadcast %cst_57 : f32 to vector<16x1xf32>
    %118 = arith.divf %116, %117 : vector<16x1xf32>
    %cst_58 = arith.constant 9.99999974E-6 : f32
    %119 = vector.broadcast %cst_58 : f32 to vector<16x1xf32>
    %120 = arith.addf %118, %119 : vector<16x1xf32>
    %121 = math.rsqrt %120 : vector<16x1xf32>
    %122 = vector.broadcast %121 : vector<16x1xf32> to vector<16x32xf32>
    %123 = arith.mulf %113, %122 : vector<16x32xf32>
    %124 = vector.broadcast %105 : vector<1x32xf32> to vector<16x32xf32>
    %125 = arith.mulf %123, %124 : vector<16x32xf32>
    %126 = vector.broadcast %107 : vector<1x32xf32> to vector<16x32xf32>
    %127 = arith.addf %125, %126 : vector<16x32xf32>
    %c0_59 = arith.constant 0 : index
    %c0_60 = arith.constant 0 : index
    %c0_61 = arith.constant 0 : index
    %128 = vector.load %arg15[%c0_59, %c0_60, %c0_61] : memref<2x32x128xf32, #tpu.memory_space<vmem>>, vector<1x32x128xf32>
    %129 = vector.shape_cast %128 : vector<1x32x128xf32> to vector<32x128xf32>
    %cst_62 = arith.constant dense<0.000000e+00> : vector<16x128xf32>
    %130 = tpu.matmul %127, %129, %cst_62 {dimension_numbers = #tpu.dot_dimension_numbers<[1], [0], [0], [1], [0, 0, 1, 1], [], []>} : vector<16x32xf32>, vector<32x128xf32>, vector<16x128xf32> -> vector<16x128xf32>
    %c0_63 = arith.constant 0 : index
    %c0_64 = arith.constant 0 : index
    %c0_65 = arith.constant 0 : index
    %131 = vector.load %arg16[%c0_63, %c0_64, %c0_65] : memref<2x1x128xf32, #tpu.memory_space<vmem>>, vector<1x1x128xf32>
    %132 = vector.shape_cast %131 : vector<1x1x128xf32> to vector<1x128xf32>
    %133 = vector.broadcast %132 : vector<1x128xf32> to vector<16x128xf32>
    %134 = arith.addf %130, %133 : vector<16x128xf32>
    %cst_66 = arith.constant 0.000000e+00 : f32
    %135 = vector.broadcast %cst_66 : f32 to vector<16x128xf32>
    %136 = arith.maximumf %134, %135 : vector<16x128xf32>
    %c0_67 = arith.constant 0 : index
    %c0_68 = arith.constant 0 : index
    %c0_69 = arith.constant 0 : index
    %137 = vector.load %arg17[%c0_67, %c0_68, %c0_69] : memref<2x128x32xf32, #tpu.memory_space<vmem>>, vector<1x128x32xf32>
    %138 = vector.shape_cast %137 : vector<1x128x32xf32> to vector<128x32xf32>
    %cst_70 = arith.constant dense<0.000000e+00> : vector<16x32xf32>
    %139 = tpu.matmul %136, %138, %cst_70 {dimension_numbers = #tpu.dot_dimension_numbers<[1], [0], [0], [1], [0, 0, 1, 1], [], []>} : vector<16x128xf32>, vector<128x32xf32>, vector<16x32xf32> -> vector<16x32xf32>
    %c0_71 = arith.constant 0 : index
    %c0_72 = arith.constant 0 : index
    %c0_73 = arith.constant 0 : index
    %140 = vector.load %arg18[%c0_71, %c0_72, %c0_73] : memref<2x1x32xf32, #tpu.memory_space<vmem>>, vector<1x1x32xf32>
    %141 = vector.shape_cast %140 : vector<1x1x32xf32> to vector<1x32xf32>
    %142 = vector.broadcast %141 : vector<1x32xf32> to vector<16x32xf32>
    %143 = arith.addf %139, %142 : vector<16x32xf32>
    %144 = arith.addf %127, %143 : vector<16x32xf32>
    %c0_74 = arith.constant 0 : index
    %c0_75 = arith.constant 0 : index
    %c0_76 = arith.constant 0 : index
    %145 = vector.load %arg19[%c0_74, %c0_75, %c0_76] : memref<2x1x32xf32, #tpu.memory_space<vmem>>, vector<1x1x32xf32>
    %146 = vector.shape_cast %145 : vector<1x1x32xf32> to vector<1x32xf32>
    %c0_77 = arith.constant 0 : index
    %c0_78 = arith.constant 0 : index
    %c0_79 = arith.constant 0 : index
    %147 = vector.load %arg20[%c0_77, %c0_78, %c0_79] : memref<2x1x32xf32, #tpu.memory_space<vmem>>, vector<1x1x32xf32>
    %148 = vector.shape_cast %147 : vector<1x1x32xf32> to vector<1x32xf32>
    %cst_80 = arith.constant dense<0.000000e+00> : vector<16xf32>
    %149 = vector.multi_reduction <add>, %144, %cst_80 [1] : vector<16x32xf32> to vector<16xf32>
    %150 = vector.shape_cast %149 : vector<16xf32> to vector<16x1xf32>
    %cst_81 = arith.constant 3.200000e+01 : f32
    %151 = vector.broadcast %cst_81 : f32 to vector<16x1xf32>
    %152 = arith.divf %150, %151 : vector<16x1xf32>
    %153 = vector.broadcast %152 : vector<16x1xf32> to vector<16x32xf32>
    %154 = arith.subf %144, %153 : vector<16x32xf32>
    %155 = arith.mulf %154, %154 : vector<16x32xf32>
    %cst_82 = arith.constant dense<0.000000e+00> : vector<16xf32>
    %156 = vector.multi_reduction <add>, %155, %cst_82 [1] : vector<16x32xf32> to vector<16xf32>
    %157 = vector.shape_cast %156 : vector<16xf32> to vector<16x1xf32>
    %cst_83 = arith.constant 3.200000e+01 : f32
    %158 = vector.broadcast %cst_83 : f32 to vector<16x1xf32>
    %159 = arith.divf %157, %158 : vector<16x1xf32>
    %cst_84 = arith.constant 9.99999974E-6 : f32
    %160 = vector.broadcast %cst_84 : f32 to vector<16x1xf32>
    %161 = arith.addf %159, %160 : vector<16x1xf32>
    %162 = math.rsqrt %161 : vector<16x1xf32>
    %163 = vector.broadcast %162 : vector<16x1xf32> to vector<16x32xf32>
    %164 = arith.mulf %154, %163 : vector<16x32xf32>
    %165 = vector.broadcast %146 : vector<1x32xf32> to vector<16x32xf32>
    %166 = arith.mulf %164, %165 : vector<16x32xf32>
    %167 = vector.broadcast %148 : vector<1x32xf32> to vector<16x32xf32>
    %168 = arith.addf %166, %167 : vector<16x32xf32>
    %c1 = arith.constant 1 : index
    %c0_85 = arith.constant 0 : index
    %c0_86 = arith.constant 0 : index
    %169 = vector.load %arg9[%c1, %c0_85, %c0_86] : memref<2x32x96xf32, #tpu.memory_space<vmem>>, vector<1x32x96xf32>
    %170 = vector.shape_cast %169 : vector<1x32x96xf32> to vector<32x96xf32>
    %cst_87 = arith.constant dense<0.000000e+00> : vector<16x96xf32>
    %171 = tpu.matmul %168, %170, %cst_87 {dimension_numbers = #tpu.dot_dimension_numbers<[1], [0], [0], [1], [0, 0, 1, 1], [], []>} : vector<16x32xf32>, vector<32x96xf32>, vector<16x96xf32> -> vector<16x96xf32>
    %c1_88 = arith.constant 1 : index
    %c0_89 = arith.constant 0 : index
    %c0_90 = arith.constant 0 : index
    %172 = vector.load %arg10[%c1_88, %c0_89, %c0_90] : memref<2x1x96xf32, #tpu.memory_space<vmem>>, vector<1x1x96xf32>
    %173 = vector.shape_cast %172 : vector<1x1x96xf32> to vector<1x96xf32>
    %174 = vector.broadcast %173 : vector<1x96xf32> to vector<16x96xf32>
    %175 = arith.addf %171, %174 : vector<16x96xf32>
    %176 = vector.extract_strided_slice %175 {offsets = [0, 0], sizes = [16, 32], strides = [1, 1]} : vector<16x96xf32> to vector<16x32xf32>
    %177 = vector.extract_strided_slice %175 {offsets = [0, 32], sizes = [16, 32], strides = [1, 1]} : vector<16x96xf32> to vector<16x32xf32>
    %178 = vector.extract_strided_slice %175 {offsets = [0, 64], sizes = [16, 32], strides = [1, 1]} : vector<16x96xf32> to vector<16x32xf32>
    %179 = vector.extract_strided_slice %176 {offsets = [0, 0], sizes = [16, 8], strides = [1, 1]} : vector<16x32xf32> to vector<16x8xf32>
    %180 = vector.extract_strided_slice %177 {offsets = [0, 0], sizes = [16, 8], strides = [1, 1]} : vector<16x32xf32> to vector<16x8xf32>
    %181 = vector.extract_strided_slice %178 {offsets = [0, 0], sizes = [16, 8], strides = [1, 1]} : vector<16x32xf32> to vector<16x8xf32>
    %cst_91 = arith.constant dense<0.000000e+00> : vector<16x16xf32>
    %182 = tpu.matmul %179, %180, %cst_91 {dimension_numbers = #tpu.dot_dimension_numbers<[1], [1], [0], [0], [0, 0, 1, 0], [], []>} : vector<16x8xf32>, vector<16x8xf32>, vector<16x16xf32> -> vector<16x16xf32>
    %cst_92 = arith.constant 0.353553385 : f32
    %183 = vector.broadcast %cst_92 : f32 to vector<16x16xf32>
    %184 = arith.mulf %182, %183 : vector<16x16xf32>
    %185 = arith.addf %184, %0 : vector<16x16xf32>
    %cst_93 = arith.constant dense<0xFF800000> : vector<16xf32>
    %186 = vector.multi_reduction <maximumf>, %185, %cst_93 [1] : vector<16x16xf32> to vector<16xf32>
    %187 = vector.shape_cast %186 : vector<16xf32> to vector<16x1xf32>
    %188 = vector.broadcast %187 : vector<16x1xf32> to vector<16x16xf32>
    %189 = arith.subf %185, %188 : vector<16x16xf32>
    %190 = math.exp %189 : vector<16x16xf32>
    %cst_94 = arith.constant dense<0.000000e+00> : vector<16xf32>
    %191 = vector.multi_reduction <add>, %190, %cst_94 [1] : vector<16x16xf32> to vector<16xf32>
    %192 = vector.shape_cast %191 : vector<16xf32> to vector<16x1xf32>
    %193 = tpu.reciprocal %192 {approx = true} : vector<16x1xf32> -> vector<16x1xf32>
    %194 = vector.broadcast %193 : vector<16x1xf32> to vector<16x16xf32>
    %195 = arith.mulf %190, %194 : vector<16x16xf32>
    %cst_95 = arith.constant dense<0.000000e+00> : vector<16x8xf32>
    %196 = tpu.matmul %195, %181, %cst_95 {dimension_numbers = #tpu.dot_dimension_numbers<[1], [0], [0], [1], [0, 0, 1, 1], [], []>} : vector<16x16xf32>, vector<16x8xf32>, vector<16x8xf32> -> vector<16x8xf32>
    %197 = vector.extract_strided_slice %176 {offsets = [0, 8], sizes = [16, 8], strides = [1, 1]} : vector<16x32xf32> to vector<16x8xf32>
    %198 = vector.extract_strided_slice %177 {offsets = [0, 8], sizes = [16, 8], strides = [1, 1]} : vector<16x32xf32> to vector<16x8xf32>
    %199 = vector.extract_strided_slice %178 {offsets = [0, 8], sizes = [16, 8], strides = [1, 1]} : vector<16x32xf32> to vector<16x8xf32>
    %cst_96 = arith.constant dense<0.000000e+00> : vector<16x16xf32>
    %200 = tpu.matmul %197, %198, %cst_96 {dimension_numbers = #tpu.dot_dimension_numbers<[1], [1], [0], [0], [0, 0, 1, 0], [], []>} : vector<16x8xf32>, vector<16x8xf32>, vector<16x16xf32> -> vector<16x16xf32>
    %cst_97 = arith.constant 0.353553385 : f32
    %201 = vector.broadcast %cst_97 : f32 to vector<16x16xf32>
    %202 = arith.mulf %200, %201 : vector<16x16xf32>
    %203 = arith.addf %202, %0 : vector<16x16xf32>
    %cst_98 = arith.constant dense<0xFF800000> : vector<16xf32>
    %204 = vector.multi_reduction <maximumf>, %203, %cst_98 [1] : vector<16x16xf32> to vector<16xf32>
    %205 = vector.shape_cast %204 : vector<16xf32> to vector<16x1xf32>
    %206 = vector.broadcast %205 : vector<16x1xf32> to vector<16x16xf32>
    %207 = arith.subf %203, %206 : vector<16x16xf32>
    %208 = math.exp %207 : vector<16x16xf32>
    %cst_99 = arith.constant dense<0.000000e+00> : vector<16xf32>
    %209 = vector.multi_reduction <add>, %208, %cst_99 [1] : vector<16x16xf32> to vector<16xf32>
    %210 = vector.shape_cast %209 : vector<16xf32> to vector<16x1xf32>
    %211 = tpu.reciprocal %210 {approx = true} : vector<16x1xf32> -> vector<16x1xf32>
    %212 = vector.broadcast %211 : vector<16x1xf32> to vector<16x16xf32>
    %213 = arith.mulf %208, %212 : vector<16x16xf32>
    %cst_100 = arith.constant dense<0.000000e+00> : vector<16x8xf32>
    %214 = tpu.matmul %213, %199, %cst_100 {dimension_numbers = #tpu.dot_dimension_numbers<[1], [0], [0], [1], [0, 0, 1, 1], [], []>} : vector<16x16xf32>, vector<16x8xf32>, vector<16x8xf32> -> vector<16x8xf32>
    %215 = vector.extract_strided_slice %176 {offsets = [0, 16], sizes = [16, 8], strides = [1, 1]} : vector<16x32xf32> to vector<16x8xf32>
    %216 = vector.extract_strided_slice %177 {offsets = [0, 16], sizes = [16, 8], strides = [1, 1]} : vector<16x32xf32> to vector<16x8xf32>
    %217 = vector.extract_strided_slice %178 {offsets = [0, 16], sizes = [16, 8], strides = [1, 1]} : vector<16x32xf32> to vector<16x8xf32>
    %cst_101 = arith.constant dense<0.000000e+00> : vector<16x16xf32>
    %218 = tpu.matmul %215, %216, %cst_101 {dimension_numbers = #tpu.dot_dimension_numbers<[1], [1], [0], [0], [0, 0, 1, 0], [], []>} : vector<16x8xf32>, vector<16x8xf32>, vector<16x16xf32> -> vector<16x16xf32>
    %cst_102 = arith.constant 0.353553385 : f32
    %219 = vector.broadcast %cst_102 : f32 to vector<16x16xf32>
    %220 = arith.mulf %218, %219 : vector<16x16xf32>
    %221 = arith.addf %220, %0 : vector<16x16xf32>
    %cst_103 = arith.constant dense<0xFF800000> : vector<16xf32>
    %222 = vector.multi_reduction <maximumf>, %221, %cst_103 [1] : vector<16x16xf32> to vector<16xf32>
    %223 = vector.shape_cast %222 : vector<16xf32> to vector<16x1xf32>
    %224 = vector.broadcast %223 : vector<16x1xf32> to vector<16x16xf32>
    %225 = arith.subf %221, %224 : vector<16x16xf32>
    %226 = math.exp %225 : vector<16x16xf32>
    %cst_104 = arith.constant dense<0.000000e+00> : vector<16xf32>
    %227 = vector.multi_reduction <add>, %226, %cst_104 [1] : vector<16x16xf32> to vector<16xf32>
    %228 = vector.shape_cast %227 : vector<16xf32> to vector<16x1xf32>
    %229 = tpu.reciprocal %228 {approx = true} : vector<16x1xf32> -> vector<16x1xf32>
    %230 = vector.broadcast %229 : vector<16x1xf32> to vector<16x16xf32>
    %231 = arith.mulf %226, %230 : vector<16x16xf32>
    %cst_105 = arith.constant dense<0.000000e+00> : vector<16x8xf32>
    %232 = tpu.matmul %231, %217, %cst_105 {dimension_numbers = #tpu.dot_dimension_numbers<[1], [0], [0], [1], [0, 0, 1, 1], [], []>} : vector<16x16xf32>, vector<16x8xf32>, vector<16x8xf32> -> vector<16x8xf32>
    %233 = vector.extract_strided_slice %176 {offsets = [0, 24], sizes = [16, 8], strides = [1, 1]} : vector<16x32xf32> to vector<16x8xf32>
    %234 = vector.extract_strided_slice %177 {offsets = [0, 24], sizes = [16, 8], strides = [1, 1]} : vector<16x32xf32> to vector<16x8xf32>
    %235 = vector.extract_strided_slice %178 {offsets = [0, 24], sizes = [16, 8], strides = [1, 1]} : vector<16x32xf32> to vector<16x8xf32>
    %cst_106 = arith.constant dense<0.000000e+00> : vector<16x16xf32>
    %236 = tpu.matmul %233, %234, %cst_106 {dimension_numbers = #tpu.dot_dimension_numbers<[1], [1], [0], [0], [0, 0, 1, 0], [], []>} : vector<16x8xf32>, vector<16x8xf32>, vector<16x16xf32> -> vector<16x16xf32>
    %cst_107 = arith.constant 0.353553385 : f32
    %237 = vector.broadcast %cst_107 : f32 to vector<16x16xf32>
    %238 = arith.mulf %236, %237 : vector<16x16xf32>
    %239 = arith.addf %238, %0 : vector<16x16xf32>
    %cst_108 = arith.constant dense<0xFF800000> : vector<16xf32>
    %240 = vector.multi_reduction <maximumf>, %239, %cst_108 [1] : vector<16x16xf32> to vector<16xf32>
    %241 = vector.shape_cast %240 : vector<16xf32> to vector<16x1xf32>
    %242 = vector.broadcast %241 : vector<16x1xf32> to vector<16x16xf32>
    %243 = arith.subf %239, %242 : vector<16x16xf32>
    %244 = math.exp %243 : vector<16x16xf32>
    %cst_109 = arith.constant dense<0.000000e+00> : vector<16xf32>
    %245 = vector.multi_reduction <add>, %244, %cst_109 [1] : vector<16x16xf32> to vector<16xf32>
    %246 = vector.shape_cast %245 : vector<16xf32> to vector<16x1xf32>
    %247 = tpu.reciprocal %246 {approx = true} : vector<16x1xf32> -> vector<16x1xf32>
    %248 = vector.broadcast %247 : vector<16x1xf32> to vector<16x16xf32>
    %249 = arith.mulf %244, %248 : vector<16x16xf32>
    %cst_110 = arith.constant dense<0.000000e+00> : vector<16x8xf32>
    %250 = tpu.matmul %249, %235, %cst_110 {dimension_numbers = #tpu.dot_dimension_numbers<[1], [0], [0], [1], [0, 0, 1, 1], [], []>} : vector<16x16xf32>, vector<16x8xf32>, vector<16x8xf32> -> vector<16x8xf32>
    %251 = tpu.concatenate %196, %214, %232, %250 in 1 : vector<16x8xf32>, vector<16x8xf32>, vector<16x8xf32>, vector<16x8xf32> -> vector<16x32xf32>
    %c1_111 = arith.constant 1 : index
    %c0_112 = arith.constant 0 : index
    %c0_113 = arith.constant 0 : index
    %252 = vector.load %arg11[%c1_111, %c0_112, %c0_113] : memref<2x32x32xf32, #tpu.memory_space<vmem>>, vector<1x32x32xf32>
    %253 = vector.shape_cast %252 : vector<1x32x32xf32> to vector<32x32xf32>
    %cst_114 = arith.constant dense<0.000000e+00> : vector<16x32xf32>
    %254 = tpu.matmul %251, %253, %cst_114 {dimension_numbers = #tpu.dot_dimension_numbers<[1], [0], [0], [1], [0, 0, 1, 1], [], []>} : vector<16x32xf32>, vector<32x32xf32>, vector<16x32xf32> -> vector<16x32xf32>
    %c1_115 = arith.constant 1 : index
    %c0_116 = arith.constant 0 : index
    %c0_117 = arith.constant 0 : index
    %255 = vector.load %arg12[%c1_115, %c0_116, %c0_117] : memref<2x1x32xf32, #tpu.memory_space<vmem>>, vector<1x1x32xf32>
    %256 = vector.shape_cast %255 : vector<1x1x32xf32> to vector<1x32xf32>
    %257 = vector.broadcast %256 : vector<1x32xf32> to vector<16x32xf32>
    %258 = arith.addf %254, %257 : vector<16x32xf32>
    %259 = arith.addf %168, %258 : vector<16x32xf32>
    %c1_118 = arith.constant 1 : index
    %c0_119 = arith.constant 0 : index
    %c0_120 = arith.constant 0 : index
    %260 = vector.load %arg13[%c1_118, %c0_119, %c0_120] : memref<2x1x32xf32, #tpu.memory_space<vmem>>, vector<1x1x32xf32>
    %261 = vector.shape_cast %260 : vector<1x1x32xf32> to vector<1x32xf32>
    %c1_121 = arith.constant 1 : index
    %c0_122 = arith.constant 0 : index
    %c0_123 = arith.constant 0 : index
    %262 = vector.load %arg14[%c1_121, %c0_122, %c0_123] : memref<2x1x32xf32, #tpu.memory_space<vmem>>, vector<1x1x32xf32>
    %263 = vector.shape_cast %262 : vector<1x1x32xf32> to vector<1x32xf32>
    %cst_124 = arith.constant dense<0.000000e+00> : vector<16xf32>
    %264 = vector.multi_reduction <add>, %259, %cst_124 [1] : vector<16x32xf32> to vector<16xf32>
    %265 = vector.shape_cast %264 : vector<16xf32> to vector<16x1xf32>
    %cst_125 = arith.constant 3.200000e+01 : f32
    %266 = vector.broadcast %cst_125 : f32 to vector<16x1xf32>
    %267 = arith.divf %265, %266 : vector<16x1xf32>
    %268 = vector.broadcast %267 : vector<16x1xf32> to vector<16x32xf32>
    %269 = arith.subf %259, %268 : vector<16x32xf32>
    %270 = arith.mulf %269, %269 : vector<16x32xf32>
    %cst_126 = arith.constant dense<0.000000e+00> : vector<16xf32>
    %271 = vector.multi_reduction <add>, %270, %cst_126 [1] : vector<16x32xf32> to vector<16xf32>
    %272 = vector.shape_cast %271 : vector<16xf32> to vector<16x1xf32>
    %cst_127 = arith.constant 3.200000e+01 : f32
    %273 = vector.broadcast %cst_127 : f32 to vector<16x1xf32>
    %274 = arith.divf %272, %273 : vector<16x1xf32>
    %cst_128 = arith.constant 9.99999974E-6 : f32
    %275 = vector.broadcast %cst_128 : f32 to vector<16x1xf32>
    %276 = arith.addf %274, %275 : vector<16x1xf32>
    %277 = math.rsqrt %276 : vector<16x1xf32>
    %278 = vector.broadcast %277 : vector<16x1xf32> to vector<16x32xf32>
    %279 = arith.mulf %269, %278 : vector<16x32xf32>
    %280 = vector.broadcast %261 : vector<1x32xf32> to vector<16x32xf32>
    %281 = arith.mulf %279, %280 : vector<16x32xf32>
    %282 = vector.broadcast %263 : vector<1x32xf32> to vector<16x32xf32>
    %283 = arith.addf %281, %282 : vector<16x32xf32>
    %c1_129 = arith.constant 1 : index
    %c0_130 = arith.constant 0 : index
    %c0_131 = arith.constant 0 : index
    %284 = vector.load %arg15[%c1_129, %c0_130, %c0_131] : memref<2x32x128xf32, #tpu.memory_space<vmem>>, vector<1x32x128xf32>
    %285 = vector.shape_cast %284 : vector<1x32x128xf32> to vector<32x128xf32>
    %cst_132 = arith.constant dense<0.000000e+00> : vector<16x128xf32>
    %286 = tpu.matmul %283, %285, %cst_132 {dimension_numbers = #tpu.dot_dimension_numbers<[1], [0], [0], [1], [0, 0, 1, 1], [], []>} : vector<16x32xf32>, vector<32x128xf32>, vector<16x128xf32> -> vector<16x128xf32>
    %c1_133 = arith.constant 1 : index
    %c0_134 = arith.constant 0 : index
    %c0_135 = arith.constant 0 : index
    %287 = vector.load %arg16[%c1_133, %c0_134, %c0_135] : memref<2x1x128xf32, #tpu.memory_space<vmem>>, vector<1x1x128xf32>
    %288 = vector.shape_cast %287 : vector<1x1x128xf32> to vector<1x128xf32>
    %289 = vector.broadcast %288 : vector<1x128xf32> to vector<16x128xf32>
    %290 = arith.addf %286, %289 : vector<16x128xf32>
    %cst_136 = arith.constant 0.000000e+00 : f32
    %291 = vector.broadcast %cst_136 : f32 to vector<16x128xf32>
    %292 = arith.maximumf %290, %291 : vector<16x128xf32>
    %c1_137 = arith.constant 1 : index
    %c0_138 = arith.constant 0 : index
    %c0_139 = arith.constant 0 : index
    %293 = vector.load %arg17[%c1_137, %c0_138, %c0_139] : memref<2x128x32xf32, #tpu.memory_space<vmem>>, vector<1x128x32xf32>
    %294 = vector.shape_cast %293 : vector<1x128x32xf32> to vector<128x32xf32>
    %cst_140 = arith.constant dense<0.000000e+00> : vector<16x32xf32>
    %295 = tpu.matmul %292, %294, %cst_140 {dimension_numbers = #tpu.dot_dimension_numbers<[1], [0], [0], [1], [0, 0, 1, 1], [], []>} : vector<16x128xf32>, vector<128x32xf32>, vector<16x32xf32> -> vector<16x32xf32>
    %c1_141 = arith.constant 1 : index
    %c0_142 = arith.constant 0 : index
    %c0_143 = arith.constant 0 : index
    %296 = vector.load %arg18[%c1_141, %c0_142, %c0_143] : memref<2x1x32xf32, #tpu.memory_space<vmem>>, vector<1x1x32xf32>
    %297 = vector.shape_cast %296 : vector<1x1x32xf32> to vector<1x32xf32>
    %298 = vector.broadcast %297 : vector<1x32xf32> to vector<16x32xf32>
    %299 = arith.addf %295, %298 : vector<16x32xf32>
    %300 = arith.addf %283, %299 : vector<16x32xf32>
    %c1_144 = arith.constant 1 : index
    %c0_145 = arith.constant 0 : index
    %c0_146 = arith.constant 0 : index
    %301 = vector.load %arg19[%c1_144, %c0_145, %c0_146] : memref<2x1x32xf32, #tpu.memory_space<vmem>>, vector<1x1x32xf32>
    %302 = vector.shape_cast %301 : vector<1x1x32xf32> to vector<1x32xf32>
    %c1_147 = arith.constant 1 : index
    %c0_148 = arith.constant 0 : index
    %c0_149 = arith.constant 0 : index
    %303 = vector.load %arg20[%c1_147, %c0_148, %c0_149] : memref<2x1x32xf32, #tpu.memory_space<vmem>>, vector<1x1x32xf32>
    %304 = vector.shape_cast %303 : vector<1x1x32xf32> to vector<1x32xf32>
    %cst_150 = arith.constant dense<0.000000e+00> : vector<16xf32>
    %305 = vector.multi_reduction <add>, %300, %cst_150 [1] : vector<16x32xf32> to vector<16xf32>
    %306 = vector.shape_cast %305 : vector<16xf32> to vector<16x1xf32>
    %cst_151 = arith.constant 3.200000e+01 : f32
    %307 = vector.broadcast %cst_151 : f32 to vector<16x1xf32>
    %308 = arith.divf %306, %307 : vector<16x1xf32>
    %309 = vector.broadcast %308 : vector<16x1xf32> to vector<16x32xf32>
    %310 = arith.subf %300, %309 : vector<16x32xf32>
    %311 = arith.mulf %310, %310 : vector<16x32xf32>
    %cst_152 = arith.constant dense<0.000000e+00> : vector<16xf32>
    %312 = vector.multi_reduction <add>, %311, %cst_152 [1] : vector<16x32xf32> to vector<16xf32>
    %313 = vector.shape_cast %312 : vector<16xf32> to vector<16x1xf32>
    %cst_153 = arith.constant 3.200000e+01 : f32
    %314 = vector.broadcast %cst_153 : f32 to vector<16x1xf32>
    %315 = arith.divf %313, %314 : vector<16x1xf32>
    %cst_154 = arith.constant 9.99999974E-6 : f32
    %316 = vector.broadcast %cst_154 : f32 to vector<16x1xf32>
    %317 = arith.addf %315, %316 : vector<16x1xf32>
    %318 = math.rsqrt %317 : vector<16x1xf32>
    %319 = vector.broadcast %318 : vector<16x1xf32> to vector<16x32xf32>
    %320 = arith.mulf %310, %319 : vector<16x32xf32>
    %321 = vector.broadcast %302 : vector<1x32xf32> to vector<16x32xf32>
    %322 = arith.mulf %320, %321 : vector<16x32xf32>
    %323 = vector.broadcast %304 : vector<1x32xf32> to vector<16x32xf32>
    %324 = arith.addf %322, %323 : vector<16x32xf32>
    %c0_155 = arith.constant 0 : index
    %c0_156 = arith.constant 0 : index
    %325 = vector.load %arg1[%c0_155, %c0_156] : memref<16x16xf32, #tpu.memory_space<vmem>>, vector<16x16xf32>
    %c0_157 = arith.constant 0 : index
    %c0_158 = arith.constant 0 : index
    %326 = vector.load %arg21[%c0_157, %c0_158] : memref<16x32xf32, #tpu.memory_space<vmem>>, vector<16x32xf32>
    %cst_159 = arith.constant dense<0.000000e+00> : vector<16x32xf32>
    %327 = tpu.matmul %325, %326, %cst_159 {dimension_numbers = #tpu.dot_dimension_numbers<[1], [0], [0], [1], [0, 0, 1, 1], [], []>} : vector<16x16xf32>, vector<16x32xf32>, vector<16x32xf32> -> vector<16x32xf32>
    %c0_160 = arith.constant 0 : index
    %c0_161 = arith.constant 0 : index
    %328 = vector.load %arg22[%c0_160, %c0_161] : memref<1x32xf32, #tpu.memory_space<vmem>>, vector<1x32xf32>
    %329 = vector.broadcast %328 : vector<1x32xf32> to vector<16x32xf32>
    %330 = arith.addf %327, %329 : vector<16x32xf32>
    %cst_162 = arith.constant 5.65685415 : f32
    %331 = vector.broadcast %cst_162 : f32 to vector<16x32xf32>
    %332 = arith.mulf %330, %331 : vector<16x32xf32>
    %c0_163 = arith.constant 0 : index
    %c0_164 = arith.constant 0 : index
    %333 = vector.load %arg3[%c0_163, %c0_164] : memref<16x32xf32, #tpu.memory_space<vmem>>, vector<16x32xf32>
    %334 = arith.addf %332, %333 : vector<16x32xf32>
    %c0_165 = arith.constant 0 : index
    %c0_166 = arith.constant 0 : index
    %c0_167 = arith.constant 0 : index
    %335 = vector.load %arg23[%c0_165, %c0_166, %c0_167] : memref<2x32x96xf32, #tpu.memory_space<vmem>>, vector<1x32x96xf32>
    %336 = vector.shape_cast %335 : vector<1x32x96xf32> to vector<32x96xf32>
    %cst_168 = arith.constant dense<0.000000e+00> : vector<16x96xf32>
    %337 = tpu.matmul %334, %336, %cst_168 {dimension_numbers = #tpu.dot_dimension_numbers<[1], [0], [0], [1], [0, 0, 1, 1], [], []>} : vector<16x32xf32>, vector<32x96xf32>, vector<16x96xf32> -> vector<16x96xf32>
    %c0_169 = arith.constant 0 : index
    %c0_170 = arith.constant 0 : index
    %c0_171 = arith.constant 0 : index
    %338 = vector.load %arg24[%c0_169, %c0_170, %c0_171] : memref<2x1x96xf32, #tpu.memory_space<vmem>>, vector<1x1x96xf32>
    %339 = vector.shape_cast %338 : vector<1x1x96xf32> to vector<1x96xf32>
    %340 = vector.broadcast %339 : vector<1x96xf32> to vector<16x96xf32>
    %341 = arith.addf %337, %340 : vector<16x96xf32>
    %342 = vector.extract_strided_slice %341 {offsets = [0, 0], sizes = [16, 32], strides = [1, 1]} : vector<16x96xf32> to vector<16x32xf32>
    %343 = vector.extract_strided_slice %341 {offsets = [0, 32], sizes = [16, 32], strides = [1, 1]} : vector<16x96xf32> to vector<16x32xf32>
    %344 = vector.extract_strided_slice %341 {offsets = [0, 64], sizes = [16, 32], strides = [1, 1]} : vector<16x96xf32> to vector<16x32xf32>
    %345 = vector.extract_strided_slice %342 {offsets = [0, 0], sizes = [16, 8], strides = [1, 1]} : vector<16x32xf32> to vector<16x8xf32>
    %346 = vector.extract_strided_slice %343 {offsets = [0, 0], sizes = [16, 8], strides = [1, 1]} : vector<16x32xf32> to vector<16x8xf32>
    %347 = vector.extract_strided_slice %344 {offsets = [0, 0], sizes = [16, 8], strides = [1, 1]} : vector<16x32xf32> to vector<16x8xf32>
    %cst_172 = arith.constant dense<0.000000e+00> : vector<16x16xf32>
    %348 = tpu.matmul %345, %346, %cst_172 {dimension_numbers = #tpu.dot_dimension_numbers<[1], [1], [0], [0], [0, 0, 1, 0], [], []>} : vector<16x8xf32>, vector<16x8xf32>, vector<16x16xf32> -> vector<16x16xf32>
    %cst_173 = arith.constant 0.353553385 : f32
    %349 = vector.broadcast %cst_173 : f32 to vector<16x16xf32>
    %350 = arith.mulf %348, %349 : vector<16x16xf32>
    %351 = arith.addf %350, %1 : vector<16x16xf32>
    %cst_174 = arith.constant dense<0xFF800000> : vector<16xf32>
    %352 = vector.multi_reduction <maximumf>, %351, %cst_174 [1] : vector<16x16xf32> to vector<16xf32>
    %353 = vector.shape_cast %352 : vector<16xf32> to vector<16x1xf32>
    %354 = vector.broadcast %353 : vector<16x1xf32> to vector<16x16xf32>
    %355 = arith.subf %351, %354 : vector<16x16xf32>
    %356 = math.exp %355 : vector<16x16xf32>
    %cst_175 = arith.constant dense<0.000000e+00> : vector<16xf32>
    %357 = vector.multi_reduction <add>, %356, %cst_175 [1] : vector<16x16xf32> to vector<16xf32>
    %358 = vector.shape_cast %357 : vector<16xf32> to vector<16x1xf32>
    %359 = tpu.reciprocal %358 {approx = true} : vector<16x1xf32> -> vector<16x1xf32>
    %360 = vector.broadcast %359 : vector<16x1xf32> to vector<16x16xf32>
    %361 = arith.mulf %356, %360 : vector<16x16xf32>
    %cst_176 = arith.constant dense<0.000000e+00> : vector<16x8xf32>
    %362 = tpu.matmul %361, %347, %cst_176 {dimension_numbers = #tpu.dot_dimension_numbers<[1], [0], [0], [1], [0, 0, 1, 1], [], []>} : vector<16x16xf32>, vector<16x8xf32>, vector<16x8xf32> -> vector<16x8xf32>
    %363 = vector.extract_strided_slice %342 {offsets = [0, 8], sizes = [16, 8], strides = [1, 1]} : vector<16x32xf32> to vector<16x8xf32>
    %364 = vector.extract_strided_slice %343 {offsets = [0, 8], sizes = [16, 8], strides = [1, 1]} : vector<16x32xf32> to vector<16x8xf32>
    %365 = vector.extract_strided_slice %344 {offsets = [0, 8], sizes = [16, 8], strides = [1, 1]} : vector<16x32xf32> to vector<16x8xf32>
    %cst_177 = arith.constant dense<0.000000e+00> : vector<16x16xf32>
    %366 = tpu.matmul %363, %364, %cst_177 {dimension_numbers = #tpu.dot_dimension_numbers<[1], [1], [0], [0], [0, 0, 1, 0], [], []>} : vector<16x8xf32>, vector<16x8xf32>, vector<16x16xf32> -> vector<16x16xf32>
    %cst_178 = arith.constant 0.353553385 : f32
    %367 = vector.broadcast %cst_178 : f32 to vector<16x16xf32>
    %368 = arith.mulf %366, %367 : vector<16x16xf32>
    %369 = arith.addf %368, %1 : vector<16x16xf32>
    %cst_179 = arith.constant dense<0xFF800000> : vector<16xf32>
    %370 = vector.multi_reduction <maximumf>, %369, %cst_179 [1] : vector<16x16xf32> to vector<16xf32>
    %371 = vector.shape_cast %370 : vector<16xf32> to vector<16x1xf32>
    %372 = vector.broadcast %371 : vector<16x1xf32> to vector<16x16xf32>
    %373 = arith.subf %369, %372 : vector<16x16xf32>
    %374 = math.exp %373 : vector<16x16xf32>
    %cst_180 = arith.constant dense<0.000000e+00> : vector<16xf32>
    %375 = vector.multi_reduction <add>, %374, %cst_180 [1] : vector<16x16xf32> to vector<16xf32>
    %376 = vector.shape_cast %375 : vector<16xf32> to vector<16x1xf32>
    %377 = tpu.reciprocal %376 {approx = true} : vector<16x1xf32> -> vector<16x1xf32>
    %378 = vector.broadcast %377 : vector<16x1xf32> to vector<16x16xf32>
    %379 = arith.mulf %374, %378 : vector<16x16xf32>
    %cst_181 = arith.constant dense<0.000000e+00> : vector<16x8xf32>
    %380 = tpu.matmul %379, %365, %cst_181 {dimension_numbers = #tpu.dot_dimension_numbers<[1], [0], [0], [1], [0, 0, 1, 1], [], []>} : vector<16x16xf32>, vector<16x8xf32>, vector<16x8xf32> -> vector<16x8xf32>
    %381 = vector.extract_strided_slice %342 {offsets = [0, 16], sizes = [16, 8], strides = [1, 1]} : vector<16x32xf32> to vector<16x8xf32>
    %382 = vector.extract_strided_slice %343 {offsets = [0, 16], sizes = [16, 8], strides = [1, 1]} : vector<16x32xf32> to vector<16x8xf32>
    %383 = vector.extract_strided_slice %344 {offsets = [0, 16], sizes = [16, 8], strides = [1, 1]} : vector<16x32xf32> to vector<16x8xf32>
    %cst_182 = arith.constant dense<0.000000e+00> : vector<16x16xf32>
    %384 = tpu.matmul %381, %382, %cst_182 {dimension_numbers = #tpu.dot_dimension_numbers<[1], [1], [0], [0], [0, 0, 1, 0], [], []>} : vector<16x8xf32>, vector<16x8xf32>, vector<16x16xf32> -> vector<16x16xf32>
    %cst_183 = arith.constant 0.353553385 : f32
    %385 = vector.broadcast %cst_183 : f32 to vector<16x16xf32>
    %386 = arith.mulf %384, %385 : vector<16x16xf32>
    %387 = arith.addf %386, %1 : vector<16x16xf32>
    %cst_184 = arith.constant dense<0xFF800000> : vector<16xf32>
    %388 = vector.multi_reduction <maximumf>, %387, %cst_184 [1] : vector<16x16xf32> to vector<16xf32>
    %389 = vector.shape_cast %388 : vector<16xf32> to vector<16x1xf32>
    %390 = vector.broadcast %389 : vector<16x1xf32> to vector<16x16xf32>
    %391 = arith.subf %387, %390 : vector<16x16xf32>
    %392 = math.exp %391 : vector<16x16xf32>
    %cst_185 = arith.constant dense<0.000000e+00> : vector<16xf32>
    %393 = vector.multi_reduction <add>, %392, %cst_185 [1] : vector<16x16xf32> to vector<16xf32>
    %394 = vector.shape_cast %393 : vector<16xf32> to vector<16x1xf32>
    %395 = tpu.reciprocal %394 {approx = true} : vector<16x1xf32> -> vector<16x1xf32>
    %396 = vector.broadcast %395 : vector<16x1xf32> to vector<16x16xf32>
    %397 = arith.mulf %392, %396 : vector<16x16xf32>
    %cst_186 = arith.constant dense<0.000000e+00> : vector<16x8xf32>
    %398 = tpu.matmul %397, %383, %cst_186 {dimension_numbers = #tpu.dot_dimension_numbers<[1], [0], [0], [1], [0, 0, 1, 1], [], []>} : vector<16x16xf32>, vector<16x8xf32>, vector<16x8xf32> -> vector<16x8xf32>
    %399 = vector.extract_strided_slice %342 {offsets = [0, 24], sizes = [16, 8], strides = [1, 1]} : vector<16x32xf32> to vector<16x8xf32>
    %400 = vector.extract_strided_slice %343 {offsets = [0, 24], sizes = [16, 8], strides = [1, 1]} : vector<16x32xf32> to vector<16x8xf32>
    %401 = vector.extract_strided_slice %344 {offsets = [0, 24], sizes = [16, 8], strides = [1, 1]} : vector<16x32xf32> to vector<16x8xf32>
    %cst_187 = arith.constant dense<0.000000e+00> : vector<16x16xf32>
    %402 = tpu.matmul %399, %400, %cst_187 {dimension_numbers = #tpu.dot_dimension_numbers<[1], [1], [0], [0], [0, 0, 1, 0], [], []>} : vector<16x8xf32>, vector<16x8xf32>, vector<16x16xf32> -> vector<16x16xf32>
    %cst_188 = arith.constant 0.353553385 : f32
    %403 = vector.broadcast %cst_188 : f32 to vector<16x16xf32>
    %404 = arith.mulf %402, %403 : vector<16x16xf32>
    %405 = arith.addf %404, %1 : vector<16x16xf32>
    %cst_189 = arith.constant dense<0xFF800000> : vector<16xf32>
    %406 = vector.multi_reduction <maximumf>, %405, %cst_189 [1] : vector<16x16xf32> to vector<16xf32>
    %407 = vector.shape_cast %406 : vector<16xf32> to vector<16x1xf32>
    %408 = vector.broadcast %407 : vector<16x1xf32> to vector<16x16xf32>
    %409 = arith.subf %405, %408 : vector<16x16xf32>
    %410 = math.exp %409 : vector<16x16xf32>
    %cst_190 = arith.constant dense<0.000000e+00> : vector<16xf32>
    %411 = vector.multi_reduction <add>, %410, %cst_190 [1] : vector<16x16xf32> to vector<16xf32>
    %412 = vector.shape_cast %411 : vector<16xf32> to vector<16x1xf32>
    %413 = tpu.reciprocal %412 {approx = true} : vector<16x1xf32> -> vector<16x1xf32>
    %414 = vector.broadcast %413 : vector<16x1xf32> to vector<16x16xf32>
    %415 = arith.mulf %410, %414 : vector<16x16xf32>
    %cst_191 = arith.constant dense<0.000000e+00> : vector<16x8xf32>
    %416 = tpu.matmul %415, %401, %cst_191 {dimension_numbers = #tpu.dot_dimension_numbers<[1], [0], [0], [1], [0, 0, 1, 1], [], []>} : vector<16x16xf32>, vector<16x8xf32>, vector<16x8xf32> -> vector<16x8xf32>
    %417 = tpu.concatenate %362, %380, %398, %416 in 1 : vector<16x8xf32>, vector<16x8xf32>, vector<16x8xf32>, vector<16x8xf32> -> vector<16x32xf32>
    %c0_192 = arith.constant 0 : index
    %c0_193 = arith.constant 0 : index
    %c0_194 = arith.constant 0 : index
    %418 = vector.load %arg25[%c0_192, %c0_193, %c0_194] : memref<2x32x32xf32, #tpu.memory_space<vmem>>, vector<1x32x32xf32>
    %419 = vector.shape_cast %418 : vector<1x32x32xf32> to vector<32x32xf32>
    %cst_195 = arith.constant dense<0.000000e+00> : vector<16x32xf32>
    %420 = tpu.matmul %417, %419, %cst_195 {dimension_numbers = #tpu.dot_dimension_numbers<[1], [0], [0], [1], [0, 0, 1, 1], [], []>} : vector<16x32xf32>, vector<32x32xf32>, vector<16x32xf32> -> vector<16x32xf32>
    %c0_196 = arith.constant 0 : index
    %c0_197 = arith.constant 0 : index
    %c0_198 = arith.constant 0 : index
    %421 = vector.load %arg26[%c0_196, %c0_197, %c0_198] : memref<2x1x32xf32, #tpu.memory_space<vmem>>, vector<1x1x32xf32>
    %422 = vector.shape_cast %421 : vector<1x1x32xf32> to vector<1x32xf32>
    %423 = vector.broadcast %422 : vector<1x32xf32> to vector<16x32xf32>
    %424 = arith.addf %420, %423 : vector<16x32xf32>
    %425 = arith.addf %334, %424 : vector<16x32xf32>
    %c0_199 = arith.constant 0 : index
    %c0_200 = arith.constant 0 : index
    %c0_201 = arith.constant 0 : index
    %426 = vector.load %arg27[%c0_199, %c0_200, %c0_201] : memref<2x1x32xf32, #tpu.memory_space<vmem>>, vector<1x1x32xf32>
    %427 = vector.shape_cast %426 : vector<1x1x32xf32> to vector<1x32xf32>
    %c0_202 = arith.constant 0 : index
    %c0_203 = arith.constant 0 : index
    %c0_204 = arith.constant 0 : index
    %428 = vector.load %arg28[%c0_202, %c0_203, %c0_204] : memref<2x1x32xf32, #tpu.memory_space<vmem>>, vector<1x1x32xf32>
    %429 = vector.shape_cast %428 : vector<1x1x32xf32> to vector<1x32xf32>
    %cst_205 = arith.constant dense<0.000000e+00> : vector<16xf32>
    %430 = vector.multi_reduction <add>, %425, %cst_205 [1] : vector<16x32xf32> to vector<16xf32>
    %431 = vector.shape_cast %430 : vector<16xf32> to vector<16x1xf32>
    %cst_206 = arith.constant 3.200000e+01 : f32
    %432 = vector.broadcast %cst_206 : f32 to vector<16x1xf32>
    %433 = arith.divf %431, %432 : vector<16x1xf32>
    %434 = vector.broadcast %433 : vector<16x1xf32> to vector<16x32xf32>
    %435 = arith.subf %425, %434 : vector<16x32xf32>
    %436 = arith.mulf %435, %435 : vector<16x32xf32>
    %cst_207 = arith.constant dense<0.000000e+00> : vector<16xf32>
    %437 = vector.multi_reduction <add>, %436, %cst_207 [1] : vector<16x32xf32> to vector<16xf32>
    %438 = vector.shape_cast %437 : vector<16xf32> to vector<16x1xf32>
    %cst_208 = arith.constant 3.200000e+01 : f32
    %439 = vector.broadcast %cst_208 : f32 to vector<16x1xf32>
    %440 = arith.divf %438, %439 : vector<16x1xf32>
    %cst_209 = arith.constant 9.99999974E-6 : f32
    %441 = vector.broadcast %cst_209 : f32 to vector<16x1xf32>
    %442 = arith.addf %440, %441 : vector<16x1xf32>
    %443 = math.rsqrt %442 : vector<16x1xf32>
    %444 = vector.broadcast %443 : vector<16x1xf32> to vector<16x32xf32>
    %445 = arith.mulf %435, %444 : vector<16x32xf32>
    %446 = vector.broadcast %427 : vector<1x32xf32> to vector<16x32xf32>
    %447 = arith.mulf %445, %446 : vector<16x32xf32>
    %448 = vector.broadcast %429 : vector<1x32xf32> to vector<16x32xf32>
    %449 = arith.addf %447, %448 : vector<16x32xf32>
    %c0_210 = arith.constant 0 : index
    %c0_211 = arith.constant 0 : index
    %c0_212 = arith.constant 0 : index
    %450 = vector.load %arg29[%c0_210, %c0_211, %c0_212] : memref<2x32x32xf32, #tpu.memory_space<vmem>>, vector<1x32x32xf32>
    %451 = vector.shape_cast %450 : vector<1x32x32xf32> to vector<32x32xf32>
    %cst_213 = arith.constant dense<0.000000e+00> : vector<16x32xf32>
    %452 = tpu.matmul %449, %451, %cst_213 {dimension_numbers = #tpu.dot_dimension_numbers<[1], [0], [0], [1], [0, 0, 1, 1], [], []>} : vector<16x32xf32>, vector<32x32xf32>, vector<16x32xf32> -> vector<16x32xf32>
    %c0_214 = arith.constant 0 : index
    %c0_215 = arith.constant 0 : index
    %c0_216 = arith.constant 0 : index
    %453 = vector.load %arg30[%c0_214, %c0_215, %c0_216] : memref<2x1x32xf32, #tpu.memory_space<vmem>>, vector<1x1x32xf32>
    %454 = vector.shape_cast %453 : vector<1x1x32xf32> to vector<1x32xf32>
    %455 = vector.broadcast %454 : vector<1x32xf32> to vector<16x32xf32>
    %456 = arith.addf %452, %455 : vector<16x32xf32>
    %c0_217 = arith.constant 0 : index
    %c0_218 = arith.constant 0 : index
    %c0_219 = arith.constant 0 : index
    %457 = vector.load %arg31[%c0_217, %c0_218, %c0_219] : memref<2x32x64xf32, #tpu.memory_space<vmem>>, vector<1x32x64xf32>
    %458 = vector.shape_cast %457 : vector<1x32x64xf32> to vector<32x64xf32>
    %cst_220 = arith.constant dense<0.000000e+00> : vector<16x64xf32>
    %459 = tpu.matmul %324, %458, %cst_220 {dimension_numbers = #tpu.dot_dimension_numbers<[1], [0], [0], [1], [0, 0, 1, 1], [], []>} : vector<16x32xf32>, vector<32x64xf32>, vector<16x64xf32> -> vector<16x64xf32>
    %c0_221 = arith.constant 0 : index
    %c0_222 = arith.constant 0 : index
    %c0_223 = arith.constant 0 : index
    %460 = vector.load %arg32[%c0_221, %c0_222, %c0_223] : memref<2x1x64xf32, #tpu.memory_space<vmem>>, vector<1x1x64xf32>
    %461 = vector.shape_cast %460 : vector<1x1x64xf32> to vector<1x64xf32>
    %462 = vector.broadcast %461 : vector<1x64xf32> to vector<16x64xf32>
    %463 = arith.addf %459, %462 : vector<16x64xf32>
    %464 = vector.extract_strided_slice %463 {offsets = [0, 0], sizes = [16, 32], strides = [1, 1]} : vector<16x64xf32> to vector<16x32xf32>
    %465 = vector.extract_strided_slice %463 {offsets = [0, 32], sizes = [16, 32], strides = [1, 1]} : vector<16x64xf32> to vector<16x32xf32>
    %466 = vector.extract_strided_slice %456 {offsets = [0, 0], sizes = [16, 8], strides = [1, 1]} : vector<16x32xf32> to vector<16x8xf32>
    %467 = vector.extract_strided_slice %464 {offsets = [0, 0], sizes = [16, 8], strides = [1, 1]} : vector<16x32xf32> to vector<16x8xf32>
    %468 = vector.extract_strided_slice %465 {offsets = [0, 0], sizes = [16, 8], strides = [1, 1]} : vector<16x32xf32> to vector<16x8xf32>
    %cst_224 = arith.constant dense<0.000000e+00> : vector<16x16xf32>
    %469 = tpu.matmul %466, %467, %cst_224 {dimension_numbers = #tpu.dot_dimension_numbers<[1], [1], [0], [0], [0, 0, 1, 0], [], []>} : vector<16x8xf32>, vector<16x8xf32>, vector<16x16xf32> -> vector<16x16xf32>
    %cst_225 = arith.constant 0.353553385 : f32
    %470 = vector.broadcast %cst_225 : f32 to vector<16x16xf32>
    %471 = arith.mulf %469, %470 : vector<16x16xf32>
    %472 = arith.addf %471, %2 : vector<16x16xf32>
    %cst_226 = arith.constant dense<0xFF800000> : vector<16xf32>
    %473 = vector.multi_reduction <maximumf>, %472, %cst_226 [1] : vector<16x16xf32> to vector<16xf32>
    %474 = vector.shape_cast %473 : vector<16xf32> to vector<16x1xf32>
    %475 = vector.broadcast %474 : vector<16x1xf32> to vector<16x16xf32>
    %476 = arith.subf %472, %475 : vector<16x16xf32>
    %477 = math.exp %476 : vector<16x16xf32>
    %cst_227 = arith.constant dense<0.000000e+00> : vector<16xf32>
    %478 = vector.multi_reduction <add>, %477, %cst_227 [1] : vector<16x16xf32> to vector<16xf32>
    %479 = vector.shape_cast %478 : vector<16xf32> to vector<16x1xf32>
    %480 = tpu.reciprocal %479 {approx = true} : vector<16x1xf32> -> vector<16x1xf32>
    %481 = vector.broadcast %480 : vector<16x1xf32> to vector<16x16xf32>
    %482 = arith.mulf %477, %481 : vector<16x16xf32>
    %cst_228 = arith.constant dense<0.000000e+00> : vector<16x8xf32>
    %483 = tpu.matmul %482, %468, %cst_228 {dimension_numbers = #tpu.dot_dimension_numbers<[1], [0], [0], [1], [0, 0, 1, 1], [], []>} : vector<16x16xf32>, vector<16x8xf32>, vector<16x8xf32> -> vector<16x8xf32>
    %484 = vector.extract_strided_slice %456 {offsets = [0, 8], sizes = [16, 8], strides = [1, 1]} : vector<16x32xf32> to vector<16x8xf32>
    %485 = vector.extract_strided_slice %464 {offsets = [0, 8], sizes = [16, 8], strides = [1, 1]} : vector<16x32xf32> to vector<16x8xf32>
    %486 = vector.extract_strided_slice %465 {offsets = [0, 8], sizes = [16, 8], strides = [1, 1]} : vector<16x32xf32> to vector<16x8xf32>
    %cst_229 = arith.constant dense<0.000000e+00> : vector<16x16xf32>
    %487 = tpu.matmul %484, %485, %cst_229 {dimension_numbers = #tpu.dot_dimension_numbers<[1], [1], [0], [0], [0, 0, 1, 0], [], []>} : vector<16x8xf32>, vector<16x8xf32>, vector<16x16xf32> -> vector<16x16xf32>
    %cst_230 = arith.constant 0.353553385 : f32
    %488 = vector.broadcast %cst_230 : f32 to vector<16x16xf32>
    %489 = arith.mulf %487, %488 : vector<16x16xf32>
    %490 = arith.addf %489, %2 : vector<16x16xf32>
    %cst_231 = arith.constant dense<0xFF800000> : vector<16xf32>
    %491 = vector.multi_reduction <maximumf>, %490, %cst_231 [1] : vector<16x16xf32> to vector<16xf32>
    %492 = vector.shape_cast %491 : vector<16xf32> to vector<16x1xf32>
    %493 = vector.broadcast %492 : vector<16x1xf32> to vector<16x16xf32>
    %494 = arith.subf %490, %493 : vector<16x16xf32>
    %495 = math.exp %494 : vector<16x16xf32>
    %cst_232 = arith.constant dense<0.000000e+00> : vector<16xf32>
    %496 = vector.multi_reduction <add>, %495, %cst_232 [1] : vector<16x16xf32> to vector<16xf32>
    %497 = vector.shape_cast %496 : vector<16xf32> to vector<16x1xf32>
    %498 = tpu.reciprocal %497 {approx = true} : vector<16x1xf32> -> vector<16x1xf32>
    %499 = vector.broadcast %498 : vector<16x1xf32> to vector<16x16xf32>
    %500 = arith.mulf %495, %499 : vector<16x16xf32>
    %cst_233 = arith.constant dense<0.000000e+00> : vector<16x8xf32>
    %501 = tpu.matmul %500, %486, %cst_233 {dimension_numbers = #tpu.dot_dimension_numbers<[1], [0], [0], [1], [0, 0, 1, 1], [], []>} : vector<16x16xf32>, vector<16x8xf32>, vector<16x8xf32> -> vector<16x8xf32>
    %502 = vector.extract_strided_slice %456 {offsets = [0, 16], sizes = [16, 8], strides = [1, 1]} : vector<16x32xf32> to vector<16x8xf32>
    %503 = vector.extract_strided_slice %464 {offsets = [0, 16], sizes = [16, 8], strides = [1, 1]} : vector<16x32xf32> to vector<16x8xf32>
    %504 = vector.extract_strided_slice %465 {offsets = [0, 16], sizes = [16, 8], strides = [1, 1]} : vector<16x32xf32> to vector<16x8xf32>
    %cst_234 = arith.constant dense<0.000000e+00> : vector<16x16xf32>
    %505 = tpu.matmul %502, %503, %cst_234 {dimension_numbers = #tpu.dot_dimension_numbers<[1], [1], [0], [0], [0, 0, 1, 0], [], []>} : vector<16x8xf32>, vector<16x8xf32>, vector<16x16xf32> -> vector<16x16xf32>
    %cst_235 = arith.constant 0.353553385 : f32
    %506 = vector.broadcast %cst_235 : f32 to vector<16x16xf32>
    %507 = arith.mulf %505, %506 : vector<16x16xf32>
    %508 = arith.addf %507, %2 : vector<16x16xf32>
    %cst_236 = arith.constant dense<0xFF800000> : vector<16xf32>
    %509 = vector.multi_reduction <maximumf>, %508, %cst_236 [1] : vector<16x16xf32> to vector<16xf32>
    %510 = vector.shape_cast %509 : vector<16xf32> to vector<16x1xf32>
    %511 = vector.broadcast %510 : vector<16x1xf32> to vector<16x16xf32>
    %512 = arith.subf %508, %511 : vector<16x16xf32>
    %513 = math.exp %512 : vector<16x16xf32>
    %cst_237 = arith.constant dense<0.000000e+00> : vector<16xf32>
    %514 = vector.multi_reduction <add>, %513, %cst_237 [1] : vector<16x16xf32> to vector<16xf32>
    %515 = vector.shape_cast %514 : vector<16xf32> to vector<16x1xf32>
    %516 = tpu.reciprocal %515 {approx = true} : vector<16x1xf32> -> vector<16x1xf32>
    %517 = vector.broadcast %516 : vector<16x1xf32> to vector<16x16xf32>
    %518 = arith.mulf %513, %517 : vector<16x16xf32>
    %cst_238 = arith.constant dense<0.000000e+00> : vector<16x8xf32>
    %519 = tpu.matmul %518, %504, %cst_238 {dimension_numbers = #tpu.dot_dimension_numbers<[1], [0], [0], [1], [0, 0, 1, 1], [], []>} : vector<16x16xf32>, vector<16x8xf32>, vector<16x8xf32> -> vector<16x8xf32>
    %520 = vector.extract_strided_slice %456 {offsets = [0, 24], sizes = [16, 8], strides = [1, 1]} : vector<16x32xf32> to vector<16x8xf32>
    %521 = vector.extract_strided_slice %464 {offsets = [0, 24], sizes = [16, 8], strides = [1, 1]} : vector<16x32xf32> to vector<16x8xf32>
    %522 = vector.extract_strided_slice %465 {offsets = [0, 24], sizes = [16, 8], strides = [1, 1]} : vector<16x32xf32> to vector<16x8xf32>
    %cst_239 = arith.constant dense<0.000000e+00> : vector<16x16xf32>
    %523 = tpu.matmul %520, %521, %cst_239 {dimension_numbers = #tpu.dot_dimension_numbers<[1], [1], [0], [0], [0, 0, 1, 0], [], []>} : vector<16x8xf32>, vector<16x8xf32>, vector<16x16xf32> -> vector<16x16xf32>
    %cst_240 = arith.constant 0.353553385 : f32
    %524 = vector.broadcast %cst_240 : f32 to vector<16x16xf32>
    %525 = arith.mulf %523, %524 : vector<16x16xf32>
    %526 = arith.addf %525, %2 : vector<16x16xf32>
    %cst_241 = arith.constant dense<0xFF800000> : vector<16xf32>
    %527 = vector.multi_reduction <maximumf>, %526, %cst_241 [1] : vector<16x16xf32> to vector<16xf32>
    %528 = vector.shape_cast %527 : vector<16xf32> to vector<16x1xf32>
    %529 = vector.broadcast %528 : vector<16x1xf32> to vector<16x16xf32>
    %530 = arith.subf %526, %529 : vector<16x16xf32>
    %531 = math.exp %530 : vector<16x16xf32>
    %cst_242 = arith.constant dense<0.000000e+00> : vector<16xf32>
    %532 = vector.multi_reduction <add>, %531, %cst_242 [1] : vector<16x16xf32> to vector<16xf32>
    %533 = vector.shape_cast %532 : vector<16xf32> to vector<16x1xf32>
    %534 = tpu.reciprocal %533 {approx = true} : vector<16x1xf32> -> vector<16x1xf32>
    %535 = vector.broadcast %534 : vector<16x1xf32> to vector<16x16xf32>
    %536 = arith.mulf %531, %535 : vector<16x16xf32>
    %cst_243 = arith.constant dense<0.000000e+00> : vector<16x8xf32>
    %537 = tpu.matmul %536, %522, %cst_243 {dimension_numbers = #tpu.dot_dimension_numbers<[1], [0], [0], [1], [0, 0, 1, 1], [], []>} : vector<16x16xf32>, vector<16x8xf32>, vector<16x8xf32> -> vector<16x8xf32>
    %538 = tpu.concatenate %483, %501, %519, %537 in 1 : vector<16x8xf32>, vector<16x8xf32>, vector<16x8xf32>, vector<16x8xf32> -> vector<16x32xf32>
    %c0_244 = arith.constant 0 : index
    %c0_245 = arith.constant 0 : index
    %c0_246 = arith.constant 0 : index
    %539 = vector.load %arg33[%c0_244, %c0_245, %c0_246] : memref<2x32x32xf32, #tpu.memory_space<vmem>>, vector<1x32x32xf32>
    %540 = vector.shape_cast %539 : vector<1x32x32xf32> to vector<32x32xf32>
    %cst_247 = arith.constant dense<0.000000e+00> : vector<16x32xf32>
    %541 = tpu.matmul %538, %540, %cst_247 {dimension_numbers = #tpu.dot_dimension_numbers<[1], [0], [0], [1], [0, 0, 1, 1], [], []>} : vector<16x32xf32>, vector<32x32xf32>, vector<16x32xf32> -> vector<16x32xf32>
    %c0_248 = arith.constant 0 : index
    %c0_249 = arith.constant 0 : index
    %c0_250 = arith.constant 0 : index
    %542 = vector.load %arg34[%c0_248, %c0_249, %c0_250] : memref<2x1x32xf32, #tpu.memory_space<vmem>>, vector<1x1x32xf32>
    %543 = vector.shape_cast %542 : vector<1x1x32xf32> to vector<1x32xf32>
    %544 = vector.broadcast %543 : vector<1x32xf32> to vector<16x32xf32>
    %545 = arith.addf %541, %544 : vector<16x32xf32>
    %546 = arith.addf %449, %545 : vector<16x32xf32>
    %c0_251 = arith.constant 0 : index
    %c0_252 = arith.constant 0 : index
    %c0_253 = arith.constant 0 : index
    %547 = vector.load %arg35[%c0_251, %c0_252, %c0_253] : memref<2x1x32xf32, #tpu.memory_space<vmem>>, vector<1x1x32xf32>
    %548 = vector.shape_cast %547 : vector<1x1x32xf32> to vector<1x32xf32>
    %c0_254 = arith.constant 0 : index
    %c0_255 = arith.constant 0 : index
    %c0_256 = arith.constant 0 : index
    %549 = vector.load %arg36[%c0_254, %c0_255, %c0_256] : memref<2x1x32xf32, #tpu.memory_space<vmem>>, vector<1x1x32xf32>
    %550 = vector.shape_cast %549 : vector<1x1x32xf32> to vector<1x32xf32>
    %cst_257 = arith.constant dense<0.000000e+00> : vector<16xf32>
    %551 = vector.multi_reduction <add>, %546, %cst_257 [1] : vector<16x32xf32> to vector<16xf32>
    %552 = vector.shape_cast %551 : vector<16xf32> to vector<16x1xf32>
    %cst_258 = arith.constant 3.200000e+01 : f32
    %553 = vector.broadcast %cst_258 : f32 to vector<16x1xf32>
    %554 = arith.divf %552, %553 : vector<16x1xf32>
    %555 = vector.broadcast %554 : vector<16x1xf32> to vector<16x32xf32>
    %556 = arith.subf %546, %555 : vector<16x32xf32>
    %557 = arith.mulf %556, %556 : vector<16x32xf32>
    %cst_259 = arith.constant dense<0.000000e+00> : vector<16xf32>
    %558 = vector.multi_reduction <add>, %557, %cst_259 [1] : vector<16x32xf32> to vector<16xf32>
    %559 = vector.shape_cast %558 : vector<16xf32> to vector<16x1xf32>
    %cst_260 = arith.constant 3.200000e+01 : f32
    %560 = vector.broadcast %cst_260 : f32 to vector<16x1xf32>
    %561 = arith.divf %559, %560 : vector<16x1xf32>
    %cst_261 = arith.constant 9.99999974E-6 : f32
    %562 = vector.broadcast %cst_261 : f32 to vector<16x1xf32>
    %563 = arith.addf %561, %562 : vector<16x1xf32>
    %564 = math.rsqrt %563 : vector<16x1xf32>
    %565 = vector.broadcast %564 : vector<16x1xf32> to vector<16x32xf32>
    %566 = arith.mulf %556, %565 : vector<16x32xf32>
    %567 = vector.broadcast %548 : vector<1x32xf32> to vector<16x32xf32>
    %568 = arith.mulf %566, %567 : vector<16x32xf32>
    %569 = vector.broadcast %550 : vector<1x32xf32> to vector<16x32xf32>
    %570 = arith.addf %568, %569 : vector<16x32xf32>
    %c0_262 = arith.constant 0 : index
    %c0_263 = arith.constant 0 : index
    %c0_264 = arith.constant 0 : index
    %571 = vector.load %arg37[%c0_262, %c0_263, %c0_264] : memref<2x32x128xf32, #tpu.memory_space<vmem>>, vector<1x32x128xf32>
    %572 = vector.shape_cast %571 : vector<1x32x128xf32> to vector<32x128xf32>
    %cst_265 = arith.constant dense<0.000000e+00> : vector<16x128xf32>
    %573 = tpu.matmul %570, %572, %cst_265 {dimension_numbers = #tpu.dot_dimension_numbers<[1], [0], [0], [1], [0, 0, 1, 1], [], []>} : vector<16x32xf32>, vector<32x128xf32>, vector<16x128xf32> -> vector<16x128xf32>
    %c0_266 = arith.constant 0 : index
    %c0_267 = arith.constant 0 : index
    %c0_268 = arith.constant 0 : index
    %574 = vector.load %arg38[%c0_266, %c0_267, %c0_268] : memref<2x1x128xf32, #tpu.memory_space<vmem>>, vector<1x1x128xf32>
    %575 = vector.shape_cast %574 : vector<1x1x128xf32> to vector<1x128xf32>
    %576 = vector.broadcast %575 : vector<1x128xf32> to vector<16x128xf32>
    %577 = arith.addf %573, %576 : vector<16x128xf32>
    %cst_269 = arith.constant 0.000000e+00 : f32
    %578 = vector.broadcast %cst_269 : f32 to vector<16x128xf32>
    %579 = arith.maximumf %577, %578 : vector<16x128xf32>
    %c0_270 = arith.constant 0 : index
    %c0_271 = arith.constant 0 : index
    %c0_272 = arith.constant 0 : index
    %580 = vector.load %arg39[%c0_270, %c0_271, %c0_272] : memref<2x128x32xf32, #tpu.memory_space<vmem>>, vector<1x128x32xf32>
    %581 = vector.shape_cast %580 : vector<1x128x32xf32> to vector<128x32xf32>
    %cst_273 = arith.constant dense<0.000000e+00> : vector<16x32xf32>
    %582 = tpu.matmul %579, %581, %cst_273 {dimension_numbers = #tpu.dot_dimension_numbers<[1], [0], [0], [1], [0, 0, 1, 1], [], []>} : vector<16x128xf32>, vector<128x32xf32>, vector<16x32xf32> -> vector<16x32xf32>
    %c0_274 = arith.constant 0 : index
    %c0_275 = arith.constant 0 : index
    %c0_276 = arith.constant 0 : index
    %583 = vector.load %arg40[%c0_274, %c0_275, %c0_276] : memref<2x1x32xf32, #tpu.memory_space<vmem>>, vector<1x1x32xf32>
    %584 = vector.shape_cast %583 : vector<1x1x32xf32> to vector<1x32xf32>
    %585 = vector.broadcast %584 : vector<1x32xf32> to vector<16x32xf32>
    %586 = arith.addf %582, %585 : vector<16x32xf32>
    %587 = arith.addf %570, %586 : vector<16x32xf32>
    %c0_277 = arith.constant 0 : index
    %c0_278 = arith.constant 0 : index
    %c0_279 = arith.constant 0 : index
    %588 = vector.load %arg41[%c0_277, %c0_278, %c0_279] : memref<2x1x32xf32, #tpu.memory_space<vmem>>, vector<1x1x32xf32>
    %589 = vector.shape_cast %588 : vector<1x1x32xf32> to vector<1x32xf32>
    %c0_280 = arith.constant 0 : index
    %c0_281 = arith.constant 0 : index
    %c0_282 = arith.constant 0 : index
    %590 = vector.load %arg42[%c0_280, %c0_281, %c0_282] : memref<2x1x32xf32, #tpu.memory_space<vmem>>, vector<1x1x32xf32>
    %591 = vector.shape_cast %590 : vector<1x1x32xf32> to vector<1x32xf32>
    %cst_283 = arith.constant dense<0.000000e+00> : vector<16xf32>
    %592 = vector.multi_reduction <add>, %587, %cst_283 [1] : vector<16x32xf32> to vector<16xf32>
    %593 = vector.shape_cast %592 : vector<16xf32> to vector<16x1xf32>
    %cst_284 = arith.constant 3.200000e+01 : f32
    %594 = vector.broadcast %cst_284 : f32 to vector<16x1xf32>
    %595 = arith.divf %593, %594 : vector<16x1xf32>
    %596 = vector.broadcast %595 : vector<16x1xf32> to vector<16x32xf32>
    %597 = arith.subf %587, %596 : vector<16x32xf32>
    %598 = arith.mulf %597, %597 : vector<16x32xf32>
    %cst_285 = arith.constant dense<0.000000e+00> : vector<16xf32>
    %599 = vector.multi_reduction <add>, %598, %cst_285 [1] : vector<16x32xf32> to vector<16xf32>
    %600 = vector.shape_cast %599 : vector<16xf32> to vector<16x1xf32>
    %cst_286 = arith.constant 3.200000e+01 : f32
    %601 = vector.broadcast %cst_286 : f32 to vector<16x1xf32>
    %602 = arith.divf %600, %601 : vector<16x1xf32>
    %cst_287 = arith.constant 9.99999974E-6 : f32
    %603 = vector.broadcast %cst_287 : f32 to vector<16x1xf32>
    %604 = arith.addf %602, %603 : vector<16x1xf32>
    %605 = math.rsqrt %604 : vector<16x1xf32>
    %606 = vector.broadcast %605 : vector<16x1xf32> to vector<16x32xf32>
    %607 = arith.mulf %597, %606 : vector<16x32xf32>
    %608 = vector.broadcast %589 : vector<1x32xf32> to vector<16x32xf32>
    %609 = arith.mulf %607, %608 : vector<16x32xf32>
    %610 = vector.broadcast %591 : vector<1x32xf32> to vector<16x32xf32>
    %611 = arith.addf %609, %610 : vector<16x32xf32>
    %c1_288 = arith.constant 1 : index
    %c0_289 = arith.constant 0 : index
    %c0_290 = arith.constant 0 : index
    %612 = vector.load %arg23[%c1_288, %c0_289, %c0_290] : memref<2x32x96xf32, #tpu.memory_space<vmem>>, vector<1x32x96xf32>
    %613 = vector.shape_cast %612 : vector<1x32x96xf32> to vector<32x96xf32>
    %cst_291 = arith.constant dense<0.000000e+00> : vector<16x96xf32>
    %614 = tpu.matmul %611, %613, %cst_291 {dimension_numbers = #tpu.dot_dimension_numbers<[1], [0], [0], [1], [0, 0, 1, 1], [], []>} : vector<16x32xf32>, vector<32x96xf32>, vector<16x96xf32> -> vector<16x96xf32>
    %c1_292 = arith.constant 1 : index
    %c0_293 = arith.constant 0 : index
    %c0_294 = arith.constant 0 : index
    %615 = vector.load %arg24[%c1_292, %c0_293, %c0_294] : memref<2x1x96xf32, #tpu.memory_space<vmem>>, vector<1x1x96xf32>
    %616 = vector.shape_cast %615 : vector<1x1x96xf32> to vector<1x96xf32>
    %617 = vector.broadcast %616 : vector<1x96xf32> to vector<16x96xf32>
    %618 = arith.addf %614, %617 : vector<16x96xf32>
    %619 = vector.extract_strided_slice %618 {offsets = [0, 0], sizes = [16, 32], strides = [1, 1]} : vector<16x96xf32> to vector<16x32xf32>
    %620 = vector.extract_strided_slice %618 {offsets = [0, 32], sizes = [16, 32], strides = [1, 1]} : vector<16x96xf32> to vector<16x32xf32>
    %621 = vector.extract_strided_slice %618 {offsets = [0, 64], sizes = [16, 32], strides = [1, 1]} : vector<16x96xf32> to vector<16x32xf32>
    %622 = vector.extract_strided_slice %619 {offsets = [0, 0], sizes = [16, 8], strides = [1, 1]} : vector<16x32xf32> to vector<16x8xf32>
    %623 = vector.extract_strided_slice %620 {offsets = [0, 0], sizes = [16, 8], strides = [1, 1]} : vector<16x32xf32> to vector<16x8xf32>
    %624 = vector.extract_strided_slice %621 {offsets = [0, 0], sizes = [16, 8], strides = [1, 1]} : vector<16x32xf32> to vector<16x8xf32>
    %cst_295 = arith.constant dense<0.000000e+00> : vector<16x16xf32>
    %625 = tpu.matmul %622, %623, %cst_295 {dimension_numbers = #tpu.dot_dimension_numbers<[1], [1], [0], [0], [0, 0, 1, 0], [], []>} : vector<16x8xf32>, vector<16x8xf32>, vector<16x16xf32> -> vector<16x16xf32>
    %cst_296 = arith.constant 0.353553385 : f32
    %626 = vector.broadcast %cst_296 : f32 to vector<16x16xf32>
    %627 = arith.mulf %625, %626 : vector<16x16xf32>
    %628 = arith.addf %627, %1 : vector<16x16xf32>
    %cst_297 = arith.constant dense<0xFF800000> : vector<16xf32>
    %629 = vector.multi_reduction <maximumf>, %628, %cst_297 [1] : vector<16x16xf32> to vector<16xf32>
    %630 = vector.shape_cast %629 : vector<16xf32> to vector<16x1xf32>
    %631 = vector.broadcast %630 : vector<16x1xf32> to vector<16x16xf32>
    %632 = arith.subf %628, %631 : vector<16x16xf32>
    %633 = math.exp %632 : vector<16x16xf32>
    %cst_298 = arith.constant dense<0.000000e+00> : vector<16xf32>
    %634 = vector.multi_reduction <add>, %633, %cst_298 [1] : vector<16x16xf32> to vector<16xf32>
    %635 = vector.shape_cast %634 : vector<16xf32> to vector<16x1xf32>
    %636 = tpu.reciprocal %635 {approx = true} : vector<16x1xf32> -> vector<16x1xf32>
    %637 = vector.broadcast %636 : vector<16x1xf32> to vector<16x16xf32>
    %638 = arith.mulf %633, %637 : vector<16x16xf32>
    %cst_299 = arith.constant dense<0.000000e+00> : vector<16x8xf32>
    %639 = tpu.matmul %638, %624, %cst_299 {dimension_numbers = #tpu.dot_dimension_numbers<[1], [0], [0], [1], [0, 0, 1, 1], [], []>} : vector<16x16xf32>, vector<16x8xf32>, vector<16x8xf32> -> vector<16x8xf32>
    %640 = vector.extract_strided_slice %619 {offsets = [0, 8], sizes = [16, 8], strides = [1, 1]} : vector<16x32xf32> to vector<16x8xf32>
    %641 = vector.extract_strided_slice %620 {offsets = [0, 8], sizes = [16, 8], strides = [1, 1]} : vector<16x32xf32> to vector<16x8xf32>
    %642 = vector.extract_strided_slice %621 {offsets = [0, 8], sizes = [16, 8], strides = [1, 1]} : vector<16x32xf32> to vector<16x8xf32>
    %cst_300 = arith.constant dense<0.000000e+00> : vector<16x16xf32>
    %643 = tpu.matmul %640, %641, %cst_300 {dimension_numbers = #tpu.dot_dimension_numbers<[1], [1], [0], [0], [0, 0, 1, 0], [], []>} : vector<16x8xf32>, vector<16x8xf32>, vector<16x16xf32> -> vector<16x16xf32>
    %cst_301 = arith.constant 0.353553385 : f32
    %644 = vector.broadcast %cst_301 : f32 to vector<16x16xf32>
    %645 = arith.mulf %643, %644 : vector<16x16xf32>
    %646 = arith.addf %645, %1 : vector<16x16xf32>
    %cst_302 = arith.constant dense<0xFF800000> : vector<16xf32>
    %647 = vector.multi_reduction <maximumf>, %646, %cst_302 [1] : vector<16x16xf32> to vector<16xf32>
    %648 = vector.shape_cast %647 : vector<16xf32> to vector<16x1xf32>
    %649 = vector.broadcast %648 : vector<16x1xf32> to vector<16x16xf32>
    %650 = arith.subf %646, %649 : vector<16x16xf32>
    %651 = math.exp %650 : vector<16x16xf32>
    %cst_303 = arith.constant dense<0.000000e+00> : vector<16xf32>
    %652 = vector.multi_reduction <add>, %651, %cst_303 [1] : vector<16x16xf32> to vector<16xf32>
    %653 = vector.shape_cast %652 : vector<16xf32> to vector<16x1xf32>
    %654 = tpu.reciprocal %653 {approx = true} : vector<16x1xf32> -> vector<16x1xf32>
    %655 = vector.broadcast %654 : vector<16x1xf32> to vector<16x16xf32>
    %656 = arith.mulf %651, %655 : vector<16x16xf32>
    %cst_304 = arith.constant dense<0.000000e+00> : vector<16x8xf32>
    %657 = tpu.matmul %656, %642, %cst_304 {dimension_numbers = #tpu.dot_dimension_numbers<[1], [0], [0], [1], [0, 0, 1, 1], [], []>} : vector<16x16xf32>, vector<16x8xf32>, vector<16x8xf32> -> vector<16x8xf32>
    %658 = vector.extract_strided_slice %619 {offsets = [0, 16], sizes = [16, 8], strides = [1, 1]} : vector<16x32xf32> to vector<16x8xf32>
    %659 = vector.extract_strided_slice %620 {offsets = [0, 16], sizes = [16, 8], strides = [1, 1]} : vector<16x32xf32> to vector<16x8xf32>
    %660 = vector.extract_strided_slice %621 {offsets = [0, 16], sizes = [16, 8], strides = [1, 1]} : vector<16x32xf32> to vector<16x8xf32>
    %cst_305 = arith.constant dense<0.000000e+00> : vector<16x16xf32>
    %661 = tpu.matmul %658, %659, %cst_305 {dimension_numbers = #tpu.dot_dimension_numbers<[1], [1], [0], [0], [0, 0, 1, 0], [], []>} : vector<16x8xf32>, vector<16x8xf32>, vector<16x16xf32> -> vector<16x16xf32>
    %cst_306 = arith.constant 0.353553385 : f32
    %662 = vector.broadcast %cst_306 : f32 to vector<16x16xf32>
    %663 = arith.mulf %661, %662 : vector<16x16xf32>
    %664 = arith.addf %663, %1 : vector<16x16xf32>
    %cst_307 = arith.constant dense<0xFF800000> : vector<16xf32>
    %665 = vector.multi_reduction <maximumf>, %664, %cst_307 [1] : vector<16x16xf32> to vector<16xf32>
    %666 = vector.shape_cast %665 : vector<16xf32> to vector<16x1xf32>
    %667 = vector.broadcast %666 : vector<16x1xf32> to vector<16x16xf32>
    %668 = arith.subf %664, %667 : vector<16x16xf32>
    %669 = math.exp %668 : vector<16x16xf32>
    %cst_308 = arith.constant dense<0.000000e+00> : vector<16xf32>
    %670 = vector.multi_reduction <add>, %669, %cst_308 [1] : vector<16x16xf32> to vector<16xf32>
    %671 = vector.shape_cast %670 : vector<16xf32> to vector<16x1xf32>
    %672 = tpu.reciprocal %671 {approx = true} : vector<16x1xf32> -> vector<16x1xf32>
    %673 = vector.broadcast %672 : vector<16x1xf32> to vector<16x16xf32>
    %674 = arith.mulf %669, %673 : vector<16x16xf32>
    %cst_309 = arith.constant dense<0.000000e+00> : vector<16x8xf32>
    %675 = tpu.matmul %674, %660, %cst_309 {dimension_numbers = #tpu.dot_dimension_numbers<[1], [0], [0], [1], [0, 0, 1, 1], [], []>} : vector<16x16xf32>, vector<16x8xf32>, vector<16x8xf32> -> vector<16x8xf32>
    %676 = vector.extract_strided_slice %619 {offsets = [0, 24], sizes = [16, 8], strides = [1, 1]} : vector<16x32xf32> to vector<16x8xf32>
    %677 = vector.extract_strided_slice %620 {offsets = [0, 24], sizes = [16, 8], strides = [1, 1]} : vector<16x32xf32> to vector<16x8xf32>
    %678 = vector.extract_strided_slice %621 {offsets = [0, 24], sizes = [16, 8], strides = [1, 1]} : vector<16x32xf32> to vector<16x8xf32>
    %cst_310 = arith.constant dense<0.000000e+00> : vector<16x16xf32>
    %679 = tpu.matmul %676, %677, %cst_310 {dimension_numbers = #tpu.dot_dimension_numbers<[1], [1], [0], [0], [0, 0, 1, 0], [], []>} : vector<16x8xf32>, vector<16x8xf32>, vector<16x16xf32> -> vector<16x16xf32>
    %cst_311 = arith.constant 0.353553385 : f32
    %680 = vector.broadcast %cst_311 : f32 to vector<16x16xf32>
    %681 = arith.mulf %679, %680 : vector<16x16xf32>
    %682 = arith.addf %681, %1 : vector<16x16xf32>
    %cst_312 = arith.constant dense<0xFF800000> : vector<16xf32>
    %683 = vector.multi_reduction <maximumf>, %682, %cst_312 [1] : vector<16x16xf32> to vector<16xf32>
    %684 = vector.shape_cast %683 : vector<16xf32> to vector<16x1xf32>
    %685 = vector.broadcast %684 : vector<16x1xf32> to vector<16x16xf32>
    %686 = arith.subf %682, %685 : vector<16x16xf32>
    %687 = math.exp %686 : vector<16x16xf32>
    %cst_313 = arith.constant dense<0.000000e+00> : vector<16xf32>
    %688 = vector.multi_reduction <add>, %687, %cst_313 [1] : vector<16x16xf32> to vector<16xf32>
    %689 = vector.shape_cast %688 : vector<16xf32> to vector<16x1xf32>
    %690 = tpu.reciprocal %689 {approx = true} : vector<16x1xf32> -> vector<16x1xf32>
    %691 = vector.broadcast %690 : vector<16x1xf32> to vector<16x16xf32>
    %692 = arith.mulf %687, %691 : vector<16x16xf32>
    %cst_314 = arith.constant dense<0.000000e+00> : vector<16x8xf32>
    %693 = tpu.matmul %692, %678, %cst_314 {dimension_numbers = #tpu.dot_dimension_numbers<[1], [0], [0], [1], [0, 0, 1, 1], [], []>} : vector<16x16xf32>, vector<16x8xf32>, vector<16x8xf32> -> vector<16x8xf32>
    %694 = tpu.concatenate %639, %657, %675, %693 in 1 : vector<16x8xf32>, vector<16x8xf32>, vector<16x8xf32>, vector<16x8xf32> -> vector<16x32xf32>
    %c1_315 = arith.constant 1 : index
    %c0_316 = arith.constant 0 : index
    %c0_317 = arith.constant 0 : index
    %695 = vector.load %arg25[%c1_315, %c0_316, %c0_317] : memref<2x32x32xf32, #tpu.memory_space<vmem>>, vector<1x32x32xf32>
    %696 = vector.shape_cast %695 : vector<1x32x32xf32> to vector<32x32xf32>
    %cst_318 = arith.constant dense<0.000000e+00> : vector<16x32xf32>
    %697 = tpu.matmul %694, %696, %cst_318 {dimension_numbers = #tpu.dot_dimension_numbers<[1], [0], [0], [1], [0, 0, 1, 1], [], []>} : vector<16x32xf32>, vector<32x32xf32>, vector<16x32xf32> -> vector<16x32xf32>
    %c1_319 = arith.constant 1 : index
    %c0_320 = arith.constant 0 : index
    %c0_321 = arith.constant 0 : index
    %698 = vector.load %arg26[%c1_319, %c0_320, %c0_321] : memref<2x1x32xf32, #tpu.memory_space<vmem>>, vector<1x1x32xf32>
    %699 = vector.shape_cast %698 : vector<1x1x32xf32> to vector<1x32xf32>
    %700 = vector.broadcast %699 : vector<1x32xf32> to vector<16x32xf32>
    %701 = arith.addf %697, %700 : vector<16x32xf32>
    %702 = arith.addf %611, %701 : vector<16x32xf32>
    %c1_322 = arith.constant 1 : index
    %c0_323 = arith.constant 0 : index
    %c0_324 = arith.constant 0 : index
    %703 = vector.load %arg27[%c1_322, %c0_323, %c0_324] : memref<2x1x32xf32, #tpu.memory_space<vmem>>, vector<1x1x32xf32>
    %704 = vector.shape_cast %703 : vector<1x1x32xf32> to vector<1x32xf32>
    %c1_325 = arith.constant 1 : index
    %c0_326 = arith.constant 0 : index
    %c0_327 = arith.constant 0 : index
    %705 = vector.load %arg28[%c1_325, %c0_326, %c0_327] : memref<2x1x32xf32, #tpu.memory_space<vmem>>, vector<1x1x32xf32>
    %706 = vector.shape_cast %705 : vector<1x1x32xf32> to vector<1x32xf32>
    %cst_328 = arith.constant dense<0.000000e+00> : vector<16xf32>
    %707 = vector.multi_reduction <add>, %702, %cst_328 [1] : vector<16x32xf32> to vector<16xf32>
    %708 = vector.shape_cast %707 : vector<16xf32> to vector<16x1xf32>
    %cst_329 = arith.constant 3.200000e+01 : f32
    %709 = vector.broadcast %cst_329 : f32 to vector<16x1xf32>
    %710 = arith.divf %708, %709 : vector<16x1xf32>
    %711 = vector.broadcast %710 : vector<16x1xf32> to vector<16x32xf32>
    %712 = arith.subf %702, %711 : vector<16x32xf32>
    %713 = arith.mulf %712, %712 : vector<16x32xf32>
    %cst_330 = arith.constant dense<0.000000e+00> : vector<16xf32>
    %714 = vector.multi_reduction <add>, %713, %cst_330 [1] : vector<16x32xf32> to vector<16xf32>
    %715 = vector.shape_cast %714 : vector<16xf32> to vector<16x1xf32>
    %cst_331 = arith.constant 3.200000e+01 : f32
    %716 = vector.broadcast %cst_331 : f32 to vector<16x1xf32>
    %717 = arith.divf %715, %716 : vector<16x1xf32>
    %cst_332 = arith.constant 9.99999974E-6 : f32
    %718 = vector.broadcast %cst_332 : f32 to vector<16x1xf32>
    %719 = arith.addf %717, %718 : vector<16x1xf32>
    %720 = math.rsqrt %719 : vector<16x1xf32>
    %721 = vector.broadcast %720 : vector<16x1xf32> to vector<16x32xf32>
    %722 = arith.mulf %712, %721 : vector<16x32xf32>
    %723 = vector.broadcast %704 : vector<1x32xf32> to vector<16x32xf32>
    %724 = arith.mulf %722, %723 : vector<16x32xf32>
    %725 = vector.broadcast %706 : vector<1x32xf32> to vector<16x32xf32>
    %726 = arith.addf %724, %725 : vector<16x32xf32>
    %c1_333 = arith.constant 1 : index
    %c0_334 = arith.constant 0 : index
    %c0_335 = arith.constant 0 : index
    %727 = vector.load %arg29[%c1_333, %c0_334, %c0_335] : memref<2x32x32xf32, #tpu.memory_space<vmem>>, vector<1x32x32xf32>
    %728 = vector.shape_cast %727 : vector<1x32x32xf32> to vector<32x32xf32>
    %cst_336 = arith.constant dense<0.000000e+00> : vector<16x32xf32>
    %729 = tpu.matmul %726, %728, %cst_336 {dimension_numbers = #tpu.dot_dimension_numbers<[1], [0], [0], [1], [0, 0, 1, 1], [], []>} : vector<16x32xf32>, vector<32x32xf32>, vector<16x32xf32> -> vector<16x32xf32>
    %c1_337 = arith.constant 1 : index
    %c0_338 = arith.constant 0 : index
    %c0_339 = arith.constant 0 : index
    %730 = vector.load %arg30[%c1_337, %c0_338, %c0_339] : memref<2x1x32xf32, #tpu.memory_space<vmem>>, vector<1x1x32xf32>
    %731 = vector.shape_cast %730 : vector<1x1x32xf32> to vector<1x32xf32>
    %732 = vector.broadcast %731 : vector<1x32xf32> to vector<16x32xf32>
    %733 = arith.addf %729, %732 : vector<16x32xf32>
    %c1_340 = arith.constant 1 : index
    %c0_341 = arith.constant 0 : index
    %c0_342 = arith.constant 0 : index
    %734 = vector.load %arg31[%c1_340, %c0_341, %c0_342] : memref<2x32x64xf32, #tpu.memory_space<vmem>>, vector<1x32x64xf32>
    %735 = vector.shape_cast %734 : vector<1x32x64xf32> to vector<32x64xf32>
    %cst_343 = arith.constant dense<0.000000e+00> : vector<16x64xf32>
    %736 = tpu.matmul %324, %735, %cst_343 {dimension_numbers = #tpu.dot_dimension_numbers<[1], [0], [0], [1], [0, 0, 1, 1], [], []>} : vector<16x32xf32>, vector<32x64xf32>, vector<16x64xf32> -> vector<16x64xf32>
    %c1_344 = arith.constant 1 : index
    %c0_345 = arith.constant 0 : index
    %c0_346 = arith.constant 0 : index
    %737 = vector.load %arg32[%c1_344, %c0_345, %c0_346] : memref<2x1x64xf32, #tpu.memory_space<vmem>>, vector<1x1x64xf32>
    %738 = vector.shape_cast %737 : vector<1x1x64xf32> to vector<1x64xf32>
    %739 = vector.broadcast %738 : vector<1x64xf32> to vector<16x64xf32>
    %740 = arith.addf %736, %739 : vector<16x64xf32>
    %741 = vector.extract_strided_slice %740 {offsets = [0, 0], sizes = [16, 32], strides = [1, 1]} : vector<16x64xf32> to vector<16x32xf32>
    %742 = vector.extract_strided_slice %740 {offsets = [0, 32], sizes = [16, 32], strides = [1, 1]} : vector<16x64xf32> to vector<16x32xf32>
    %743 = vector.extract_strided_slice %733 {offsets = [0, 0], sizes = [16, 8], strides = [1, 1]} : vector<16x32xf32> to vector<16x8xf32>
    %744 = vector.extract_strided_slice %741 {offsets = [0, 0], sizes = [16, 8], strides = [1, 1]} : vector<16x32xf32> to vector<16x8xf32>
    %745 = vector.extract_strided_slice %742 {offsets = [0, 0], sizes = [16, 8], strides = [1, 1]} : vector<16x32xf32> to vector<16x8xf32>
    %cst_347 = arith.constant dense<0.000000e+00> : vector<16x16xf32>
    %746 = tpu.matmul %743, %744, %cst_347 {dimension_numbers = #tpu.dot_dimension_numbers<[1], [1], [0], [0], [0, 0, 1, 0], [], []>} : vector<16x8xf32>, vector<16x8xf32>, vector<16x16xf32> -> vector<16x16xf32>
    %cst_348 = arith.constant 0.353553385 : f32
    %747 = vector.broadcast %cst_348 : f32 to vector<16x16xf32>
    %748 = arith.mulf %746, %747 : vector<16x16xf32>
    %749 = arith.addf %748, %2 : vector<16x16xf32>
    %cst_349 = arith.constant dense<0xFF800000> : vector<16xf32>
    %750 = vector.multi_reduction <maximumf>, %749, %cst_349 [1] : vector<16x16xf32> to vector<16xf32>
    %751 = vector.shape_cast %750 : vector<16xf32> to vector<16x1xf32>
    %752 = vector.broadcast %751 : vector<16x1xf32> to vector<16x16xf32>
    %753 = arith.subf %749, %752 : vector<16x16xf32>
    %754 = math.exp %753 : vector<16x16xf32>
    %cst_350 = arith.constant dense<0.000000e+00> : vector<16xf32>
    %755 = vector.multi_reduction <add>, %754, %cst_350 [1] : vector<16x16xf32> to vector<16xf32>
    %756 = vector.shape_cast %755 : vector<16xf32> to vector<16x1xf32>
    %757 = tpu.reciprocal %756 {approx = true} : vector<16x1xf32> -> vector<16x1xf32>
    %758 = vector.broadcast %757 : vector<16x1xf32> to vector<16x16xf32>
    %759 = arith.mulf %754, %758 : vector<16x16xf32>
    %cst_351 = arith.constant dense<0.000000e+00> : vector<16x8xf32>
    %760 = tpu.matmul %759, %745, %cst_351 {dimension_numbers = #tpu.dot_dimension_numbers<[1], [0], [0], [1], [0, 0, 1, 1], [], []>} : vector<16x16xf32>, vector<16x8xf32>, vector<16x8xf32> -> vector<16x8xf32>
    %761 = vector.extract_strided_slice %733 {offsets = [0, 8], sizes = [16, 8], strides = [1, 1]} : vector<16x32xf32> to vector<16x8xf32>
    %762 = vector.extract_strided_slice %741 {offsets = [0, 8], sizes = [16, 8], strides = [1, 1]} : vector<16x32xf32> to vector<16x8xf32>
    %763 = vector.extract_strided_slice %742 {offsets = [0, 8], sizes = [16, 8], strides = [1, 1]} : vector<16x32xf32> to vector<16x8xf32>
    %cst_352 = arith.constant dense<0.000000e+00> : vector<16x16xf32>
    %764 = tpu.matmul %761, %762, %cst_352 {dimension_numbers = #tpu.dot_dimension_numbers<[1], [1], [0], [0], [0, 0, 1, 0], [], []>} : vector<16x8xf32>, vector<16x8xf32>, vector<16x16xf32> -> vector<16x16xf32>
    %cst_353 = arith.constant 0.353553385 : f32
    %765 = vector.broadcast %cst_353 : f32 to vector<16x16xf32>
    %766 = arith.mulf %764, %765 : vector<16x16xf32>
    %767 = arith.addf %766, %2 : vector<16x16xf32>
    %cst_354 = arith.constant dense<0xFF800000> : vector<16xf32>
    %768 = vector.multi_reduction <maximumf>, %767, %cst_354 [1] : vector<16x16xf32> to vector<16xf32>
    %769 = vector.shape_cast %768 : vector<16xf32> to vector<16x1xf32>
    %770 = vector.broadcast %769 : vector<16x1xf32> to vector<16x16xf32>
    %771 = arith.subf %767, %770 : vector<16x16xf32>
    %772 = math.exp %771 : vector<16x16xf32>
    %cst_355 = arith.constant dense<0.000000e+00> : vector<16xf32>
    %773 = vector.multi_reduction <add>, %772, %cst_355 [1] : vector<16x16xf32> to vector<16xf32>
    %774 = vector.shape_cast %773 : vector<16xf32> to vector<16x1xf32>
    %775 = tpu.reciprocal %774 {approx = true} : vector<16x1xf32> -> vector<16x1xf32>
    %776 = vector.broadcast %775 : vector<16x1xf32> to vector<16x16xf32>
    %777 = arith.mulf %772, %776 : vector<16x16xf32>
    %cst_356 = arith.constant dense<0.000000e+00> : vector<16x8xf32>
    %778 = tpu.matmul %777, %763, %cst_356 {dimension_numbers = #tpu.dot_dimension_numbers<[1], [0], [0], [1], [0, 0, 1, 1], [], []>} : vector<16x16xf32>, vector<16x8xf32>, vector<16x8xf32> -> vector<16x8xf32>
    %779 = vector.extract_strided_slice %733 {offsets = [0, 16], sizes = [16, 8], strides = [1, 1]} : vector<16x32xf32> to vector<16x8xf32>
    %780 = vector.extract_strided_slice %741 {offsets = [0, 16], sizes = [16, 8], strides = [1, 1]} : vector<16x32xf32> to vector<16x8xf32>
    %781 = vector.extract_strided_slice %742 {offsets = [0, 16], sizes = [16, 8], strides = [1, 1]} : vector<16x32xf32> to vector<16x8xf32>
    %cst_357 = arith.constant dense<0.000000e+00> : vector<16x16xf32>
    %782 = tpu.matmul %779, %780, %cst_357 {dimension_numbers = #tpu.dot_dimension_numbers<[1], [1], [0], [0], [0, 0, 1, 0], [], []>} : vector<16x8xf32>, vector<16x8xf32>, vector<16x16xf32> -> vector<16x16xf32>
    %cst_358 = arith.constant 0.353553385 : f32
    %783 = vector.broadcast %cst_358 : f32 to vector<16x16xf32>
    %784 = arith.mulf %782, %783 : vector<16x16xf32>
    %785 = arith.addf %784, %2 : vector<16x16xf32>
    %cst_359 = arith.constant dense<0xFF800000> : vector<16xf32>
    %786 = vector.multi_reduction <maximumf>, %785, %cst_359 [1] : vector<16x16xf32> to vector<16xf32>
    %787 = vector.shape_cast %786 : vector<16xf32> to vector<16x1xf32>
    %788 = vector.broadcast %787 : vector<16x1xf32> to vector<16x16xf32>
    %789 = arith.subf %785, %788 : vector<16x16xf32>
    %790 = math.exp %789 : vector<16x16xf32>
    %cst_360 = arith.constant dense<0.000000e+00> : vector<16xf32>
    %791 = vector.multi_reduction <add>, %790, %cst_360 [1] : vector<16x16xf32> to vector<16xf32>
    %792 = vector.shape_cast %791 : vector<16xf32> to vector<16x1xf32>
    %793 = tpu.reciprocal %792 {approx = true} : vector<16x1xf32> -> vector<16x1xf32>
    %794 = vector.broadcast %793 : vector<16x1xf32> to vector<16x16xf32>
    %795 = arith.mulf %790, %794 : vector<16x16xf32>
    %cst_361 = arith.constant dense<0.000000e+00> : vector<16x8xf32>
    %796 = tpu.matmul %795, %781, %cst_361 {dimension_numbers = #tpu.dot_dimension_numbers<[1], [0], [0], [1], [0, 0, 1, 1], [], []>} : vector<16x16xf32>, vector<16x8xf32>, vector<16x8xf32> -> vector<16x8xf32>
    %797 = vector.extract_strided_slice %733 {offsets = [0, 24], sizes = [16, 8], strides = [1, 1]} : vector<16x32xf32> to vector<16x8xf32>
    %798 = vector.extract_strided_slice %741 {offsets = [0, 24], sizes = [16, 8], strides = [1, 1]} : vector<16x32xf32> to vector<16x8xf32>
    %799 = vector.extract_strided_slice %742 {offsets = [0, 24], sizes = [16, 8], strides = [1, 1]} : vector<16x32xf32> to vector<16x8xf32>
    %cst_362 = arith.constant dense<0.000000e+00> : vector<16x16xf32>
    %800 = tpu.matmul %797, %798, %cst_362 {dimension_numbers = #tpu.dot_dimension_numbers<[1], [1], [0], [0], [0, 0, 1, 0], [], []>} : vector<16x8xf32>, vector<16x8xf32>, vector<16x16xf32> -> vector<16x16xf32>
    %cst_363 = arith.constant 0.353553385 : f32
    %801 = vector.broadcast %cst_363 : f32 to vector<16x16xf32>
    %802 = arith.mulf %800, %801 : vector<16x16xf32>
    %803 = arith.addf %802, %2 : vector<16x16xf32>
    %cst_364 = arith.constant dense<0xFF800000> : vector<16xf32>
    %804 = vector.multi_reduction <maximumf>, %803, %cst_364 [1] : vector<16x16xf32> to vector<16xf32>
    %805 = vector.shape_cast %804 : vector<16xf32> to vector<16x1xf32>
    %806 = vector.broadcast %805 : vector<16x1xf32> to vector<16x16xf32>
    %807 = arith.subf %803, %806 : vector<16x16xf32>
    %808 = math.exp %807 : vector<16x16xf32>
    %cst_365 = arith.constant dense<0.000000e+00> : vector<16xf32>
    %809 = vector.multi_reduction <add>, %808, %cst_365 [1] : vector<16x16xf32> to vector<16xf32>
    %810 = vector.shape_cast %809 : vector<16xf32> to vector<16x1xf32>
    %811 = tpu.reciprocal %810 {approx = true} : vector<16x1xf32> -> vector<16x1xf32>
    %812 = vector.broadcast %811 : vector<16x1xf32> to vector<16x16xf32>
    %813 = arith.mulf %808, %812 : vector<16x16xf32>
    %cst_366 = arith.constant dense<0.000000e+00> : vector<16x8xf32>
    %814 = tpu.matmul %813, %799, %cst_366 {dimension_numbers = #tpu.dot_dimension_numbers<[1], [0], [0], [1], [0, 0, 1, 1], [], []>} : vector<16x16xf32>, vector<16x8xf32>, vector<16x8xf32> -> vector<16x8xf32>
    %815 = tpu.concatenate %760, %778, %796, %814 in 1 : vector<16x8xf32>, vector<16x8xf32>, vector<16x8xf32>, vector<16x8xf32> -> vector<16x32xf32>
    %c1_367 = arith.constant 1 : index
    %c0_368 = arith.constant 0 : index
    %c0_369 = arith.constant 0 : index
    %816 = vector.load %arg33[%c1_367, %c0_368, %c0_369] : memref<2x32x32xf32, #tpu.memory_space<vmem>>, vector<1x32x32xf32>
    %817 = vector.shape_cast %816 : vector<1x32x32xf32> to vector<32x32xf32>
    %cst_370 = arith.constant dense<0.000000e+00> : vector<16x32xf32>
    %818 = tpu.matmul %815, %817, %cst_370 {dimension_numbers = #tpu.dot_dimension_numbers<[1], [0], [0], [1], [0, 0, 1, 1], [], []>} : vector<16x32xf32>, vector<32x32xf32>, vector<16x32xf32> -> vector<16x32xf32>
    %c1_371 = arith.constant 1 : index
    %c0_372 = arith.constant 0 : index
    %c0_373 = arith.constant 0 : index
    %819 = vector.load %arg34[%c1_371, %c0_372, %c0_373] : memref<2x1x32xf32, #tpu.memory_space<vmem>>, vector<1x1x32xf32>
    %820 = vector.shape_cast %819 : vector<1x1x32xf32> to vector<1x32xf32>
    %821 = vector.broadcast %820 : vector<1x32xf32> to vector<16x32xf32>
    %822 = arith.addf %818, %821 : vector<16x32xf32>
    %823 = arith.addf %726, %822 : vector<16x32xf32>
    %c1_374 = arith.constant 1 : index
    %c0_375 = arith.constant 0 : index
    %c0_376 = arith.constant 0 : index
    %824 = vector.load %arg35[%c1_374, %c0_375, %c0_376] : memref<2x1x32xf32, #tpu.memory_space<vmem>>, vector<1x1x32xf32>
    %825 = vector.shape_cast %824 : vector<1x1x32xf32> to vector<1x32xf32>
    %c1_377 = arith.constant 1 : index
    %c0_378 = arith.constant 0 : index
    %c0_379 = arith.constant 0 : index
    %826 = vector.load %arg36[%c1_377, %c0_378, %c0_379] : memref<2x1x32xf32, #tpu.memory_space<vmem>>, vector<1x1x32xf32>
    %827 = vector.shape_cast %826 : vector<1x1x32xf32> to vector<1x32xf32>
    %cst_380 = arith.constant dense<0.000000e+00> : vector<16xf32>
    %828 = vector.multi_reduction <add>, %823, %cst_380 [1] : vector<16x32xf32> to vector<16xf32>
    %829 = vector.shape_cast %828 : vector<16xf32> to vector<16x1xf32>
    %cst_381 = arith.constant 3.200000e+01 : f32
    %830 = vector.broadcast %cst_381 : f32 to vector<16x1xf32>
    %831 = arith.divf %829, %830 : vector<16x1xf32>
    %832 = vector.broadcast %831 : vector<16x1xf32> to vector<16x32xf32>
    %833 = arith.subf %823, %832 : vector<16x32xf32>
    %834 = arith.mulf %833, %833 : vector<16x32xf32>
    %cst_382 = arith.constant dense<0.000000e+00> : vector<16xf32>
    %835 = vector.multi_reduction <add>, %834, %cst_382 [1] : vector<16x32xf32> to vector<16xf32>
    %836 = vector.shape_cast %835 : vector<16xf32> to vector<16x1xf32>
    %cst_383 = arith.constant 3.200000e+01 : f32
    %837 = vector.broadcast %cst_383 : f32 to vector<16x1xf32>
    %838 = arith.divf %836, %837 : vector<16x1xf32>
    %cst_384 = arith.constant 9.99999974E-6 : f32
    %839 = vector.broadcast %cst_384 : f32 to vector<16x1xf32>
    %840 = arith.addf %838, %839 : vector<16x1xf32>
    %841 = math.rsqrt %840 : vector<16x1xf32>
    %842 = vector.broadcast %841 : vector<16x1xf32> to vector<16x32xf32>
    %843 = arith.mulf %833, %842 : vector<16x32xf32>
    %844 = vector.broadcast %825 : vector<1x32xf32> to vector<16x32xf32>
    %845 = arith.mulf %843, %844 : vector<16x32xf32>
    %846 = vector.broadcast %827 : vector<1x32xf32> to vector<16x32xf32>
    %847 = arith.addf %845, %846 : vector<16x32xf32>
    %c1_385 = arith.constant 1 : index
    %c0_386 = arith.constant 0 : index
    %c0_387 = arith.constant 0 : index
    %848 = vector.load %arg37[%c1_385, %c0_386, %c0_387] : memref<2x32x128xf32, #tpu.memory_space<vmem>>, vector<1x32x128xf32>
    %849 = vector.shape_cast %848 : vector<1x32x128xf32> to vector<32x128xf32>
    %cst_388 = arith.constant dense<0.000000e+00> : vector<16x128xf32>
    %850 = tpu.matmul %847, %849, %cst_388 {dimension_numbers = #tpu.dot_dimension_numbers<[1], [0], [0], [1], [0, 0, 1, 1], [], []>} : vector<16x32xf32>, vector<32x128xf32>, vector<16x128xf32> -> vector<16x128xf32>
    %c1_389 = arith.constant 1 : index
    %c0_390 = arith.constant 0 : index
    %c0_391 = arith.constant 0 : index
    %851 = vector.load %arg38[%c1_389, %c0_390, %c0_391] : memref<2x1x128xf32, #tpu.memory_space<vmem>>, vector<1x1x128xf32>
    %852 = vector.shape_cast %851 : vector<1x1x128xf32> to vector<1x128xf32>
    %853 = vector.broadcast %852 : vector<1x128xf32> to vector<16x128xf32>
    %854 = arith.addf %850, %853 : vector<16x128xf32>
    %cst_392 = arith.constant 0.000000e+00 : f32
    %855 = vector.broadcast %cst_392 : f32 to vector<16x128xf32>
    %856 = arith.maximumf %854, %855 : vector<16x128xf32>
    %c1_393 = arith.constant 1 : index
    %c0_394 = arith.constant 0 : index
    %c0_395 = arith.constant 0 : index
    %857 = vector.load %arg39[%c1_393, %c0_394, %c0_395] : memref<2x128x32xf32, #tpu.memory_space<vmem>>, vector<1x128x32xf32>
    %858 = vector.shape_cast %857 : vector<1x128x32xf32> to vector<128x32xf32>
    %cst_396 = arith.constant dense<0.000000e+00> : vector<16x32xf32>
    %859 = tpu.matmul %856, %858, %cst_396 {dimension_numbers = #tpu.dot_dimension_numbers<[1], [0], [0], [1], [0, 0, 1, 1], [], []>} : vector<16x128xf32>, vector<128x32xf32>, vector<16x32xf32> -> vector<16x32xf32>
    %c1_397 = arith.constant 1 : index
    %c0_398 = arith.constant 0 : index
    %c0_399 = arith.constant 0 : index
    %860 = vector.load %arg40[%c1_397, %c0_398, %c0_399] : memref<2x1x32xf32, #tpu.memory_space<vmem>>, vector<1x1x32xf32>
    %861 = vector.shape_cast %860 : vector<1x1x32xf32> to vector<1x32xf32>
    %862 = vector.broadcast %861 : vector<1x32xf32> to vector<16x32xf32>
    %863 = arith.addf %859, %862 : vector<16x32xf32>
    %864 = arith.addf %847, %863 : vector<16x32xf32>
    %c1_400 = arith.constant 1 : index
    %c0_401 = arith.constant 0 : index
    %c0_402 = arith.constant 0 : index
    %865 = vector.load %arg41[%c1_400, %c0_401, %c0_402] : memref<2x1x32xf32, #tpu.memory_space<vmem>>, vector<1x1x32xf32>
    %866 = vector.shape_cast %865 : vector<1x1x32xf32> to vector<1x32xf32>
    %c1_403 = arith.constant 1 : index
    %c0_404 = arith.constant 0 : index
    %c0_405 = arith.constant 0 : index
    %867 = vector.load %arg42[%c1_403, %c0_404, %c0_405] : memref<2x1x32xf32, #tpu.memory_space<vmem>>, vector<1x1x32xf32>
    %868 = vector.shape_cast %867 : vector<1x1x32xf32> to vector<1x32xf32>
    %cst_406 = arith.constant dense<0.000000e+00> : vector<16xf32>
    %869 = vector.multi_reduction <add>, %864, %cst_406 [1] : vector<16x32xf32> to vector<16xf32>
    %870 = vector.shape_cast %869 : vector<16xf32> to vector<16x1xf32>
    %cst_407 = arith.constant 3.200000e+01 : f32
    %871 = vector.broadcast %cst_407 : f32 to vector<16x1xf32>
    %872 = arith.divf %870, %871 : vector<16x1xf32>
    %873 = vector.broadcast %872 : vector<16x1xf32> to vector<16x32xf32>
    %874 = arith.subf %864, %873 : vector<16x32xf32>
    %875 = arith.mulf %874, %874 : vector<16x32xf32>
    %cst_408 = arith.constant dense<0.000000e+00> : vector<16xf32>
    %876 = vector.multi_reduction <add>, %875, %cst_408 [1] : vector<16x32xf32> to vector<16xf32>
    %877 = vector.shape_cast %876 : vector<16xf32> to vector<16x1xf32>
    %cst_409 = arith.constant 3.200000e+01 : f32
    %878 = vector.broadcast %cst_409 : f32 to vector<16x1xf32>
    %879 = arith.divf %877, %878 : vector<16x1xf32>
    %cst_410 = arith.constant 9.99999974E-6 : f32
    %880 = vector.broadcast %cst_410 : f32 to vector<16x1xf32>
    %881 = arith.addf %879, %880 : vector<16x1xf32>
    %882 = math.rsqrt %881 : vector<16x1xf32>
    %883 = vector.broadcast %882 : vector<16x1xf32> to vector<16x32xf32>
    %884 = arith.mulf %874, %883 : vector<16x32xf32>
    %885 = vector.broadcast %866 : vector<1x32xf32> to vector<16x32xf32>
    %886 = arith.mulf %884, %885 : vector<16x32xf32>
    %887 = vector.broadcast %868 : vector<1x32xf32> to vector<16x32xf32>
    %888 = arith.addf %886, %887 : vector<16x32xf32>
    %c0_411 = arith.constant 0 : index
    %c0_412 = arith.constant 0 : index
    %889 = vector.load %arg43[%c0_411, %c0_412] : memref<32x16xf32, #tpu.memory_space<vmem>>, vector<32x16xf32>
    %cst_413 = arith.constant dense<0.000000e+00> : vector<16x16xf32>
    %890 = tpu.matmul %888, %889, %cst_413 {dimension_numbers = #tpu.dot_dimension_numbers<[1], [0], [0], [1], [0, 0, 1, 1], [], []>} : vector<16x32xf32>, vector<32x16xf32>, vector<16x16xf32> -> vector<16x16xf32>
    %c0_414 = arith.constant 0 : index
    %c0_415 = arith.constant 0 : index
    %891 = vector.load %arg44[%c0_414, %c0_415] : memref<1x16xf32, #tpu.memory_space<vmem>>, vector<1x16xf32>
    %892 = vector.broadcast %891 : vector<1x16xf32> to vector<16x16xf32>
    %893 = arith.addf %890, %892 : vector<16x16xf32>
    %c0_416 = arith.constant 0 : index
    %c0_417 = arith.constant 0 : index
    %894 = vector.load %arg45[%c0_416, %c0_417] : memref<16x16xf32, #tpu.memory_space<vmem>>, vector<16x16xf32>
    tpu.vector_store %arg45[%c0_416, %c0_417], %893 {strides = array<i32>} : memref<16x16xf32, #tpu.memory_space<vmem>>, vector<16x16xf32>,
    return
  }
}

</mosaic_0001>

<llo_original>
// kernel: seq2seq_transformer_forward.1
$region0: #{seq2seq_transformer_forward.1}
  #allocation0 [shape = 'u32[]', space=smem, size = 0x4, offset = 0x4, fixed_abs, tag = 'smem constant byte address 0x4 - core index']
  #allocation1 [shape = 'u32[72,128]{1,0:T(1,128)}', space=vmem, size = 0x9000, scoped, tag = 'internal scratch']
  %s0 = inlined_call_operand.smem [shape: u32[46], index: -1, kind: input, shape index: {}]
  %s1 = sld [smem:[%s0]]
  %s2 = scalar_lea.smem %s0, 1
  %s3 = sld [smem:[%s2]]
  %s4 = scalar_lea.smem %s0, 2
  %s5 = sld [smem:[%s4]]
  %s6 = scalar_lea.smem %s0, 3
  %s7 = sld [smem:[%s6]]
  %s8 = scalar_lea.smem %s0, 4
  %s9 = sld [smem:[%s8]]
  %s10 = scalar_lea.smem %s0, 5
  %s11 = sld [smem:[%s10]]
  %s12 = scalar_lea.smem %s0, 6
  %s13 = sld [smem:[%s12]]
  %s14 = scalar_lea.smem %s0, 7
  %s15 = sld [smem:[%s14]]
  %s16 = scalar_lea.smem %s0, 8
  %s17 = sld [smem:[%s16]]
  %s18 = scalar_lea.smem %s0, 9
  %s19 = sld [smem:[%s18]]
  %s20 = scalar_lea.smem %s0, 10
  %s21 = sld [smem:[%s20]]
  %s22 = scalar_lea.smem %s0, 11
  %s23 = sld [smem:[%s22]]
  %s24 = scalar_lea.smem %s0, 12
  %s25 = sld [smem:[%s24]]
  %s26 = scalar_lea.smem %s0, 13
  %s27 = sld [smem:[%s26]]
  %s28 = scalar_lea.smem %s0, 14
  %s29 = sld [smem:[%s28]]
  %s30 = scalar_lea.smem %s0, 15
  %s31 = sld [smem:[%s30]]
  %s32 = scalar_lea.smem %s0, 16
  %s33 = sld [smem:[%s32]]
  %s34 = scalar_lea.smem %s0, 17
  %s35 = sld [smem:[%s34]]
  %s36 = scalar_lea.smem %s0, 18
  %s37 = sld [smem:[%s36]]
  %s38 = scalar_lea.smem %s0, 19
  %s39 = sld [smem:[%s38]]
  %s40 = scalar_lea.smem %s0, 20
  %s41 = sld [smem:[%s40]]
  %s42 = scalar_lea.smem %s0, 21
  %s43 = sld [smem:[%s42]]
  %s44 = scalar_lea.smem %s0, 22
  %s45 = sld [smem:[%s44]]
  %s46 = scalar_lea.smem %s0, 23
  %s47 = sld [smem:[%s46]]
  %s48 = scalar_lea.smem %s0, 24
  %s49 = sld [smem:[%s48]]
  %s50 = scalar_lea.smem %s0, 25
  %s51 = sld [smem:[%s50]]
  %s52 = scalar_lea.smem %s0, 26
  %s53 = sld [smem:[%s52]]
  %s54 = scalar_lea.smem %s0, 27
  %s55 = sld [smem:[%s54]]
  %s56 = scalar_lea.smem %s0, 28
  %s57 = sld [smem:[%s56]]
  %s58 = scalar_lea.smem %s0, 29
  %s59 = sld [smem:[%s58]]
  %s60 = scalar_lea.smem %s0, 30
  %s61 = sld [smem:[%s60]]
  %s62 = scalar_lea.smem %s0, 31
  %s63 = sld [smem:[%s62]]
  %s64 = scalar_lea.smem %s0, 32
  %s65 = sld [smem:[%s64]]
  %s66 = scalar_lea.smem %s0, 33
  %s67 = sld [smem:[%s66]]
  %s68 = scalar_lea.smem %s0, 34
  %s69 = sld [smem:[%s68]]
  %s70 = scalar_lea.smem %s0, 35
  %s71 = sld [smem:[%s70]]
  %s72 = scalar_lea.smem %s0, 36
  %s73 = sld [smem:[%s72]]
  %s74 = scalar_lea.smem %s0, 37
  %s75 = sld [smem:[%s74]]
  %s76 = scalar_lea.smem %s0, 38
  %s77 = sld [smem:[%s76]]
  %s78 = scalar_lea.smem %s0, 39
  %s79 = sld [smem:[%s78]]
  %s80 = scalar_lea.smem %s0, 40
  %s81 = sld [smem:[%s80]]
  %s82 = scalar_lea.smem %s0, 41
  %s83 = sld [smem:[%s82]]
  %s84 = scalar_lea.smem %s0, 42
  %s85 = sld [smem:[%s84]]
  %s86 = scalar_lea.smem %s0, 43
  %s87 = sld [smem:[%s86]]
  %s88 = scalar_lea.smem %s0, 44
  %s89 = sld [smem:[%s88]]
  %s90 = scalar_lea.smem %s0, 45
  %s91 = sld [smem:[%s90]]
  %s92 = sld [smem:[#allocation0]]
  $region198: #{seq2seq_transformer_forward.1} parent=0
    _
  %s94 = ssub.s32 1, %s92
  %s95 = scalar_select 0, %s94, %s92
  $region1: #{seq2seq_transformer_forward.1} parent=0
    #allocation2 [shape = 'u8[512]{0}', space=vmem, size = 0x400, scoped, tag = 'input window, operand 22, single buffered']
    #allocation3 [shape = 's32[1]{0}', space=sflag, size = 0x4, scoped, tag = 'scoped memory for seq2seq_transformer_forward.1']
    #allocation4 [shape = 's32[1]{0}', space=sflag, size = 0x4, scoped, tag = 'scoped memory for seq2seq_transformer_forward.1']
    #allocation5 [shape = 'u8[512]{0}', space=vmem, size = 0x400, scoped, tag = 'input window, operand 44, single buffered']
    #allocation6 [shape = 's32[1]{0}', space=sflag, size = 0x4, scoped, tag = 'scoped memory for seq2seq_transformer_forward.1']
    #allocation7 [shape = 'u8[8192]{0}', space=vmem, size = 0x2000, scoped, tag = 'output window, operand 0, single buffered']
    %96 = vsyncpa [#allocation3], 0
    %97 = vsyncpa [#allocation6], 0
    %98 = vsyncpa [#allocation4], 0
    // Predicated region
    $region2: #{seq2seq_transformer_forward.1} parent=1 // pred_check
      _
    $region3: #{seq2seq_transformer_forward.1} parent=1 // pred_check_branch
      %100 = sbr.rel (0) target = $region5
    $region4: #{seq2seq_transformer_forward.1} parent=1 // pred_region
      _
    $region5: #{seq2seq_transformer_forward.1} parent=1 // pred_fallthru
      _
    // Predicated region
    $region6: #{seq2seq_transformer_forward.1} parent=1 // pred_check
      _
    $region7: #{seq2seq_transformer_forward.1} parent=1 // pred_check_branch
      %102 = sbr.rel (0) target = $region9
    $region8: #{seq2seq_transformer_forward.1} parent=1 // pred_region
      _
    $region9: #{seq2seq_transformer_forward.1} parent=1 // pred_fallthru
      _
    // Predicated region
    $region10: #{seq2seq_transformer_forward.1} parent=1 // pred_check
      _
    $region11: #{seq2seq_transformer_forward.1} parent=1 // pred_check_branch
      %104 = sbr.rel (0) target = $region13
    $region12: #{seq2seq_transformer_forward.1} parent=1 // pred_region
      _
    $region13: #{seq2seq_transformer_forward.1} parent=1 // pred_fallthru
      _
    // Predicated region
    $region14: #{seq2seq_transformer_forward.1} parent=1 // pred_check
      _
    $region15: #{seq2seq_transformer_forward.1} parent=1 // pred_check_branch
      %106 = sbr.rel (0) target = $region17
    $region16: #{seq2seq_transformer_forward.1} parent=1 // pred_region
      _
    $region17: #{seq2seq_transformer_forward.1} parent=1 // pred_fallthru
      _
    // Predicated region
    $region18: #{seq2seq_transformer_forward.1} parent=1 // pred_check
      _
    $region19: #{seq2seq_transformer_forward.1} parent=1 // pred_check_branch
      %108 = sbr.rel (0) target = $region21
    $region20: #{seq2seq_transformer_forward.1} parent=1 // pred_region
      _
    $region21: #{seq2seq_transformer_forward.1} parent=1 // pred_fallthru
      _
    // Predicated region
    $region22: #{seq2seq_transformer_forward.1} parent=1 // pred_check
      _
    $region23: #{seq2seq_transformer_forward.1} parent=1 // pred_check_branch
      %110 = sbr.rel (0) target = $region25
    $region24: #{seq2seq_transformer_forward.1} parent=1 // pred_region
      _
    $region25: #{seq2seq_transformer_forward.1} parent=1 // pred_fallthru
      _
    // Predicated region
    $region26: #{seq2seq_transformer_forward.1} parent=1 // pred_check
      _
    $region27: #{seq2seq_transformer_forward.1} parent=1 // pred_check_branch
      %112 = sbr.rel (0) target = $region29
    $region28: #{seq2seq_transformer_forward.1} parent=1 // pred_region
      _
    $region29: #{seq2seq_transformer_forward.1} parent=1 // pred_fallthru
      _
    // Predicated region
    $region30: #{seq2seq_transformer_forward.1} parent=1 // pred_check
      _
    $region31: #{seq2seq_transformer_forward.1} parent=1 // pred_check_branch
      %114 = sbr.rel (0) target = $region33
    $region32: #{seq2seq_transformer_forward.1} parent=1 // pred_region
      _
    $region33: #{seq2seq_transformer_forward.1} parent=1 // pred_fallthru
      _
    // Predicated region
    $region34: #{seq2seq_transformer_forward.1} parent=1 // pred_check
      _
    $region35: #{seq2seq_transformer_forward.1} parent=1 // pred_check_branch
      %116 = sbr.rel (0) target = $region37
    $region36: #{seq2seq_transformer_forward.1} parent=1 // pred_region
      _
    $region37: #{seq2seq_transformer_forward.1} parent=1 // pred_fallthru
      _
    // Predicated region
    $region38: #{seq2seq_transformer_forward.1} parent=1 // pred_check
      _
    $region39: #{seq2seq_transformer_forward.1} parent=1 // pred_check_branch
      %118 = sbr.rel (0) target = $region41
    $region40: #{seq2seq_transformer_forward.1} parent=1 // pred_region
      _
    $region41: #{seq2seq_transformer_forward.1} parent=1 // pred_fallthru
      _
    // Predicated region
    $region42: #{seq2seq_transformer_forward.1} parent=1 // pred_check
      _
    $region43: #{seq2seq_transformer_forward.1} parent=1 // pred_check_branch
      %120 = sbr.rel (0) target = $region45
    $region44: #{seq2seq_transformer_forward.1} parent=1 // pred_region
      _
    $region45: #{seq2seq_transformer_forward.1} parent=1 // pred_fallthru
      _
    // Predicated region
    $region46: #{seq2seq_transformer_forward.1} parent=1 // pred_check
      _
    $region47: #{seq2seq_transformer_forward.1} parent=1 // pred_check_branch
      %122 = sbr.rel (0) target = $region49
    $region48: #{seq2seq_transformer_forward.1} parent=1 // pred_region
      _
    $region49: #{seq2seq_transformer_forward.1} parent=1 // pred_fallthru
      _
    // Predicated region
    $region50: #{seq2seq_transformer_forward.1} parent=1 // pred_check
      _
    $region51: #{seq2seq_transformer_forward.1} parent=1 // pred_check_branch
      %124 = sbr.rel (0) target = $region53
    $region52: #{seq2seq_transformer_forward.1} parent=1 // pred_region
      _
    $region53: #{seq2seq_transformer_forward.1} parent=1 // pred_fallthru
      _
    // Predicated region
    $region54: #{seq2seq_transformer_forward.1} parent=1 // pred_check
      _
    $region55: #{seq2seq_transformer_forward.1} parent=1 // pred_check_branch
      %126 = sbr.rel (0) target = $region57
    $region56: #{seq2seq_transformer_forward.1} parent=1 // pred_region
      _
    $region57: #{seq2seq_transformer_forward.1} parent=1 // pred_fallthru
      _
    // Predicated region
    $region58: #{seq2seq_transformer_forward.1} parent=1 // pred_check
      _
    $region59: #{seq2seq_transformer_forward.1} parent=1 // pred_check_branch
      %128 = sbr.rel (0) target = $region61
    $region60: #{seq2seq_transformer_forward.1} parent=1 // pred_region
      _
    $region61: #{seq2seq_transformer_forward.1} parent=1 // pred_fallthru
      _
    // Predicated region
    $region62: #{seq2seq_transformer_forward.1} parent=1 // pred_check
      _
    $region63: #{seq2seq_transformer_forward.1} parent=1 // pred_check_branch
      %130 = sbr.rel (0) target = $region65
    $region64: #{seq2seq_transformer_forward.1} parent=1 // pred_region
      _
    $region65: #{seq2seq_transformer_forward.1} parent=1 // pred_fallthru
      _
    // Predicated region
    $region66: #{seq2seq_transformer_forward.1} parent=1 // pred_check
      _
    $region67: #{seq2seq_transformer_forward.1} parent=1 // pred_check_branch
      %132 = sbr.rel (0) target = $region69
    $region68: #{seq2seq_transformer_forward.1} parent=1 // pred_region
      _
    $region69: #{seq2seq_transformer_forward.1} parent=1 // pred_fallthru
      _
    // Predicated region
    $region70: #{seq2seq_transformer_forward.1} parent=1 // pred_check
      _
    $region71: #{seq2seq_transformer_forward.1} parent=1 // pred_check_branch
      %134 = sbr.rel (0) target = $region73
    $region72: #{seq2seq_transformer_forward.1} parent=1 // pred_region
      _
    $region73: #{seq2seq_transformer_forward.1} parent=1 // pred_fallthru
      _
    // Predicated region
    $region74: #{seq2seq_transformer_forward.1} parent=1 // pred_check
      _
    $region75: #{seq2seq_transformer_forward.1} parent=1 // pred_check_branch
      %136 = sbr.rel (0) target = $region77
    $region76: #{seq2seq_transformer_forward.1} parent=1 // pred_region
      _
    $region77: #{seq2seq_transformer_forward.1} parent=1 // pred_fallthru
      _
    // Predicated region
    $region78: #{seq2seq_transformer_forward.1} parent=1 // pred_check
      _
    $region79: #{seq2seq_transformer_forward.1} parent=1 // pred_check_branch
      %138 = sbr.rel (0) target = $region81
    $region80: #{seq2seq_transformer_forward.1} parent=1 // pred_region
      _
    $region81: #{seq2seq_transformer_forward.1} parent=1 // pred_fallthru
      _
    // Predicated region
    $region82: #{seq2seq_transformer_forward.1} parent=1 // pred_check
      _
    $region83: #{seq2seq_transformer_forward.1} parent=1 // pred_check_branch
      %140 = sbr.rel (0) target = $region85
    $region84: #{seq2seq_transformer_forward.1} parent=1 // pred_region
      _
    $region85: #{seq2seq_transformer_forward.1} parent=1 // pred_fallthru
      _
    // Predicated region
    $region86: #{seq2seq_transformer_forward.1} parent=1 // pred_check
      _
    $region87: #{seq2seq_transformer_forward.1} parent=1 // pred_check_branch
      %142 = sbr.rel (0) target = $region89
    $region88: #{seq2seq_transformer_forward.1} parent=1 // pred_region
      _
    $region89: #{seq2seq_transformer_forward.1} parent=1 // pred_fallthru
      _
    // Predicated region
    $region90: #{seq2seq_transformer_forward.1} parent=1 // pred_check
      _
    $region91: #{seq2seq_transformer_forward.1} parent=1 // pred_check_branch
      %144 = sbr.rel (0) target = $region93
    $region92: #{seq2seq_transformer_forward.1} parent=1 // pred_region
      %146 = vsyncadd [#allocation3], 0
      %s148 = sshll.u32 %s45, 4
      %s149 = int_to_ptr.hbm [resolvable:$true] %s148
      %s150 = sshll.u32 [#allocation2], 4
      %s151 = int_to_ptr.vmem [resolvable:$true] %s150
      %153 = dma.hbm_to_vmem [thread:$0]  %s149, 16, %s151, [#allocation3]
    $region93: #{seq2seq_transformer_forward.1} parent=1 // pred_fallthru
      _
    // Predicated region
    $region94: #{seq2seq_transformer_forward.1} parent=1 // pred_check
      _
    $region95: #{seq2seq_transformer_forward.1} parent=1 // pred_check_branch
      %155 = sbr.rel (0) target = $region97
    $region96: #{seq2seq_transformer_forward.1} parent=1 // pred_region
      _
    $region97: #{seq2seq_transformer_forward.1} parent=1 // pred_fallthru
      _
    // Predicated region
    $region98: #{seq2seq_transformer_forward.1} parent=1 // pred_check
      _
    $region99: #{seq2seq_transformer_forward.1} parent=1 // pred_check_branch
      %157 = sbr.rel (0) target = $region101
    $region100: #{seq2seq_transformer_forward.1} parent=1 // pred_region
      _
    $region101: #{seq2seq_transformer_forward.1} parent=1 // pred_fallthru
      _
    // Predicated region
    $region102: #{seq2seq_transformer_forward.1} parent=1 // pred_check
      _
    $region103: #{seq2seq_transformer_forward.1} parent=1 // pred_check_branch
      %159 = sbr.rel (0) target = $region105
    $region104: #{seq2seq_transformer_forward.1} parent=1 // pred_region
      _
    $region105: #{seq2seq_transformer_forward.1} parent=1 // pred_fallthru
      _
    // Predicated region
    $region106: #{seq2seq_transformer_forward.1} parent=1 // pred_check
      _
    $region107: #{seq2seq_transformer_forward.1} parent=1 // pred_check_branch
      %161 = sbr.rel (0) target = $region109
    $region108: #{seq2seq_transformer_forward.1} parent=1 // pred_region
      _
    $region109: #{seq2seq_transformer_forward.1} parent=1 // pred_fallthru
      _
    // Predicated region
    $region110: #{seq2seq_transformer_forward.1} parent=1 // pred_check
      _
    $region111: #{seq2seq_transformer_forward.1} parent=1 // pred_check_branch
      %163 = sbr.rel (0) target = $region113
    $region112: #{seq2seq_transformer_forward.1} parent=1 // pred_region
      _
    $region113: #{seq2seq_transformer_forward.1} parent=1 // pred_fallthru
      _
    // Predicated region
    $region114: #{seq2seq_transformer_forward.1} parent=1 // pred_check
      _
    $region115: #{seq2seq_transformer_forward.1} parent=1 // pred_check_branch
      %165 = sbr.rel (0) target = $region117
    $region116: #{seq2seq_transformer_forward.1} parent=1 // pred_region
      _
    $region117: #{seq2seq_transformer_forward.1} parent=1 // pred_fallthru
      _
    // Predicated region
    $region118: #{seq2seq_transformer_forward.1} parent=1 // pred_check
      _
    $region119: #{seq2seq_transformer_forward.1} parent=1 // pred_check_branch
      %167 = sbr.rel (0) target = $region121
    $region120: #{seq2seq_transformer_forward.1} parent=1 // pred_region
      _
    $region121: #{seq2seq_transformer_forward.1} parent=1 // pred_fallthru
      _
    // Predicated region
    $region122: #{seq2seq_transformer_forward.1} parent=1 // pred_check
      _
    $region123: #{seq2seq_transformer_forward.1} parent=1 // pred_check_branch
      %169 = sbr.rel (0) target = $region125
    $region124: #{seq2seq_transformer_forward.1} parent=1 // pred_region
      _
    $region125: #{seq2seq_transformer_forward.1} parent=1 // pred_fallthru
      _
    // Predicated region
    $region126: #{seq2seq_transformer_forward.1} parent=1 // pred_check
      _
    $region127: #{seq2seq_transformer_forward.1} parent=1 // pred_check_branch
      %171 = sbr.rel (0) target = $region129
    $region128: #{seq2seq_transformer_forward.1} parent=1 // pred_region
      _
    $region129: #{seq2seq_transformer_forward.1} parent=1 // pred_fallthru
      _
    // Predicated region
    $region130: #{seq2seq_transformer_forward.1} parent=1 // pred_check
      _
    $region131: #{seq2seq_transformer_forward.1} parent=1 // pred_check_branch
      %173 = sbr.rel (0) target = $region133
    $region132: #{seq2seq_transformer_forward.1} parent=1 // pred_region
      _
    $region133: #{seq2seq_transformer_forward.1} parent=1 // pred_fallthru
      _
    // Predicated region
    $region134: #{seq2seq_transformer_forward.1} parent=1 // pred_check
      _
    $region135: #{seq2seq_transformer_forward.1} parent=1 // pred_check_branch
      %175 = sbr.rel (0) target = $region137
    $region136: #{seq2seq_transformer_forward.1} parent=1 // pred_region
      _
    $region137: #{seq2seq_transformer_forward.1} parent=1 // pred_fallthru
      _
    // Predicated region
    $region138: #{seq2seq_transformer_forward.1} parent=1 // pred_check
      _
    $region139: #{seq2seq_transformer_forward.1} parent=1 // pred_check_branch
      %177 = sbr.rel (0) target = $region141
    $region140: #{seq2seq_transformer_forward.1} parent=1 // pred_region
      _
    $region141: #{seq2seq_transformer_forward.1} parent=1 // pred_fallthru
      _
    // Predicated region
    $region142: #{seq2seq_transformer_forward.1} parent=1 // pred_check
      _
    $region143: #{seq2seq_transformer_forward.1} parent=1 // pred_check_branch
      %179 = sbr.rel (0) target = $region145
    $region144: #{seq2seq_transformer_forward.1} parent=1 // pred_region
      _
    $region145: #{seq2seq_transformer_forward.1} parent=1 // pred_fallthru
      _
    // Predicated region
    $region146: #{seq2seq_transformer_forward.1} parent=1 // pred_check
      _
    $region147: #{seq2seq_transformer_forward.1} parent=1 // pred_check_branch
      %181 = sbr.rel (0) target = $region149
    $region148: #{seq2seq_transformer_forward.1} parent=1 // pred_region
      _
    $region149: #{seq2seq_transformer_forward.1} parent=1 // pred_fallthru
      _
    // Predicated region
    $region150: #{seq2seq_transformer_forward.1} parent=1 // pred_check
      _
    $region151: #{seq2seq_transformer_forward.1} parent=1 // pred_check_branch
      %183 = sbr.rel (0) target = $region153
    $region152: #{seq2seq_transformer_forward.1} parent=1 // pred_region
      _
    $region153: #{seq2seq_transformer_forward.1} parent=1 // pred_fallthru
      _
    // Predicated region
    $region154: #{seq2seq_transformer_forward.1} parent=1 // pred_check
      _
    $region155: #{seq2seq_transformer_forward.1} parent=1 // pred_check_branch
      %185 = sbr.rel (0) target = $region157
    $region156: #{seq2seq_transformer_forward.1} parent=1 // pred_region
      _
    $region157: #{seq2seq_transformer_forward.1} parent=1 // pred_fallthru
      _
    // Predicated region
    $region158: #{seq2seq_transformer_forward.1} parent=1 // pred_check
      _
    $region159: #{seq2seq_transformer_forward.1} parent=1 // pred_check_branch
      %187 = sbr.rel (0) target = $region161
    $region160: #{seq2seq_transformer_forward.1} parent=1 // pred_region
      _
    $region161: #{seq2seq_transformer_forward.1} parent=1 // pred_fallthru
      _
    // Predicated region
    $region162: #{seq2seq_transformer_forward.1} parent=1 // pred_check
      _
    $region163: #{seq2seq_transformer_forward.1} parent=1 // pred_check_branch
      %189 = sbr.rel (0) target = $region165
    $region164: #{seq2seq_transformer_forward.1} parent=1 // pred_region
      _
    $region165: #{seq2seq_transformer_forward.1} parent=1 // pred_fallthru
      _
    // Predicated region
    $region166: #{seq2seq_transformer_forward.1} parent=1 // pred_check
      _
    $region167: #{seq2seq_transformer_forward.1} parent=1 // pred_check_branch
      %191 = sbr.rel (0) target = $region169
    $region168: #{seq2seq_transformer_forward.1} parent=1 // pred_region
      _
    $region169: #{seq2seq_transformer_forward.1} parent=1 // pred_fallthru
      _
    // Predicated region
    $region170: #{seq2seq_transformer_forward.1} parent=1 // pred_check
      _
    $region171: #{seq2seq_transformer_forward.1} parent=1 // pred_check_branch
      %193 = sbr.rel (0) target = $region173
    $region172: #{seq2seq_transformer_forward.1} parent=1 // pred_region
      _
    $region173: #{seq2seq_transformer_forward.1} parent=1 // pred_fallthru
      _
    // Predicated region
    $region174: #{seq2seq_transformer_forward.1} parent=1 // pred_check
      _
    $region175: #{seq2seq_transformer_forward.1} parent=1 // pred_check_branch
      %195 = sbr.rel (0) target = $region177
    $region176: #{seq2seq_transformer_forward.1} parent=1 // pred_region
      _
    $region177: #{seq2seq_transformer_forward.1} parent=1 // pred_fallthru
      _
    // Predicated region
    $region178: #{seq2seq_transformer_forward.1} parent=1 // pred_check
      _
    $region179: #{seq2seq_transformer_forward.1} parent=1 // pred_check_branch
      %197 = sbr.rel (0) target = $region181
    $region180: #{seq2seq_transformer_forward.1} parent=1 // pred_region
      %199 = vsyncadd [#allocation6], 0
      %s201 = sshll.u32 %s89, 4
      %s202 = int_to_ptr.hbm [resolvable:$true] %s201
      %s203 = sshll.u32 [#allocation5], 4
      %s204 = int_to_ptr.vmem [resolvable:$true] %s203
      %206 = dma.hbm_to_vmem [thread:$0]  %s202, 16, %s204, [#allocation6]
    $region181: #{seq2seq_transformer_forward.1} parent=1 // pred_fallthru
      _
    // Predicated region
    $region182: #{seq2seq_transformer_forward.1} parent=1 // pred_check
      _
    $region183: #{seq2seq_transformer_forward.1} parent=1 // pred_check_branch
      %208 = sbr.rel (0) target = $region185
    $region184: #{seq2seq_transformer_forward.1} parent=1 // pred_region
      %210 = dma.done [#allocation3], 16
    $region185: #{seq2seq_transformer_forward.1} parent=1 // pred_fallthru
      _
    // Predicated region
    $region186: #{seq2seq_transformer_forward.1} parent=1 // pred_check
      _
    $region187: #{seq2seq_transformer_forward.1} parent=1 // pred_check_branch
      %212 = sbr.rel (0) target = $region189
    $region188: #{seq2seq_transformer_forward.1} parent=1 // pred_region
      %214 = dma.done [#allocation6], 16
    $region189: #{seq2seq_transformer_forward.1} parent=1 // pred_fallthru
      _
    %v215 = vld [vmem:[%s9] sm:$0xff]
    %v216 = vld [vmem:[%s9 + $0x8] sm:$0xff]
    %v217 = vld [vmem:[%s11] sm:$0xff]
    %v218 = vld [vmem:[%s11 + $0x8] sm:$0xff]
    %v219 = vld [vmem:[%s13] sm:$0xff]
    %v220 = vld [vmem:[%s13 + $0x8] sm:$0xff]
    %v221 = vld [vmem:[%s1] sm:$0xff]
    %v222 = vld [vmem:[%s1 + $0x8] sm:$0xff]
    %v223 = vld [vmem:[%s15] sm:$0xff]
    %v224 = vld [vmem:[%s15 + $0x8] sm:$0xff]
    %v225 = vld [vmem:[%s17] sm:$0x1]
    %v227 = vperm.slane %v225, 0
    %vm229 = vcmask 130048
    %v231 = vsel %vm229, %v221, 0
    %v234 = vsel %vm229, %v222, 0
    %236 = vmatpush.msra.mxu0 0.0
    %237 = vmatpush.msra.mxu0 0.0
    %238 = vmatpush.msra.mxu0 0.0
    %239 = vmatpush.msra.mxu0 0.0
    %240 = vmatpush.msra.mxu0 0.0
    %241 = vmatpush.msra.mxu0 0.0
    %242 = vmatpush.msra.mxu0 0.0
    %243 = vmatpush.msra.mxu0 0.0
    %244 = vmatpush.msra.mxu0 0.0
    %245 = vmatpush.msra.mxu0 0.0
    %246 = vmatpush.msra.mxu0 0.0
    %247 = vmatpush.msra.mxu0 0.0
    %248 = vmatpush.msra.mxu0 0.0
    %249 = vmatpush.msra.mxu0 0.0
    %250 = vmatpush.msra.mxu0 %v224
    %251 = vmatpush.msra.mxu0 %v223
    %252 = vmatmul.f32.gmra.mxu0 %v231
    %v253 = vpop.f32.mrf.mxu0
    %v254 = vadd.f32 %v227, %v253
    %255 = vmatmul.f32.gmra.mxu0 %v234
    %v256 = vpop.f32.mrf.mxu0
    %v257 = vadd.f32 %v227, %v256
    %258 = vdwg.mxu0
    %v259 = vmul.f32 %v254, 5.656854
    %v260 = vmul.f32 %v257, 5.656854
    %v261 = vld [vmem:[%s5] sm:$0xff]
    %v262 = vld [vmem:[%s5 + $0x8] sm:$0xff]
    %v263 = vadd.f32 %v259, %v261
    %v264 = vadd.f32 %v260, %v262
    %v265 = vld [vmem:[%s19] sm:$0xff]
    %v266 = vld [vmem:[%s19 + $0x8] sm:$0xff]
    %v267 = vld [vmem:[%s19 + $0x10] sm:$0xff]
    %v268 = vld [vmem:[%s19 + $0x18] sm:$0xff]
    %v269 = vld [vmem:[%s21] sm:$0x1]
    %v271 = vperm.slane %v269, 0
    %vm273 = vcmask 261120
    %v275 = vsel %vm273, %v263, 0
    %v278 = vsel %vm273, %v264, 0
    %280 = vmatpush.msra.mxu0 0.0
    %281 = vmatpush.msra.mxu0 0.0
    %282 = vmatpush.msra.mxu0 0.0
    %283 = vmatpush.msra.mxu0 0.0
    %284 = vmatpush.msra.mxu0 0.0
    %285 = vmatpush.msra.mxu0 0.0
    %286 = vmatpush.msra.mxu0 0.0
    %287 = vmatpush.msra.mxu0 0.0
    %288 = vmatpush.msra.mxu0 0.0
    %289 = vmatpush.msra.mxu0 0.0
    %290 = vmatpush.msra.mxu0 0.0
    %291 = vmatpush.msra.mxu0 0.0
    %292 = vmatpush.msra.mxu0 %v268
    %293 = vmatpush.msra.mxu0 %v267
    %294 = vmatpush.msra.mxu0 %v266
    %295 = vmatpush.msra.mxu0 %v265
    %296 = vmatmul.f32.gmra.mxu0 %v275
    %v297 = vpop.f32.mrf.mxu0
    %v298 = vadd.f32 %v271, %v297
    %299 = vmatmul.f32.gmra.mxu0 %v278
    %v300 = vpop.f32.mrf.mxu0
    %v301 = vadd.f32 %v271, %v300
    %302 = vdwg.mxu0
    %305 = vrot.lane.b32.xlu0 %v298, 96
    %v306 = vpop.permute.xlu0 %305
    %307 = vrot.lane.b32.xlu0 %v301, 96
    %v308 = vpop.permute.xlu0 %307
    %vm309 = vcmask 64512
    %v310 = vsel %vm309, %v298, 0
    %v312 = vsel %vm309, %v301, 0
    %v314 = vsel %vm309, %v306, 0
    %v316 = vsel %vm309, %v308, 0
    %318 = vmatpush.xpose.msra.mxu0 0.0
    %319 = vmatpush.xpose.msra.mxu0 0.0
    %320 = vmatpush.xpose.msra.mxu0 0.0
    %321 = vmatpush.xpose.msra.mxu0 0.0
    %322 = vmatpush.xpose.msra.mxu0 0.0
    %323 = vmatpush.xpose.msra.mxu0 0.0
    %324 = vmatpush.xpose.msra.mxu0 0.0
    %325 = vmatpush.xpose.msra.mxu0 0.0
    %326 = vmatpush.xpose.msra.mxu0 0.0
    %327 = vmatpush.xpose.msra.mxu0 0.0
    %328 = vmatpush.xpose.msra.mxu0 0.0
    %329 = vmatpush.xpose.msra.mxu0 0.0
    %330 = vmatpush.xpose.msra.mxu0 0.0
    %331 = vmatpush.xpose.msra.mxu0 0.0
    %332 = vmatpush.xpose.msra.mxu0 %v316
    %333 = vmatpush.xpose.msra.mxu0 %v314
    %334 = vmatmul.f32.gmra.mxu0 %v310
    %v335 = vpop.f32.mrf.mxu0
    %v336 = vadd.f32 0.0, %v335
    %337 = vmatmul.f32.gmra.mxu0 %v312
    %v338 = vpop.f32.mrf.mxu0
    %v339 = vadd.f32 0.0, %v338
    %340 = vdwg.mxu0
    %v341 = vmul.f32 %v336, 0.35355338
    %v342 = vmul.f32 %v339, 0.35355338
    %v343 = vadd.f32 %v341, %v215
    %v344 = vadd.f32 %v342, %v216
    %v345 = vsel %vm229, %v343, -inf
    %346 = vmax.xlane.f32.xlu0 %v345
    %v347 = vpop.xlane.xlu0 %346
    %v348 = vsel %vm229, %v344, -inf
    %349 = vmax.xlane.f32.xlu0 %v348
    %v350 = vpop.xlane.xlu0 %349
    %v351 = vsub.f32 %v343, %v347
    %v352 = vsub.f32 %v344, %v350
    %v353 = vmul.f32 %v351, 1.442695
    %v354 = vpow.pop %v353
    %v355 = vmul.f32 %v352, 1.442695
    %v356 = vpow.pop %v355
    %v357 = vsel %vm229, %v354, 0.0
    %358 = vadd.xlane.f32.xlu0 %v357
    %v359 = vpop.xlane.xlu0 %358
    %v360 = vsel %vm229, %v356, 0.0
    %361 = vadd.xlane.f32.xlu0 %v360
    %v362 = vpop.xlane.xlu0 %361
    %v363 = vrcp.pop %v359
    %v364 = vrcp.pop %v362
    %v365 = vmul.f32 %v354, %v363
    %v366 = vmul.f32 %v356, %v364
    %367 = vrot.lane.b32.xlu0 %v298, 64
    %v368 = vpop.permute.xlu0 %367
    %369 = vrot.lane.b32.xlu0 %v301, 64
    %v370 = vpop.permute.xlu0 %369
    %v374 = vsel %vm229, %v365, 0
    %v377 = vsel %vm229, %v366, 0
    %379 = vmatpush.msra.mxu0 0.0
    %380 = vmatpush.msra.mxu0 0.0
    %381 = vmatpush.msra.mxu0 0.0
    %382 = vmatpush.msra.mxu0 0.0
    %383 = vmatpush.msra.mxu0 0.0
    %384 = vmatpush.msra.mxu0 0.0
    %385 = vmatpush.msra.mxu0 0.0
    %386 = vmatpush.msra.mxu0 0.0
    %387 = vmatpush.msra.mxu0 0.0
    %388 = vmatpush.msra.mxu0 0.0
    %389 = vmatpush.msra.mxu0 0.0
    %390 = vmatpush.msra.mxu0 0.0
    %391 = vmatpush.msra.mxu0 0.0
    %392 = vmatpush.msra.mxu0 0.0
    %393 = vmatpush.msra.mxu0 %v370
    %394 = vmatpush.msra.mxu0 %v368
    %395 = vmatmul.f32.gmra.mxu0 %v374
    %v396 = vpop.f32.mrf.mxu0
    %v397 = vadd.f32 0.0, %v396
    %398 = vmatmul.f32.gmra.mxu0 %v377
    %v399 = vpop.f32.mrf.mxu0
    %v400 = vadd.f32 0.0, %v399
    %401 = vdwg.mxu0
    %402 = vrot.lane.b32.xlu0 %v298, 120
    %v403 = vpop.permute.xlu0 %402
    %404 = vrot.lane.b32.xlu0 %v301, 120
    %v405 = vpop.permute.xlu0 %404
    %406 = vrot.lane.b32.xlu0 %v298, 88
    %v407 = vpop.permute.xlu0 %406
    %408 = vrot.lane.b32.xlu0 %v301, 88
    %v409 = vpop.permute.xlu0 %408
    %v410 = vsel %vm309, %v403, 0
    %v412 = vsel %vm309, %v405, 0
    %v414 = vsel %vm309, %v407, 0
    %v416 = vsel %vm309, %v409, 0
    %418 = vmatpush.xpose.msra.mxu0 0.0
    %419 = vmatpush.xpose.msra.mxu0 0.0
    %420 = vmatpush.xpose.msra.mxu0 0.0
    %421 = vmatpush.xpose.msra.mxu0 0.0
    %422 = vmatpush.xpose.msra.mxu0 0.0
    %423 = vmatpush.xpose.msra.mxu0 0.0
    %424 = vmatpush.xpose.msra.mxu0 0.0
    %425 = vmatpush.xpose.msra.mxu0 0.0
    %426 = vmatpush.xpose.msra.mxu0 0.0
    %427 = vmatpush.xpose.msra.mxu0 0.0
    %428 = vmatpush.xpose.msra.mxu0 0.0
    %429 = vmatpush.xpose.msra.mxu0 0.0
    %430 = vmatpush.xpose.msra.mxu0 0.0
    %431 = vmatpush.xpose.msra.mxu0 0.0
    %432 = vmatpush.xpose.msra.mxu0 %v416
    %433 = vmatpush.xpose.msra.mxu0 %v414
    %434 = vmatmul.f32.gmra.mxu0 %v410
    %v435 = vpop.f32.mrf.mxu0
    %v436 = vadd.f32 0.0, %v435
    %437 = vmatmul.f32.gmra.mxu0 %v412
    %v438 = vpop.f32.mrf.mxu0
    %v439 = vadd.f32 0.0, %v438
    %440 = vdwg.mxu0
    %v441 = vmul.f32 %v436, 0.35355338
    %v442 = vmul.f32 %v439, 0.35355338
    %v443 = vadd.f32 %v441, %v215
    %v444 = vadd.f32 %v442, %v216
    %v445 = vsel %vm229, %v443, -inf
    %446 = vmax.xlane.f32.xlu0 %v445
    %v447 = vpop.xlane.xlu0 %446
    %v448 = vsel %vm229, %v444, -inf
    %449 = vmax.xlane.f32.xlu0 %v448
    %v450 = vpop.xlane.xlu0 %449
    %v451 = vsub.f32 %v443, %v447
    %v452 = vsub.f32 %v444, %v450
    %v453 = vmul.f32 %v451, 1.442695
    %v454 = vpow.pop %v453
    %v455 = vmul.f32 %v452, 1.442695
    %v456 = vpow.pop %v455
    %v457 = vsel %vm229, %v454, 0.0
    %458 = vadd.xlane.f32.xlu0 %v457
    %v459 = vpop.xlane.xlu0 %458
    %v460 = vsel %vm229, %v456, 0.0
    %461 = vadd.xlane.f32.xlu0 %v460
    %v462 = vpop.xlane.xlu0 %461
    %v463 = vrcp.pop %v459
    %v464 = vrcp.pop %v462
    %v465 = vmul.f32 %v454, %v463
    %v466 = vmul.f32 %v456, %v464
    %467 = vrot.lane.b32.xlu0 %v298, 56
    %v468 = vpop.permute.xlu0 %467
    %469 = vrot.lane.b32.xlu0 %v301, 56
    %v470 = vpop.permute.xlu0 %469
    %v474 = vsel %vm229, %v465, 0
    %v477 = vsel %vm229, %v466, 0
    %479 = vmatpush.msra.mxu0 0.0
    %480 = vmatpush.msra.mxu0 0.0
    %481 = vmatpush.msra.mxu0 0.0
    %482 = vmatpush.msra.mxu0 0.0
    %483 = vmatpush.msra.mxu0 0.0
    %484 = vmatpush.msra.mxu0 0.0
    %485 = vmatpush.msra.mxu0 0.0
    %486 = vmatpush.msra.mxu0 0.0
    %487 = vmatpush.msra.mxu0 0.0
    %488 = vmatpush.msra.mxu0 0.0
    %489 = vmatpush.msra.mxu0 0.0
    %490 = vmatpush.msra.mxu0 0.0
    %491 = vmatpush.msra.mxu0 0.0
    %492 = vmatpush.msra.mxu0 0.0
    %493 = vmatpush.msra.mxu0 %v470
    %494 = vmatpush.msra.mxu0 %v468
    %495 = vmatmul.f32.gmra.mxu0 %v474
    %v496 = vpop.f32.mrf.mxu0
    %v497 = vadd.f32 0.0, %v496
    %498 = vmatmul.f32.gmra.mxu0 %v477
    %v499 = vpop.f32.mrf.mxu0
    %v500 = vadd.f32 0.0, %v499
    %501 = vdwg.mxu0
    %502 = vrot.lane.b32.xlu0 %v298, 112
    %v503 = vpop.permute.xlu0 %502
    %504 = vrot.lane.b32.xlu0 %v301, 112
    %v505 = vpop.permute.xlu0 %504
    %506 = vrot.lane.b32.xlu0 %v298, 80
    %v507 = vpop.permute.xlu0 %506
    %508 = vrot.lane.b32.xlu0 %v301, 80
    %v509 = vpop.permute.xlu0 %508
    %v510 = vsel %vm309, %v503, 0
    %v512 = vsel %vm309, %v505, 0
    %v514 = vsel %vm309, %v507, 0
    %v516 = vsel %vm309, %v509, 0
    %518 = vmatpush.xpose.msra.mxu0 0.0
    %519 = vmatpush.xpose.msra.mxu0 0.0
    %520 = vmatpush.xpose.msra.mxu0 0.0
    %521 = vmatpush.xpose.msra.mxu0 0.0
    %522 = vmatpush.xpose.msra.mxu0 0.0
    %523 = vmatpush.xpose.msra.mxu0 0.0
    %524 = vmatpush.xpose.msra.mxu0 0.0
    %525 = vmatpush.xpose.msra.mxu0 0.0
    %526 = vmatpush.xpose.msra.mxu0 0.0
    %527 = vmatpush.xpose.msra.mxu0 0.0
    %528 = vmatpush.xpose.msra.mxu0 0.0
    %529 = vmatpush.xpose.msra.mxu0 0.0
    %530 = vmatpush.xpose.msra.mxu0 0.0
    %531 = vmatpush.xpose.msra.mxu0 0.0
    %532 = vmatpush.xpose.msra.mxu0 %v516
    %533 = vmatpush.xpose.msra.mxu0 %v514
    %534 = vmatmul.f32.gmra.mxu0 %v510
    %v535 = vpop.f32.mrf.mxu0
    %v536 = vadd.f32 0.0, %v535
    %537 = vmatmul.f32.gmra.mxu0 %v512
    %v538 = vpop.f32.mrf.mxu0
    %v539 = vadd.f32 0.0, %v538
    %540 = vdwg.mxu0
    %v541 = vmul.f32 %v536, 0.35355338
    %v542 = vmul.f32 %v539, 0.35355338
    %v543 = vadd.f32 %v541, %v215
    %v544 = vadd.f32 %v542, %v216
    %v545 = vsel %vm229, %v543, -inf
    %546 = vmax.xlane.f32.xlu0 %v545
    %v547 = vpop.xlane.xlu0 %546
    %v548 = vsel %vm229, %v544, -inf
    %549 = vmax.xlane.f32.xlu0 %v548
    %v550 = vpop.xlane.xlu0 %549
    %v551 = vsub.f32 %v543, %v547
    %v552 = vsub.f32 %v544, %v550
    %v553 = vmul.f32 %v551, 1.442695
    %v554 = vpow.pop %v553
    %v555 = vmul.f32 %v552, 1.442695
    %v556 = vpow.pop %v555
    %v557 = vsel %vm229, %v554, 0.0
    %558 = vadd.xlane.f32.xlu0 %v557
    %v559 = vpop.xlane.xlu0 %558
    %v560 = vsel %vm229, %v556, 0.0
    %561 = vadd.xlane.f32.xlu0 %v560
    %v562 = vpop.xlane.xlu0 %561
    %v563 = vrcp.pop %v559
    %v564 = vrcp.pop %v562
    %v565 = vmul.f32 %v554, %v563
    %v566 = vmul.f32 %v556, %v564
    %567 = vrot.lane.b32.xlu0 %v298, 48
    %v568 = vpop.permute.xlu0 %567
    %569 = vrot.lane.b32.xlu0 %v301, 48
    %v570 = vpop.permute.xlu0 %569
    %v574 = vsel %vm229, %v565, 0
    %v577 = vsel %vm229, %v566, 0
    %579 = vmatpush.msra.mxu0 0.0
    %580 = vmatpush.msra.mxu0 0.0
    %581 = vmatpush.msra.mxu0 0.0
    %582 = vmatpush.msra.mxu0 0.0
    %583 = vmatpush.msra.mxu0 0.0
    %584 = vmatpush.msra.mxu0 0.0
    %585 = vmatpush.msra.mxu0 0.0
    %586 = vmatpush.msra.mxu0 0.0
    %587 = vmatpush.msra.mxu0 0.0
    %588 = vmatpush.msra.mxu0 0.0
    %589 = vmatpush.msra.mxu0 0.0
    %590 = vmatpush.msra.mxu0 0.0
    %591 = vmatpush.msra.mxu0 0.0
    %592 = vmatpush.msra.mxu0 0.0
    %593 = vmatpush.msra.mxu0 %v570
    %594 = vmatpush.msra.mxu0 %v568
    %595 = vmatmul.f32.gmra.mxu0 %v574
    %v596 = vpop.f32.mrf.mxu0
    %v597 = vadd.f32 0.0, %v596
    %598 = vmatmul.f32.gmra.mxu0 %v577
    %v599 = vpop.f32.mrf.mxu0
    %v600 = vadd.f32 0.0, %v599
    %601 = vdwg.mxu0
    %602 = vrot.lane.b32.xlu0 %v298, 104
    %v603 = vpop.permute.xlu0 %602
    %604 = vrot.lane.b32.xlu0 %v301, 104
    %v605 = vpop.permute.xlu0 %604
    %606 = vrot.lane.b32.xlu0 %v298, 72
    %v607 = vpop.permute.xlu0 %606
    %608 = vrot.lane.b32.xlu0 %v301, 72
    %v609 = vpop.permute.xlu0 %608
    %v610 = vsel %vm309, %v603, 0
    %v612 = vsel %vm309, %v605, 0
    %v614 = vsel %vm309, %v607, 0
    %v616 = vsel %vm309, %v609, 0
    %618 = vmatpush.xpose.msra.mxu0 0.0
    %619 = vmatpush.xpose.msra.mxu0 0.0
    %620 = vmatpush.xpose.msra.mxu0 0.0
    %621 = vmatpush.xpose.msra.mxu0 0.0
    %622 = vmatpush.xpose.msra.mxu0 0.0
    %623 = vmatpush.xpose.msra.mxu0 0.0
    %624 = vmatpush.xpose.msra.mxu0 0.0
    %625 = vmatpush.xpose.msra.mxu0 0.0
    %626 = vmatpush.xpose.msra.mxu0 0.0
    %627 = vmatpush.xpose.msra.mxu0 0.0
    %628 = vmatpush.xpose.msra.mxu0 0.0
    %629 = vmatpush.xpose.msra.mxu0 0.0
    %630 = vmatpush.xpose.msra.mxu0 0.0
    %631 = vmatpush.xpose.msra.mxu0 0.0
    %632 = vmatpush.xpose.msra.mxu0 %v616
    %633 = vmatpush.xpose.msra.mxu0 %v614
    %634 = vmatmul.f32.gmra.mxu0 %v610
    %v635 = vpop.f32.mrf.mxu0
    %v636 = vadd.f32 0.0, %v635
    %637 = vmatmul.f32.gmra.mxu0 %v612
    %v638 = vpop.f32.mrf.mxu0
    %v639 = vadd.f32 0.0, %v638
    %640 = vdwg.mxu0
    %v641 = vmul.f32 %v636, 0.35355338
    %v642 = vmul.f32 %v639, 0.35355338
    %v643 = vadd.f32 %v641, %v215
    %v644 = vadd.f32 %v642, %v216
    %v645 = vsel %vm229, %v643, -inf
    %646 = vmax.xlane.f32.xlu0 %v645
    %v647 = vpop.xlane.xlu0 %646
    %v648 = vsel %vm229, %v644, -inf
    %649 = vmax.xlane.f32.xlu0 %v648
    %v650 = vpop.xlane.xlu0 %649
    %v651 = vsub.f32 %v643, %v647
    %v652 = vsub.f32 %v644, %v650
    %v653 = vmul.f32 %v651, 1.442695
    %v654 = vpow.pop %v653
    %v655 = vmul.f32 %v652, 1.442695
    %v656 = vpow.pop %v655
    %v657 = vsel %vm229, %v654, 0.0
    %658 = vadd.xlane.f32.xlu0 %v657
    %v659 = vpop.xlane.xlu0 %658
    %v660 = vsel %vm229, %v656, 0.0
    %661 = vadd.xlane.f32.xlu0 %v660
    %v662 = vpop.xlane.xlu0 %661
    %v663 = vrcp.pop %v659
    %v664 = vrcp.pop %v662
    %v665 = vmul.f32 %v654, %v663
    %v666 = vmul.f32 %v656, %v664
    %667 = vrot.lane.b32.xlu0 %v298, 40
    %v668 = vpop.permute.xlu0 %667
    %669 = vrot.lane.b32.xlu0 %v301, 40
    %v670 = vpop.permute.xlu0 %669
    %v674 = vsel %vm229, %v665, 0
    %v677 = vsel %vm229, %v666, 0
    %679 = vmatpush.msra.mxu0 0.0
    %680 = vmatpush.msra.mxu0 0.0
    %681 = vmatpush.msra.mxu0 0.0
    %682 = vmatpush.msra.mxu0 0.0
    %683 = vmatpush.msra.mxu0 0.0
    %684 = vmatpush.msra.mxu0 0.0
    %685 = vmatpush.msra.mxu0 0.0
    %686 = vmatpush.msra.mxu0 0.0
    %687 = vmatpush.msra.mxu0 0.0
    %688 = vmatpush.msra.mxu0 0.0
    %689 = vmatpush.msra.mxu0 0.0
    %690 = vmatpush.msra.mxu0 0.0
    %691 = vmatpush.msra.mxu0 0.0
    %692 = vmatpush.msra.mxu0 0.0
    %693 = vmatpush.msra.mxu0 %v670
    %694 = vmatpush.msra.mxu0 %v668
    %695 = vmatmul.f32.gmra.mxu0 %v674
    %v696 = vpop.f32.mrf.mxu0
    %v697 = vadd.f32 0.0, %v696
    %698 = vmatmul.f32.gmra.mxu0 %v677
    %v699 = vpop.f32.mrf.mxu0
    %v700 = vadd.f32 0.0, %v699
    %701 = vdwg.mxu0
    %704 = vrot.lane.b32.xlu0 %v497, 8
    %v705 = vpop.permute.xlu0 %704
    %706 = vrot.lane.b32.xlu0 %v500, 8
    %v707 = vpop.permute.xlu0 %706
    %712 = vrot.lane.b32.xlu0 %v597, 16
    %v713 = vpop.permute.xlu0 %712
    %714 = vrot.lane.b32.xlu0 %v600, 16
    %v715 = vpop.permute.xlu0 %714
    %720 = vrot.lane.b32.xlu0 %v697, 24
    %v721 = vpop.permute.xlu0 %720
    %722 = vrot.lane.b32.xlu0 %v700, 24
    %v723 = vpop.permute.xlu0 %722
    %v726 = vsel %vm309, %v397, %v705
    %v727 = vsel %vm309, %v400, %v707
    %v728 = vsel %vm229, %v726, %v713
    %v729 = vsel %vm229, %v727, %v715
    %vm730 = vcmask 195584
    %v731 = vsel %vm730, %v728, %v721
    %v732 = vsel %vm730, %v729, %v723
    %v733 = vld [vmem:[%s23] sm:$0xff]
    %v734 = vld [vmem:[%s23 + $0x8] sm:$0xff]
    %v735 = vld [vmem:[%s23 + $0x10] sm:$0xff]
    %v736 = vld [vmem:[%s23 + $0x18] sm:$0xff]
    %v737 = vld [vmem:[%s25] sm:$0x1]
    %v739 = vperm.slane %v737, 0
    %v742 = vsel %vm273, %v731, 0
    %v745 = vsel %vm273, %v732, 0
    %747 = vmatpush.msra.mxu0 0.0
    %748 = vmatpush.msra.mxu0 0.0
    %749 = vmatpush.msra.mxu0 0.0
    %750 = vmatpush.msra.mxu0 0.0
    %751 = vmatpush.msra.mxu0 0.0
    %752 = vmatpush.msra.mxu0 0.0
    %753 = vmatpush.msra.mxu0 0.0
    %754 = vmatpush.msra.mxu0 0.0
    %755 = vmatpush.msra.mxu0 0.0
    %756 = vmatpush.msra.mxu0 0.0
    %757 = vmatpush.msra.mxu0 0.0
    %758 = vmatpush.msra.mxu0 0.0
    %759 = vmatpush.msra.mxu0 %v736
    %760 = vmatpush.msra.mxu0 %v735
    %761 = vmatpush.msra.mxu0 %v734
    %762 = vmatpush.msra.mxu0 %v733
    %763 = vmatmul.f32.gmra.mxu0 %v742
    %v764 = vpop.f32.mrf.mxu0
    %v765 = vadd.f32 %v739, %v764
    %766 = vmatmul.f32.gmra.mxu0 %v745
    %v767 = vpop.f32.mrf.mxu0
    %v768 = vadd.f32 %v739, %v767
    %769 = vdwg.mxu0
    %v770 = vadd.f32 %v263, %v765
    %v771 = vadd.f32 %v264, %v768
    %v772 = vld [vmem:[%s27] sm:$0x1]
    %v773 = vld [vmem:[%s29] sm:$0x1]
    %v774 = vsel %vm273, %v770, 0.0
    %775 = vadd.xlane.f32.xlu0 %v774
    %v776 = vpop.xlane.xlu0 %775
    %v777 = vsel %vm273, %v771, 0.0
    %778 = vadd.xlane.f32.xlu0 %v777
    %v779 = vpop.xlane.xlu0 %778
    %v780 = vrcp.pop 32.0
    %v781 = vmul.f32 32.0, %v780
    %v782 = vsub.f32 1.0, %v781
    %v783 = vmul.f32 %v780, %v782
    %v784 = vadd.f32 %v780, %v783
    %vm785 = vweird.f32 %v780
    %v786 = vsel %vm785, %v780, %v784
    %v787 = vmul.f32 %v776, %v786
    %v788 = vmul.f32 %v779, %v786
    %v789 = vsub.f32 %v770, %v787
    %v790 = vsub.f32 %v771, %v788
    %v791 = vmul.f32 %v789, %v789
    %v792 = vmul.f32 %v790, %v790
    %v793 = vsel %vm273, %v791, 0.0
    %794 = vadd.xlane.f32.xlu0 %v793
    %v795 = vpop.xlane.xlu0 %794
    %v796 = vsel %vm273, %v792, 0.0
    %797 = vadd.xlane.f32.xlu0 %v796
    %v798 = vpop.xlane.xlu0 %797
    %v799 = vmul.f32 %v795, %v786
    %v800 = vmul.f32 %v798, %v786
    %v801 = vadd.f32 %v799, 1e-05
    %v802 = vadd.f32 %v800, 1e-05
    %v803 = vrsqrt.pop %v801
    %v804 = vmul.f32 %v803, %v801
    %v805 = vmul.f32 %v804, %v803
    %v806 = vmul.f32 0.5, %v805
    %v807 = vsub.f32 1.5, %v806
    %v808 = vmul.f32 %v803, %v807
    %vm809 = vweird.f32 %v801
    %vm810 = vweird.f32 %v803
    %vm811 = vmor %vm809, %vm810
    %v812 = vsel %vm811, %v803, %v808
    %v813 = vrsqrt.pop %v802
    %v814 = vmul.f32 %v813, %v802
    %v815 = vmul.f32 %v814, %v813
    %v816 = vmul.f32 0.5, %v815
    %v817 = vsub.f32 1.5, %v816
    %v818 = vmul.f32 %v813, %v817
    %vm819 = vweird.f32 %v802
    %vm820 = vweird.f32 %v813
    %vm821 = vmor %vm819, %vm820
    %v822 = vsel %vm821, %v813, %v818
    %v823 = vmul.f32 %v789, %v812
    %v824 = vmul.f32 %v790, %v822
    %v826 = vperm.slane %v772, 0
    %v828 = vmul.f32 %v823, %v826
    %v829 = vmul.f32 %v824, %v826
    %v831 = vperm.slane %v773, 0
    %v833 = vadd.f32 %v828, %v831
    %v834 = vadd.f32 %v829, %v831
    %v835 = vld [vmem:[%s31] sm:$0xff]
    %v836 = vld [vmem:[%s31 + $0x8] sm:$0xff]
    %v837 = vld [vmem:[%s31 + $0x10] sm:$0xff]
    %v838 = vld [vmem:[%s31 + $0x18] sm:$0xff]
    %v839 = vld [vmem:[%s33] sm:$0x1]
    %v841 = vperm.slane %v839, 0
    %v844 = vsel %vm273, %v833, 0
    %v847 = vsel %vm273, %v834, 0
    %849 = vmatpush.msra.mxu0 0.0
    %850 = vmatpush.msra.mxu0 0.0
    %851 = vmatpush.msra.mxu0 0.0
    %852 = vmatpush.msra.mxu0 0.0
    %853 = vmatpush.msra.mxu0 0.0
    %854 = vmatpush.msra.mxu0 0.0
    %855 = vmatpush.msra.mxu0 0.0
    %856 = vmatpush.msra.mxu0 0.0
    %857 = vmatpush.msra.mxu0 0.0
    %858 = vmatpush.msra.mxu0 0.0
    %859 = vmatpush.msra.mxu0 0.0
    %860 = vmatpush.msra.mxu0 0.0
    %861 = vmatpush.msra.mxu0 %v838
    %862 = vmatpush.msra.mxu0 %v837
    %863 = vmatpush.msra.mxu0 %v836
    %864 = vmatpush.msra.mxu0 %v835
    %865 = vmatmul.f32.gmra.mxu0 %v844
    %v866 = vpop.f32.mrf.mxu0
    %v867 = vadd.f32 %v841, %v866
    %868 = vmatmul.f32.gmra.mxu0 %v847
    %v869 = vpop.f32.mrf.mxu0
    %v870 = vadd.f32 %v841, %v869
    %871 = vdwg.mxu0
    %v872 = vmax.f32 %v867, 0.0
    %v873 = vmax.f32 %v870, 0.0
    %v874 = vld [vmem:[%s35] sm:$0xff]
    %v875 = vld [vmem:[%s35 + $0x8] sm:$0xff]
    %v876 = vld [vmem:[%s35 + $0x10] sm:$0xff]
    %v877 = vld [vmem:[%s35 + $0x18] sm:$0xff]
    %v878 = vld [vmem:[%s35 + $0x20] sm:$0xff]
    %v879 = vld [vmem:[%s35 + $0x28] sm:$0xff]
    %v880 = vld [vmem:[%s35 + $0x30] sm:$0xff]
    %v881 = vld [vmem:[%s35 + $0x38] sm:$0xff]
    %v882 = vld [vmem:[%s35 + $0x40] sm:$0xff]
    %v883 = vld [vmem:[%s35 + $0x48] sm:$0xff]
    %v884 = vld [vmem:[%s35 + $0x50] sm:$0xff]
    %v885 = vld [vmem:[%s35 + $0x58] sm:$0xff]
    %v886 = vld [vmem:[%s35 + $0x60] sm:$0xff]
    %v887 = vld [vmem:[%s35 + $0x68] sm:$0xff]
    %v888 = vld [vmem:[%s35 + $0x70] sm:$0xff]
    %v889 = vld [vmem:[%s35 + $0x78] sm:$0xff]
    %v890 = vld [vmem:[%s37] sm:$0x1]
    %v892 = vperm.slane %v890, 0
    %894 = vmatpush.msra.mxu0 %v889
    %895 = vmatpush.msra.mxu0 %v888
    %896 = vmatpush.msra.mxu0 %v887
    %897 = vmatpush.msra.mxu0 %v886
    %898 = vmatpush.msra.mxu0 %v885
    %899 = vmatpush.msra.mxu0 %v884
    %900 = vmatpush.msra.mxu0 %v883
    %901 = vmatpush.msra.mxu0 %v882
    %902 = vmatpush.msra.mxu0 %v881
    %903 = vmatpush.msra.mxu0 %v880
    %904 = vmatpush.msra.mxu0 %v879
    %905 = vmatpush.msra.mxu0 %v878
    %906 = vmatpush.msra.mxu0 %v877
    %907 = vmatpush.msra.mxu0 %v876
    %908 = vmatpush.msra.mxu0 %v875
    %909 = vmatpush.msra.mxu0 %v874
    %910 = vmatmul.f32.gmra.mxu0 %v872
    %v911 = vpop.f32.mrf.mxu0
    %v912 = vadd.f32 %v892, %v911
    %913 = vmatmul.f32.gmra.mxu0 %v873
    %v914 = vpop.f32.mrf.mxu0
    %v915 = vadd.f32 %v892, %v914
    %916 = vdwg.mxu0
    %v917 = vadd.f32 %v833, %v912
    %v918 = vadd.f32 %v834, %v915
    %v919 = vld [vmem:[%s39] sm:$0x1]
    %v920 = vld [vmem:[%s41] sm:$0x1]
    %v921 = vsel %vm273, %v917, 0.0
    %922 = vadd.xlane.f32.xlu0 %v921
    %v923 = vpop.xlane.xlu0 %922
    %v924 = vsel %vm273, %v918, 0.0
    %925 = vadd.xlane.f32.xlu0 %v924
    %v926 = vpop.xlane.xlu0 %925
    %v927 = vmul.f32 %v923, %v786
    %v928 = vmul.f32 %v926, %v786
    %v929 = vsub.f32 %v917, %v927
    %v930 = vsub.f32 %v918, %v928
    %v931 = vmul.f32 %v929, %v929
    %v932 = vmul.f32 %v930, %v930
    %v933 = vsel %vm273, %v931, 0.0
    %934 = vadd.xlane.f32.xlu0 %v933
    %v935 = vpop.xlane.xlu0 %934
    %v936 = vsel %vm273, %v932, 0.0
    %937 = vadd.xlane.f32.xlu0 %v936
    %v938 = vpop.xlane.xlu0 %937
    %v939 = vmul.f32 %v935, %v786
    %v940 = vmul.f32 %v938, %v786
    %v941 = vadd.f32 %v939, 1e-05
    %v942 = vadd.f32 %v940, 1e-05
    %v943 = vrsqrt.pop %v941
    %v944 = vmul.f32 %v943, %v941
    %v945 = vmul.f32 %v944, %v943
    %v946 = vmul.f32 0.5, %v945
    %v947 = vsub.f32 1.5, %v946
    %v948 = vmul.f32 %v943, %v947
    %vm949 = vweird.f32 %v941
    %vm950 = vweird.f32 %v943
    %vm951 = vmor %vm949, %vm950
    %v952 = vsel %vm951, %v943, %v948
    %v953 = vrsqrt.pop %v942
    %v954 = vmul.f32 %v953, %v942
    %v955 = vmul.f32 %v954, %v953
    %v956 = vmul.f32 0.5, %v955
    %v957 = vsub.f32 1.5, %v956
    %v958 = vmul.f32 %v953, %v957
    %vm959 = vweird.f32 %v942
    %vm960 = vweird.f32 %v953
    %vm961 = vmor %vm959, %vm960
    %v962 = vsel %vm961, %v953, %v958
    %v963 = vmul.f32 %v929, %v952
    %v964 = vmul.f32 %v930, %v962
    %v966 = vperm.slane %v919, 0
    %v968 = vmul.f32 %v963, %v966
    %v969 = vmul.f32 %v964, %v966
    %v971 = vperm.slane %v920, 0
    %v973 = vadd.f32 %v968, %v971
    %v974 = vadd.f32 %v969, %v971
    %s975 = scalar_lea.vmem %s19, 32
    %v976 = vld [vmem:[%s975] sm:$0xff]
    %v977 = vld [vmem:[%s975 + $0x8] sm:$0xff]
    %v978 = vld [vmem:[%s975 + $0x10] sm:$0xff]
    %v979 = vld [vmem:[%s975 + $0x18] sm:$0xff]
    %s980 = scalar_lea.vmem %s21, 1
    %v981 = vld [vmem:[%s980] sm:$0x1]
    %v983 = vperm.slane %v981, 0
    %v986 = vsel %vm273, %v973, 0
    %v989 = vsel %vm273, %v974, 0
    %991 = vmatpush.msra.mxu0 0.0
    %992 = vmatpush.msra.mxu0 0.0
    %993 = vmatpush.msra.mxu0 0.0
    %994 = vmatpush.msra.mxu0 0.0
    %995 = vmatpush.msra.mxu0 0.0
    %996 = vmatpush.msra.mxu0 0.0
    %997 = vmatpush.msra.mxu0 0.0
    %998 = vmatpush.msra.mxu0 0.0
    %999 = vmatpush.msra.mxu0 0.0
    %1000 = vmatpush.msra.mxu0 0.0
    %1001 = vmatpush.msra.mxu0 0.0
    %1002 = vmatpush.msra.mxu0 0.0
    %1003 = vmatpush.msra.mxu0 %v979
    %1004 = vmatpush.msra.mxu0 %v978
    %1005 = vmatpush.msra.mxu0 %v977
    %1006 = vmatpush.msra.mxu0 %v976
    %1007 = vmatmul.f32.gmra.mxu0 %v986
    %v1008 = vpop.f32.mrf.mxu0
    %v1009 = vadd.f32 %v983, %v1008
    %1010 = vmatmul.f32.gmra.mxu0 %v989
    %v1011 = vpop.f32.mrf.mxu0
    %v1012 = vadd.f32 %v983, %v1011
    %1013 = vdwg.mxu0
    %1016 = vrot.lane.b32.xlu0 %v1009, 96
    %v1017 = vpop.permute.xlu0 %1016
    %1018 = vrot.lane.b32.xlu0 %v1012, 96
    %v1019 = vpop.permute.xlu0 %1018
    %v1020 = vsel %vm309, %v1009, 0
    %v1022 = vsel %vm309, %v1012, 0
    %v1024 = vsel %vm309, %v1017, 0
    %v1026 = vsel %vm309, %v1019, 0
    %1028 = vmatpush.xpose.msra.mxu0 0.0
    %1029 = vmatpush.xpose.msra.mxu0 0.0
    %1030 = vmatpush.xpose.msra.mxu0 0.0
    %1031 = vmatpush.xpose.msra.mxu0 0.0
    %1032 = vmatpush.xpose.msra.mxu0 0.0
    %1033 = vmatpush.xpose.msra.mxu0 0.0
    %1034 = vmatpush.xpose.msra.mxu0 0.0
    %1035 = vmatpush.xpose.msra.mxu0 0.0
    %1036 = vmatpush.xpose.msra.mxu0 0.0
    %1037 = vmatpush.xpose.msra.mxu0 0.0
    %1038 = vmatpush.xpose.msra.mxu0 0.0
    %1039 = vmatpush.xpose.msra.mxu0 0.0
    %1040 = vmatpush.xpose.msra.mxu0 0.0
    %1041 = vmatpush.xpose.msra.mxu0 0.0
    %1042 = vmatpush.xpose.msra.mxu0 %v1026
    %1043 = vmatpush.xpose.msra.mxu0 %v1024
    %1044 = vmatmul.f32.gmra.mxu0 %v1020
    %v1045 = vpop.f32.mrf.mxu0
    %v1046 = vadd.f32 0.0, %v1045
    %1047 = vmatmul.f32.gmra.mxu0 %v1022
    %v1048 = vpop.f32.mrf.mxu0
    %v1049 = vadd.f32 0.0, %v1048
    %1050 = vdwg.mxu0
    %v1051 = vmul.f32 %v1046, 0.35355338
    %v1052 = vmul.f32 %v1049, 0.35355338
    %v1053 = vadd.f32 %v1051, %v215
    %v1054 = vadd.f32 %v1052, %v216
    %v1055 = vsel %vm229, %v1053, -inf
    %1056 = vmax.xlane.f32.xlu0 %v1055
    %v1057 = vpop.xlane.xlu0 %1056
    %v1058 = vsel %vm229, %v1054, -inf
    %1059 = vmax.xlane.f32.xlu0 %v1058
    %v1060 = vpop.xlane.xlu0 %1059
    %v1061 = vsub.f32 %v1053, %v1057
    %v1062 = vsub.f32 %v1054, %v1060
    %v1063 = vmul.f32 %v1061, 1.442695
    %v1064 = vpow.pop %v1063
    %v1065 = vmul.f32 %v1062, 1.442695
    %v1066 = vpow.pop %v1065
    %v1067 = vsel %vm229, %v1064, 0.0
    %1068 = vadd.xlane.f32.xlu0 %v1067
    %v1069 = vpop.xlane.xlu0 %1068
    %v1070 = vsel %vm229, %v1066, 0.0
    %1071 = vadd.xlane.f32.xlu0 %v1070
    %v1072 = vpop.xlane.xlu0 %1071
    %v1073 = vrcp.pop %v1069
    %v1074 = vrcp.pop %v1072
    %v1075 = vmul.f32 %v1064, %v1073
    %v1076 = vmul.f32 %v1066, %v1074
    %1077 = vrot.lane.b32.xlu0 %v1009, 64
    %v1078 = vpop.permute.xlu0 %1077
    %1079 = vrot.lane.b32.xlu0 %v1012, 64
    %v1080 = vpop.permute.xlu0 %1079
    %v1084 = vsel %vm229, %v1075, 0
    %v1087 = vsel %vm229, %v1076, 0
    %1089 = vmatpush.msra.mxu0 0.0
    %1090 = vmatpush.msra.mxu0 0.0
    %1091 = vmatpush.msra.mxu0 0.0
    %1092 = vmatpush.msra.mxu0 0.0
    %1093 = vmatpush.msra.mxu0 0.0
    %1094 = vmatpush.msra.mxu0 0.0
    %1095 = vmatpush.msra.mxu0 0.0
    %1096 = vmatpush.msra.mxu0 0.0
    %1097 = vmatpush.msra.mxu0 0.0
    %1098 = vmatpush.msra.mxu0 0.0
    %1099 = vmatpush.msra.mxu0 0.0
    %1100 = vmatpush.msra.mxu0 0.0
    %1101 = vmatpush.msra.mxu0 0.0
    %1102 = vmatpush.msra.mxu0 0.0
    %1103 = vmatpush.msra.mxu0 %v1080
    %1104 = vmatpush.msra.mxu0 %v1078
    %1105 = vmatmul.f32.gmra.mxu0 %v1084
    %v1106 = vpop.f32.mrf.mxu0
    %v1107 = vadd.f32 0.0, %v1106
    %1108 = vmatmul.f32.gmra.mxu0 %v1087
    %v1109 = vpop.f32.mrf.mxu0
    %v1110 = vadd.f32 0.0, %v1109
    %1111 = vdwg.mxu0
    %1112 = vrot.lane.b32.xlu0 %v1009, 120
    %v1113 = vpop.permute.xlu0 %1112
    %1114 = vrot.lane.b32.xlu0 %v1012, 120
    %v1115 = vpop.permute.xlu0 %1114
    %1116 = vrot.lane.b32.xlu0 %v1009, 88
    %v1117 = vpop.permute.xlu0 %1116
    %1118 = vrot.lane.b32.xlu0 %v1012, 88
    %v1119 = vpop.permute.xlu0 %1118
    %v1120 = vsel %vm309, %v1113, 0
    %v1122 = vsel %vm309, %v1115, 0
    %v1124 = vsel %vm309, %v1117, 0
    %v1126 = vsel %vm309, %v1119, 0
    %1128 = vmatpush.xpose.msra.mxu0 0.0
    %1129 = vmatpush.xpose.msra.mxu0 0.0
    %1130 = vmatpush.xpose.msra.mxu0 0.0
    %1131 = vmatpush.xpose.msra.mxu0 0.0
    %1132 = vmatpush.xpose.msra.mxu0 0.0
    %1133 = vmatpush.xpose.msra.mxu0 0.0
    %1134 = vmatpush.xpose.msra.mxu0 0.0
    %1135 = vmatpush.xpose.msra.mxu0 0.0
    %1136 = vmatpush.xpose.msra.mxu0 0.0
    %1137 = vmatpush.xpose.msra.mxu0 0.0
    %1138 = vmatpush.xpose.msra.mxu0 0.0
    %1139 = vmatpush.xpose.msra.mxu0 0.0
    %1140 = vmatpush.xpose.msra.mxu0 0.0
    %1141 = vmatpush.xpose.msra.mxu0 0.0
    %1142 = vmatpush.xpose.msra.mxu0 %v1126
    %1143 = vmatpush.xpose.msra.mxu0 %v1124
    %1144 = vmatmul.f32.gmra.mxu0 %v1120
    %v1145 = vpop.f32.mrf.mxu0
    %v1146 = vadd.f32 0.0, %v1145
    %1147 = vmatmul.f32.gmra.mxu0 %v1122
    %v1148 = vpop.f32.mrf.mxu0
    %v1149 = vadd.f32 0.0, %v1148
    %1150 = vdwg.mxu0
    %v1151 = vmul.f32 %v1146, 0.35355338
    %v1152 = vmul.f32 %v1149, 0.35355338
    %v1153 = vadd.f32 %v1151, %v215
    %v1154 = vadd.f32 %v1152, %v216
    %v1155 = vsel %vm229, %v1153, -inf
    %1156 = vmax.xlane.f32.xlu0 %v1155
    %v1157 = vpop.xlane.xlu0 %1156
    %v1158 = vsel %vm229, %v1154, -inf
    %1159 = vmax.xlane.f32.xlu0 %v1158
    %v1160 = vpop.xlane.xlu0 %1159
    %v1161 = vsub.f32 %v1153, %v1157
    %v1162 = vsub.f32 %v1154, %v1160
    %v1163 = vmul.f32 %v1161, 1.442695
    %v1164 = vpow.pop %v1163
    %v1165 = vmul.f32 %v1162, 1.442695
    %v1166 = vpow.pop %v1165
    %v1167 = vsel %vm229, %v1164, 0.0
    %1168 = vadd.xlane.f32.xlu0 %v1167
    %v1169 = vpop.xlane.xlu0 %1168
    %v1170 = vsel %vm229, %v1166, 0.0
    %1171 = vadd.xlane.f32.xlu0 %v1170
    %v1172 = vpop.xlane.xlu0 %1171
    %v1173 = vrcp.pop %v1169
    %v1174 = vrcp.pop %v1172
    %v1175 = vmul.f32 %v1164, %v1173
    %v1176 = vmul.f32 %v1166, %v1174
    %1177 = vrot.lane.b32.xlu0 %v1009, 56
    %v1178 = vpop.permute.xlu0 %1177
    %1179 = vrot.lane.b32.xlu0 %v1012, 56
    %v1180 = vpop.permute.xlu0 %1179
    %v1184 = vsel %vm229, %v1175, 0
    %v1187 = vsel %vm229, %v1176, 0
    %1189 = vmatpush.msra.mxu0 0.0
    %1190 = vmatpush.msra.mxu0 0.0
    %1191 = vmatpush.msra.mxu0 0.0
    %1192 = vmatpush.msra.mxu0 0.0
    %1193 = vmatpush.msra.mxu0 0.0
    %1194 = vmatpush.msra.mxu0 0.0
    %1195 = vmatpush.msra.mxu0 0.0
    %1196 = vmatpush.msra.mxu0 0.0
    %1197 = vmatpush.msra.mxu0 0.0
    %1198 = vmatpush.msra.mxu0 0.0
    %1199 = vmatpush.msra.mxu0 0.0
    %1200 = vmatpush.msra.mxu0 0.0
    %1201 = vmatpush.msra.mxu0 0.0
    %1202 = vmatpush.msra.mxu0 0.0
    %1203 = vmatpush.msra.mxu0 %v1180
    %1204 = vmatpush.msra.mxu0 %v1178
    %1205 = vmatmul.f32.gmra.mxu0 %v1184
    %v1206 = vpop.f32.mrf.mxu0
    %v1207 = vadd.f32 0.0, %v1206
    %1208 = vmatmul.f32.gmra.mxu0 %v1187
    %v1209 = vpop.f32.mrf.mxu0
    %v1210 = vadd.f32 0.0, %v1209
    %1211 = vdwg.mxu0
    %1212 = vrot.lane.b32.xlu0 %v1009, 112
    %v1213 = vpop.permute.xlu0 %1212
    %1214 = vrot.lane.b32.xlu0 %v1012, 112
    %v1215 = vpop.permute.xlu0 %1214
    %1216 = vrot.lane.b32.xlu0 %v1009, 80
    %v1217 = vpop.permute.xlu0 %1216
    %1218 = vrot.lane.b32.xlu0 %v1012, 80
    %v1219 = vpop.permute.xlu0 %1218
    %v1220 = vsel %vm309, %v1213, 0
    %v1222 = vsel %vm309, %v1215, 0
    %v1224 = vsel %vm309, %v1217, 0
    %v1226 = vsel %vm309, %v1219, 0
    %1228 = vmatpush.xpose.msra.mxu0 0.0
    %1229 = vmatpush.xpose.msra.mxu0 0.0
    %1230 = vmatpush.xpose.msra.mxu0 0.0
    %1231 = vmatpush.xpose.msra.mxu0 0.0
    %1232 = vmatpush.xpose.msra.mxu0 0.0
    %1233 = vmatpush.xpose.msra.mxu0 0.0
    %1234 = vmatpush.xpose.msra.mxu0 0.0
    %1235 = vmatpush.xpose.msra.mxu0 0.0
    %1236 = vmatpush.xpose.msra.mxu0 0.0
    %1237 = vmatpush.xpose.msra.mxu0 0.0
    %1238 = vmatpush.xpose.msra.mxu0 0.0
    %1239 = vmatpush.xpose.msra.mxu0 0.0
    %1240 = vmatpush.xpose.msra.mxu0 0.0
    %1241 = vmatpush.xpose.msra.mxu0 0.0
    %1242 = vmatpush.xpose.msra.mxu0 %v1226
    %1243 = vmatpush.xpose.msra.mxu0 %v1224
    %1244 = vmatmul.f32.gmra.mxu0 %v1220
    %v1245 = vpop.f32.mrf.mxu0
    %v1246 = vadd.f32 0.0, %v1245
    %1247 = vmatmul.f32.gmra.mxu0 %v1222
    %v1248 = vpop.f32.mrf.mxu0
    %v1249 = vadd.f32 0.0, %v1248
    %1250 = vdwg.mxu0
    %v1251 = vmul.f32 %v1246, 0.35355338
    %v1252 = vmul.f32 %v1249, 0.35355338
    %v1253 = vadd.f32 %v1251, %v215
    %v1254 = vadd.f32 %v1252, %v216
    %v1255 = vsel %vm229, %v1253, -inf
    %1256 = vmax.xlane.f32.xlu0 %v1255
    %v1257 = vpop.xlane.xlu0 %1256
    %v1258 = vsel %vm229, %v1254, -inf
    %1259 = vmax.xlane.f32.xlu0 %v1258
    %v1260 = vpop.xlane.xlu0 %1259
    %v1261 = vsub.f32 %v1253, %v1257
    %v1262 = vsub.f32 %v1254, %v1260
    %v1263 = vmul.f32 %v1261, 1.442695
    %v1264 = vpow.pop %v1263
    %v1265 = vmul.f32 %v1262, 1.442695
    %v1266 = vpow.pop %v1265
    %v1267 = vsel %vm229, %v1264, 0.0
    %1268 = vadd.xlane.f32.xlu0 %v1267
    %v1269 = vpop.xlane.xlu0 %1268
    %v1270 = vsel %vm229, %v1266, 0.0
    %1271 = vadd.xlane.f32.xlu0 %v1270
    %v1272 = vpop.xlane.xlu0 %1271
    %v1273 = vrcp.pop %v1269
    %v1274 = vrcp.pop %v1272
    %v1275 = vmul.f32 %v1264, %v1273
    %v1276 = vmul.f32 %v1266, %v1274
    %1277 = vrot.lane.b32.xlu0 %v1009, 48
    %v1278 = vpop.permute.xlu0 %1277
    %1279 = vrot.lane.b32.xlu0 %v1012, 48
    %v1280 = vpop.permute.xlu0 %1279
    %v1284 = vsel %vm229, %v1275, 0
    %v1287 = vsel %vm229, %v1276, 0
    %1289 = vmatpush.msra.mxu0 0.0
    %1290 = vmatpush.msra.mxu0 0.0
    %1291 = vmatpush.msra.mxu0 0.0
    %1292 = vmatpush.msra.mxu0 0.0
    %1293 = vmatpush.msra.mxu0 0.0
    %1294 = vmatpush.msra.mxu0 0.0
    %1295 = vmatpush.msra.mxu0 0.0
    %1296 = vmatpush.msra.mxu0 0.0
    %1297 = vmatpush.msra.mxu0 0.0
    %1298 = vmatpush.msra.mxu0 0.0
    %1299 = vmatpush.msra.mxu0 0.0
    %1300 = vmatpush.msra.mxu0 0.0
    %1301 = vmatpush.msra.mxu0 0.0
    %1302 = vmatpush.msra.mxu0 0.0
    %1303 = vmatpush.msra.mxu0 %v1280
    %1304 = vmatpush.msra.mxu0 %v1278
    %1305 = vmatmul.f32.gmra.mxu0 %v1284
    %v1306 = vpop.f32.mrf.mxu0
    %v1307 = vadd.f32 0.0, %v1306
    %1308 = vmatmul.f32.gmra.mxu0 %v1287
    %v1309 = vpop.f32.mrf.mxu0
    %v1310 = vadd.f32 0.0, %v1309
    %1311 = vdwg.mxu0
    %1312 = vrot.lane.b32.xlu0 %v1009, 104
    %v1313 = vpop.permute.xlu0 %1312
    %1314 = vrot.lane.b32.xlu0 %v1012, 104
    %v1315 = vpop.permute.xlu0 %1314
    %1316 = vrot.lane.b32.xlu0 %v1009, 72
    %v1317 = vpop.permute.xlu0 %1316
    %1318 = vrot.lane.b32.xlu0 %v1012, 72
    %v1319 = vpop.permute.xlu0 %1318
    %v1320 = vsel %vm309, %v1313, 0
    %v1322 = vsel %vm309, %v1315, 0
    %v1324 = vsel %vm309, %v1317, 0
    %v1326 = vsel %vm309, %v1319, 0
    %1328 = vmatpush.xpose.msra.mxu0 0.0
    %1329 = vmatpush.xpose.msra.mxu0 0.0
    %1330 = vmatpush.xpose.msra.mxu0 0.0
    %1331 = vmatpush.xpose.msra.mxu0 0.0
    %1332 = vmatpush.xpose.msra.mxu0 0.0
    %1333 = vmatpush.xpose.msra.mxu0 0.0
    %1334 = vmatpush.xpose.msra.mxu0 0.0
    %1335 = vmatpush.xpose.msra.mxu0 0.0
    %1336 = vmatpush.xpose.msra.mxu0 0.0
    %1337 = vmatpush.xpose.msra.mxu0 0.0
    %1338 = vmatpush.xpose.msra.mxu0 0.0
    %1339 = vmatpush.xpose.msra.mxu0 0.0
    %1340 = vmatpush.xpose.msra.mxu0 0.0
    %1341 = vmatpush.xpose.msra.mxu0 0.0
    %1342 = vmatpush.xpose.msra.mxu0 %v1326
    %1343 = vmatpush.xpose.msra.mxu0 %v1324
    %1344 = vmatmul.f32.gmra.mxu0 %v1320
    %v1345 = vpop.f32.mrf.mxu0
    %v1346 = vadd.f32 0.0, %v1345
    %1347 = vmatmul.f32.gmra.mxu0 %v1322
    %v1348 = vpop.f32.mrf.mxu0
    %v1349 = vadd.f32 0.0, %v1348
    %1350 = vdwg.mxu0
    %v1351 = vmul.f32 %v1346, 0.35355338
    %v1352 = vmul.f32 %v1349, 0.35355338
    %v1353 = vadd.f32 %v1351, %v215
    %v1354 = vadd.f32 %v1352, %v216
    %v1355 = vsel %vm229, %v1353, -inf
    %1356 = vmax.xlane.f32.xlu0 %v1355
    %v1357 = vpop.xlane.xlu0 %1356
    %v1358 = vsel %vm229, %v1354, -inf
    %1359 = vmax.xlane.f32.xlu0 %v1358
    %v1360 = vpop.xlane.xlu0 %1359
    %v1361 = vsub.f32 %v1353, %v1357
    %v1362 = vsub.f32 %v1354, %v1360
    %v1363 = vmul.f32 %v1361, 1.442695
    %v1364 = vpow.pop %v1363
    %v1365 = vmul.f32 %v1362, 1.442695
    %v1366 = vpow.pop %v1365
    %v1367 = vsel %vm229, %v1364, 0.0
    %1368 = vadd.xlane.f32.xlu0 %v1367
    %v1369 = vpop.xlane.xlu0 %1368
    %v1370 = vsel %vm229, %v1366, 0.0
    %1371 = vadd.xlane.f32.xlu0 %v1370
    %v1372 = vpop.xlane.xlu0 %1371
    %v1373 = vrcp.pop %v1369
    %v1374 = vrcp.pop %v1372
    %v1375 = vmul.f32 %v1364, %v1373
    %v1376 = vmul.f32 %v1366, %v1374
    %1377 = vrot.lane.b32.xlu0 %v1009, 40
    %v1378 = vpop.permute.xlu0 %1377
    %1379 = vrot.lane.b32.xlu0 %v1012, 40
    %v1380 = vpop.permute.xlu0 %1379
    %v1384 = vsel %vm229, %v1375, 0
    %v1387 = vsel %vm229, %v1376, 0
    %1389 = vmatpush.msra.mxu0 0.0
    %1390 = vmatpush.msra.mxu0 0.0
    %1391 = vmatpush.msra.mxu0 0.0
    %1392 = vmatpush.msra.mxu0 0.0
    %1393 = vmatpush.msra.mxu0 0.0
    %1394 = vmatpush.msra.mxu0 0.0
    %1395 = vmatpush.msra.mxu0 0.0
    %1396 = vmatpush.msra.mxu0 0.0
    %1397 = vmatpush.msra.mxu0 0.0
    %1398 = vmatpush.msra.mxu0 0.0
    %1399 = vmatpush.msra.mxu0 0.0
    %1400 = vmatpush.msra.mxu0 0.0
    %1401 = vmatpush.msra.mxu0 0.0
    %1402 = vmatpush.msra.mxu0 0.0
    %1403 = vmatpush.msra.mxu0 %v1380
    %1404 = vmatpush.msra.mxu0 %v1378
    %1405 = vmatmul.f32.gmra.mxu0 %v1384
    %v1406 = vpop.f32.mrf.mxu0
    %v1407 = vadd.f32 0.0, %v1406
    %1408 = vmatmul.f32.gmra.mxu0 %v1387
    %v1409 = vpop.f32.mrf.mxu0
    %v1410 = vadd.f32 0.0, %v1409
    %1411 = vdwg.mxu0
    %1414 = vrot.lane.b32.xlu0 %v1207, 8
    %v1415 = vpop.permute.xlu0 %1414
    %1416 = vrot.lane.b32.xlu0 %v1210, 8
    %v1417 = vpop.permute.xlu0 %1416
    %1422 = vrot.lane.b32.xlu0 %v1307, 16
    %v1423 = vpop.permute.xlu0 %1422
    %1424 = vrot.lane.b32.xlu0 %v1310, 16
    %v1425 = vpop.permute.xlu0 %1424
    %1430 = vrot.lane.b32.xlu0 %v1407, 24
    %v1431 = vpop.permute.xlu0 %1430
    %1432 = vrot.lane.b32.xlu0 %v1410, 24
    %v1433 = vpop.permute.xlu0 %1432
    %v1436 = vsel %vm309, %v1107, %v1415
    %v1437 = vsel %vm309, %v1110, %v1417
    %v1438 = vsel %vm229, %v1436, %v1423
    %v1439 = vsel %vm229, %v1437, %v1425
    %v1440 = vsel %vm730, %v1438, %v1431
    %v1441 = vsel %vm730, %v1439, %v1433
    %s1442 = scalar_lea.vmem %s23, 32
    %v1443 = vld [vmem:[%s1442] sm:$0xff]
    %v1444 = vld [vmem:[%s1442 + $0x8] sm:$0xff]
    %v1445 = vld [vmem:[%s1442 + $0x10] sm:$0xff]
    %v1446 = vld [vmem:[%s1442 + $0x18] sm:$0xff]
    %s1447 = scalar_lea.vmem %s25, 1
    %v1448 = vld [vmem:[%s1447] sm:$0x1]
    %v1450 = vperm.slane %v1448, 0
    %v1453 = vsel %vm273, %v1440, 0
    %v1456 = vsel %vm273, %v1441, 0
    %1458 = vmatpush.msra.mxu0 0.0
    %1459 = vmatpush.msra.mxu0 0.0
    %1460 = vmatpush.msra.mxu0 0.0
    %1461 = vmatpush.msra.mxu0 0.0
    %1462 = vmatpush.msra.mxu0 0.0
    %1463 = vmatpush.msra.mxu0 0.0
    %1464 = vmatpush.msra.mxu0 0.0
    %1465 = vmatpush.msra.mxu0 0.0
    %1466 = vmatpush.msra.mxu0 0.0
    %1467 = vmatpush.msra.mxu0 0.0
    %1468 = vmatpush.msra.mxu0 0.0
    %1469 = vmatpush.msra.mxu0 0.0
    %1470 = vmatpush.msra.mxu0 %v1446
    %1471 = vmatpush.msra.mxu0 %v1445
    %1472 = vmatpush.msra.mxu0 %v1444
    %1473 = vmatpush.msra.mxu0 %v1443
    %1474 = vmatmul.f32.gmra.mxu0 %v1453
    %v1475 = vpop.f32.mrf.mxu0
    %v1476 = vadd.f32 %v1450, %v1475
    %1477 = vmatmul.f32.gmra.mxu0 %v1456
    %v1478 = vpop.f32.mrf.mxu0
    %v1479 = vadd.f32 %v1450, %v1478
    %1480 = vdwg.mxu0
    %v1481 = vadd.f32 %v973, %v1476
    %v1482 = vadd.f32 %v974, %v1479
    %s1483 = scalar_lea.vmem %s27, 1
    %v1484 = vld [vmem:[%s1483] sm:$0x1]
    %s1485 = scalar_lea.vmem %s29, 1
    %v1486 = vld [vmem:[%s1485] sm:$0x1]
    %v1487 = vsel %vm273, %v1481, 0.0
    %1488 = vadd.xlane.f32.xlu0 %v1487
    %v1489 = vpop.xlane.xlu0 %1488
    %v1490 = vsel %vm273, %v1482, 0.0
    %1491 = vadd.xlane.f32.xlu0 %v1490
    %v1492 = vpop.xlane.xlu0 %1491
    %v1493 = vmul.f32 %v1489, %v786
    %v1494 = vmul.f32 %v1492, %v786
    %v1495 = vsub.f32 %v1481, %v1493
    %v1496 = vsub.f32 %v1482, %v1494
    %v1497 = vmul.f32 %v1495, %v1495
    %v1498 = vmul.f32 %v1496, %v1496
    %v1499 = vsel %vm273, %v1497, 0.0
    %1500 = vadd.xlane.f32.xlu0 %v1499
    %v1501 = vpop.xlane.xlu0 %1500
    %v1502 = vsel %vm273, %v1498, 0.0
    %1503 = vadd.xlane.f32.xlu0 %v1502
    %v1504 = vpop.xlane.xlu0 %1503
    %v1505 = vmul.f32 %v1501, %v786
    %v1506 = vmul.f32 %v1504, %v786
    %v1507 = vadd.f32 %v1505, 1e-05
    %v1508 = vadd.f32 %v1506, 1e-05
    %v1509 = vrsqrt.pop %v1507
    %v1510 = vmul.f32 %v1509, %v1507
    %v1511 = vmul.f32 %v1510, %v1509
    %v1512 = vmul.f32 0.5, %v1511
    %v1513 = vsub.f32 1.5, %v1512
    %v1514 = vmul.f32 %v1509, %v1513
    %vm1515 = vweird.f32 %v1507
    %vm1516 = vweird.f32 %v1509
    %vm1517 = vmor %vm1515, %vm1516
    %v1518 = vsel %vm1517, %v1509, %v1514
    %v1519 = vrsqrt.pop %v1508
    %v1520 = vmul.f32 %v1519, %v1508
    %v1521 = vmul.f32 %v1520, %v1519
    %v1522 = vmul.f32 0.5, %v1521
    %v1523 = vsub.f32 1.5, %v1522
    %v1524 = vmul.f32 %v1519, %v1523
    %vm1525 = vweird.f32 %v1508
    %vm1526 = vweird.f32 %v1519
    %vm1527 = vmor %vm1525, %vm1526
    %v1528 = vsel %vm1527, %v1519, %v1524
    %v1529 = vmul.f32 %v1495, %v1518
    %v1530 = vmul.f32 %v1496, %v1528
    %v1532 = vperm.slane %v1484, 0
    %v1534 = vmul.f32 %v1529, %v1532
    %v1535 = vmul.f32 %v1530, %v1532
    %v1537 = vperm.slane %v1486, 0
    %v1539 = vadd.f32 %v1534, %v1537
    %v1540 = vadd.f32 %v1535, %v1537
    %s1541 = scalar_lea.vmem %s31, 32
    %v1542 = vld [vmem:[%s1541] sm:$0xff]
    %v1543 = vld [vmem:[%s1541 + $0x8] sm:$0xff]
    %v1544 = vld [vmem:[%s1541 + $0x10] sm:$0xff]
    %v1545 = vld [vmem:[%s1541 + $0x18] sm:$0xff]
    %s1546 = scalar_lea.vmem %s33, 1
    %v1547 = vld [vmem:[%s1546] sm:$0x1]
    %v1549 = vperm.slane %v1547, 0
    %v1552 = vsel %vm273, %v1539, 0
    %v1555 = vsel %vm273, %v1540, 0
    %1557 = vmatpush.msra.mxu0 0.0
    %1558 = vmatpush.msra.mxu0 0.0
    %1559 = vmatpush.msra.mxu0 0.0
    %1560 = vmatpush.msra.mxu0 0.0
    %1561 = vmatpush.msra.mxu0 0.0
    %1562 = vmatpush.msra.mxu0 0.0
    %1563 = vmatpush.msra.mxu0 0.0
    %1564 = vmatpush.msra.mxu0 0.0
    %1565 = vmatpush.msra.mxu0 0.0
    %1566 = vmatpush.msra.mxu0 0.0
    %1567 = vmatpush.msra.mxu0 0.0
    %1568 = vmatpush.msra.mxu0 0.0
    %1569 = vmatpush.msra.mxu0 %v1545
    %1570 = vmatpush.msra.mxu0 %v1544
    %1571 = vmatpush.msra.mxu0 %v1543
    %1572 = vmatpush.msra.mxu0 %v1542
    %1573 = vmatmul.f32.gmra.mxu0 %v1552
    %v1574 = vpop.f32.mrf.mxu0
    %v1575 = vadd.f32 %v1549, %v1574
    %1576 = vmatmul.f32.gmra.mxu0 %v1555
    %v1577 = vpop.f32.mrf.mxu0
    %v1578 = vadd.f32 %v1549, %v1577
    %1579 = vdwg.mxu0
    %v1580 = vmax.f32 %v1575, 0.0
    %v1581 = vmax.f32 %v1578, 0.0
    %s1582 = scalar_lea.vmem %s35, 128
    %v1583 = vld [vmem:[%s1582] sm:$0xff]
    %v1584 = vld [vmem:[%s1582 + $0x8] sm:$0xff]
    %v1585 = vld [vmem:[%s1582 + $0x10] sm:$0xff]
    %v1586 = vld [vmem:[%s1582 + $0x18] sm:$0xff]
    %v1587 = vld [vmem:[%s1582 + $0x20] sm:$0xff]
    %v1588 = vld [vmem:[%s1582 + $0x28] sm:$0xff]
    %v1589 = vld [vmem:[%s1582 + $0x30] sm:$0xff]
    %v1590 = vld [vmem:[%s1582 + $0x38] sm:$0xff]
    %v1591 = vld [vmem:[%s1582 + $0x40] sm:$0xff]
    %v1592 = vld [vmem:[%s1582 + $0x48] sm:$0xff]
    %v1593 = vld [vmem:[%s1582 + $0x50] sm:$0xff]
    %v1594 = vld [vmem:[%s1582 + $0x58] sm:$0xff]
    %v1595 = vld [vmem:[%s1582 + $0x60] sm:$0xff]
    %v1596 = vld [vmem:[%s1582 + $0x68] sm:$0xff]
    %v1597 = vld [vmem:[%s1582 + $0x70] sm:$0xff]
    %v1598 = vld [vmem:[%s1582 + $0x78] sm:$0xff]
    %s1599 = scalar_lea.vmem %s37, 1
    %v1600 = vld [vmem:[%s1599] sm:$0x1]
    %v1602 = vperm.slane %v1600, 0
    %1604 = vmatpush.msra.mxu0 %v1598
    %1605 = vmatpush.msra.mxu0 %v1597
    %1606 = vmatpush.msra.mxu0 %v1596
    %1607 = vmatpush.msra.mxu0 %v1595
    %1608 = vmatpush.msra.mxu0 %v1594
    %1609 = vmatpush.msra.mxu0 %v1593
    %1610 = vmatpush.msra.mxu0 %v1592
    %1611 = vmatpush.msra.mxu0 %v1591
    %1612 = vmatpush.msra.mxu0 %v1590
    %1613 = vmatpush.msra.mxu0 %v1589
    %1614 = vmatpush.msra.mxu0 %v1588
    %1615 = vmatpush.msra.mxu0 %v1587
    %1616 = vmatpush.msra.mxu0 %v1586
    %1617 = vmatpush.msra.mxu0 %v1585
    %1618 = vmatpush.msra.mxu0 %v1584
    %1619 = vmatpush.msra.mxu0 %v1583
    %1620 = vmatmul.f32.gmra.mxu0 %v1580
    %v1621 = vpop.f32.mrf.mxu0
    %v1622 = vadd.f32 %v1602, %v1621
    %1623 = vmatmul.f32.gmra.mxu0 %v1581
    %v1624 = vpop.f32.mrf.mxu0
    %v1625 = vadd.f32 %v1602, %v1624
    %1626 = vdwg.mxu0
    %v1627 = vadd.f32 %v1539, %v1622
    %v1628 = vadd.f32 %v1540, %v1625
    %s1629 = scalar_lea.vmem %s39, 1
    %v1630 = vld [vmem:[%s1629] sm:$0x1]
    %s1631 = scalar_lea.vmem %s41, 1
    %v1632 = vld [vmem:[%s1631] sm:$0x1]
    %v1633 = vsel %vm273, %v1627, 0.0
    %1634 = vadd.xlane.f32.xlu0 %v1633
    %v1635 = vpop.xlane.xlu0 %1634
    %v1636 = vsel %vm273, %v1628, 0.0
    %1637 = vadd.xlane.f32.xlu0 %v1636
    %v1638 = vpop.xlane.xlu0 %1637
    %v1639 = vmul.f32 %v1635, %v786
    %v1640 = vmul.f32 %v1638, %v786
    %v1641 = vsub.f32 %v1627, %v1639
    %v1642 = vsub.f32 %v1628, %v1640
    %v1643 = vmul.f32 %v1641, %v1641
    %v1644 = vmul.f32 %v1642, %v1642
    %v1645 = vsel %vm273, %v1643, 0.0
    %1646 = vadd.xlane.f32.xlu0 %v1645
    %v1647 = vpop.xlane.xlu0 %1646
    %v1648 = vsel %vm273, %v1644, 0.0
    %1649 = vadd.xlane.f32.xlu0 %v1648
    %v1650 = vpop.xlane.xlu0 %1649
    %v1651 = vmul.f32 %v1647, %v786
    %v1652 = vmul.f32 %v1650, %v786
    %v1653 = vadd.f32 %v1651, 1e-05
    %v1654 = vadd.f32 %v1652, 1e-05
    %v1655 = vrsqrt.pop %v1653
    %v1656 = vmul.f32 %v1655, %v1653
    %v1657 = vmul.f32 %v1656, %v1655
    %v1658 = vmul.f32 0.5, %v1657
    %v1659 = vsub.f32 1.5, %v1658
    %v1660 = vmul.f32 %v1655, %v1659
    %vm1661 = vweird.f32 %v1653
    %vm1662 = vweird.f32 %v1655
    %vm1663 = vmor %vm1661, %vm1662
    %v1664 = vsel %vm1663, %v1655, %v1660
    %v1665 = vrsqrt.pop %v1654
    %v1666 = vmul.f32 %v1665, %v1654
    %v1667 = vmul.f32 %v1666, %v1665
    %v1668 = vmul.f32 0.5, %v1667
    %v1669 = vsub.f32 1.5, %v1668
    %v1670 = vmul.f32 %v1665, %v1669
    %vm1671 = vweird.f32 %v1654
    %vm1672 = vweird.f32 %v1665
    %vm1673 = vmor %vm1671, %vm1672
    %v1674 = vsel %vm1673, %v1665, %v1670
    %v1675 = vmul.f32 %v1641, %v1664
    %v1676 = vmul.f32 %v1642, %v1674
    %v1678 = vperm.slane %v1630, 0
    %v1680 = vmul.f32 %v1675, %v1678
    %v1681 = vmul.f32 %v1676, %v1678
    %v1683 = vperm.slane %v1632, 0
    %v1685 = vadd.f32 %v1680, %v1683
    %v1686 = vadd.f32 %v1681, %v1683
    %v1687 = vld [vmem:[%s3] sm:$0xff]
    %v1688 = vld [vmem:[%s3 + $0x8] sm:$0xff]
    %v1689 = vld [vmem:[%s43] sm:$0xff]
    %v1690 = vld [vmem:[%s43 + $0x8] sm:$0xff]
    %v1691 = vld [vmem:[#allocation2] sm:$0x1]
    %v1693 = vperm.slane %v1691, 0
    %v1696 = vsel %vm229, %v1687, 0
    %v1699 = vsel %vm229, %v1688, 0
    %1701 = vmatpush.msra.mxu0 0.0
    %1702 = vmatpush.msra.mxu0 0.0
    %1703 = vmatpush.msra.mxu0 0.0
    %1704 = vmatpush.msra.mxu0 0.0
    %1705 = vmatpush.msra.mxu0 0.0
    %1706 = vmatpush.msra.mxu0 0.0
    %1707 = vmatpush.msra.mxu0 0.0
    %1708 = vmatpush.msra.mxu0 0.0
    %1709 = vmatpush.msra.mxu0 0.0
    %1710 = vmatpush.msra.mxu0 0.0
    %1711 = vmatpush.msra.mxu0 0.0
    %1712 = vmatpush.msra.mxu0 0.0
    %1713 = vmatpush.msra.mxu0 0.0
    %1714 = vmatpush.msra.mxu0 0.0
    %1715 = vmatpush.msra.mxu0 %v1690
    %1716 = vmatpush.msra.mxu0 %v1689
    %1717 = vmatmul.f32.gmra.mxu0 %v1696
    %v1718 = vpop.f32.mrf.mxu0
    %v1719 = vadd.f32 %v1693, %v1718
    %1720 = vmatmul.f32.gmra.mxu0 %v1699
    %v1721 = vpop.f32.mrf.mxu0
    %v1722 = vadd.f32 %v1693, %v1721
    %1723 = vdwg.mxu0
    %v1724 = vmul.f32 %v1719, 5.656854
    %v1725 = vmul.f32 %v1722, 5.656854
    %v1726 = vld [vmem:[%s7] sm:$0xff]
    %v1727 = vld [vmem:[%s7 + $0x8] sm:$0xff]
    %v1728 = vadd.f32 %v1724, %v1726
    %v1729 = vadd.f32 %v1725, %v1727
    %v1730 = vld [vmem:[%s47] sm:$0xff]
    %v1731 = vld [vmem:[%s47 + $0x8] sm:$0xff]
    %v1732 = vld [vmem:[%s47 + $0x10] sm:$0xff]
    %v1733 = vld [vmem:[%s47 + $0x18] sm:$0xff]
    %v1734 = vld [vmem:[%s49] sm:$0x1]
    %v1736 = vperm.slane %v1734, 0
    %v1739 = vsel %vm273, %v1728, 0
    %v1742 = vsel %vm273, %v1729, 0
    %1744 = vmatpush.msra.mxu0 0.0
    %1745 = vmatpush.msra.mxu0 0.0
    %1746 = vmatpush.msra.mxu0 0.0
    %1747 = vmatpush.msra.mxu0 0.0
    %1748 = vmatpush.msra.mxu0 0.0
    %1749 = vmatpush.msra.mxu0 0.0
    %1750 = vmatpush.msra.mxu0 0.0
    %1751 = vmatpush.msra.mxu0 0.0
    %1752 = vmatpush.msra.mxu0 0.0
    %1753 = vmatpush.msra.mxu0 0.0
    %1754 = vmatpush.msra.mxu0 0.0
    %1755 = vmatpush.msra.mxu0 0.0
    %1756 = vmatpush.msra.mxu0 %v1733
    %1757 = vmatpush.msra.mxu0 %v1732
    %1758 = vmatpush.msra.mxu0 %v1731
    %1759 = vmatpush.msra.mxu0 %v1730
    %1760 = vmatmul.f32.gmra.mxu0 %v1739
    %v1761 = vpop.f32.mrf.mxu0
    %v1762 = vadd.f32 %v1736, %v1761
    %1763 = vmatmul.f32.gmra.mxu0 %v1742
    %v1764 = vpop.f32.mrf.mxu0
    %v1765 = vadd.f32 %v1736, %v1764
    %1766 = vdwg.mxu0
    %1769 = vrot.lane.b32.xlu0 %v1762, 96
    %v1770 = vpop.permute.xlu0 %1769
    %1771 = vrot.lane.b32.xlu0 %v1765, 96
    %v1772 = vpop.permute.xlu0 %1771
    %v1773 = vsel %vm309, %v1762, 0
    %v1775 = vsel %vm309, %v1765, 0
    %v1777 = vsel %vm309, %v1770, 0
    %v1779 = vsel %vm309, %v1772, 0
    %1781 = vmatpush.xpose.msra.mxu0 0.0
    %1782 = vmatpush.xpose.msra.mxu0 0.0
    %1783 = vmatpush.xpose.msra.mxu0 0.0
    %1784 = vmatpush.xpose.msra.mxu0 0.0
    %1785 = vmatpush.xpose.msra.mxu0 0.0
    %1786 = vmatpush.xpose.msra.mxu0 0.0
    %1787 = vmatpush.xpose.msra.mxu0 0.0
    %1788 = vmatpush.xpose.msra.mxu0 0.0
    %1789 = vmatpush.xpose.msra.mxu0 0.0
    %1790 = vmatpush.xpose.msra.mxu0 0.0
    %1791 = vmatpush.xpose.msra.mxu0 0.0
    %1792 = vmatpush.xpose.msra.mxu0 0.0
    %1793 = vmatpush.xpose.msra.mxu0 0.0
    %1794 = vmatpush.xpose.msra.mxu0 0.0
    %1795 = vmatpush.xpose.msra.mxu0 %v1779
    %1796 = vmatpush.xpose.msra.mxu0 %v1777
    %1797 = vmatmul.f32.gmra.mxu0 %v1773
    %v1798 = vpop.f32.mrf.mxu0
    %v1799 = vadd.f32 0.0, %v1798
    %1800 = vmatmul.f32.gmra.mxu0 %v1775
    %v1801 = vpop.f32.mrf.mxu0
    %v1802 = vadd.f32 0.0, %v1801
    %1803 = vdwg.mxu0
    %v1804 = vmul.f32 %v1799, 0.35355338
    %v1805 = vmul.f32 %v1802, 0.35355338
    %v1806 = vadd.f32 %v1804, %v217
    %v1807 = vadd.f32 %v1805, %v218
    %v1808 = vsel %vm229, %v1806, -inf
    %1809 = vmax.xlane.f32.xlu0 %v1808
    %v1810 = vpop.xlane.xlu0 %1809
    %v1811 = vsel %vm229, %v1807, -inf
    %1812 = vmax.xlane.f32.xlu0 %v1811
    %v1813 = vpop.xlane.xlu0 %1812
    %v1814 = vsub.f32 %v1806, %v1810
    %v1815 = vsub.f32 %v1807, %v1813
    %v1816 = vmul.f32 %v1814, 1.442695
    %v1817 = vpow.pop %v1816
    %v1818 = vmul.f32 %v1815, 1.442695
    %v1819 = vpow.pop %v1818
    %v1820 = vsel %vm229, %v1817, 0.0
    %1821 = vadd.xlane.f32.xlu0 %v1820
    %v1822 = vpop.xlane.xlu0 %1821
    %v1823 = vsel %vm229, %v1819, 0.0
    %1824 = vadd.xlane.f32.xlu0 %v1823
    %v1825 = vpop.xlane.xlu0 %1824
    %v1826 = vrcp.pop %v1822
    %v1827 = vrcp.pop %v1825
    %v1828 = vmul.f32 %v1817, %v1826
    %v1829 = vmul.f32 %v1819, %v1827
    %1830 = vrot.lane.b32.xlu0 %v1762, 64
    %v1831 = vpop.permute.xlu0 %1830
    %1832 = vrot.lane.b32.xlu0 %v1765, 64
    %v1833 = vpop.permute.xlu0 %1832
    %v1837 = vsel %vm229, %v1828, 0
    %v1840 = vsel %vm229, %v1829, 0
    %1842 = vmatpush.msra.mxu0 0.0
    %1843 = vmatpush.msra.mxu0 0.0
    %1844 = vmatpush.msra.mxu0 0.0
    %1845 = vmatpush.msra.mxu0 0.0
    %1846 = vmatpush.msra.mxu0 0.0
    %1847 = vmatpush.msra.mxu0 0.0
    %1848 = vmatpush.msra.mxu0 0.0
    %1849 = vmatpush.msra.mxu0 0.0
    %1850 = vmatpush.msra.mxu0 0.0
    %1851 = vmatpush.msra.mxu0 0.0
    %1852 = vmatpush.msra.mxu0 0.0
    %1853 = vmatpush.msra.mxu0 0.0
    %1854 = vmatpush.msra.mxu0 0.0
    %1855 = vmatpush.msra.mxu0 0.0
    %1856 = vmatpush.msra.mxu0 %v1833
    %1857 = vmatpush.msra.mxu0 %v1831
    %1858 = vmatmul.f32.gmra.mxu0 %v1837
    %v1859 = vpop.f32.mrf.mxu0
    %v1860 = vadd.f32 0.0, %v1859
    %1861 = vmatmul.f32.gmra.mxu0 %v1840
    %v1862 = vpop.f32.mrf.mxu0
    %v1863 = vadd.f32 0.0, %v1862
    %1864 = vdwg.mxu0
    %1865 = vrot.lane.b32.xlu0 %v1762, 120
    %v1866 = vpop.permute.xlu0 %1865
    %1867 = vrot.lane.b32.xlu0 %v1765, 120
    %v1868 = vpop.permute.xlu0 %1867
    %1869 = vrot.lane.b32.xlu0 %v1762, 88
    %v1870 = vpop.permute.xlu0 %1869
    %1871 = vrot.lane.b32.xlu0 %v1765, 88
    %v1872 = vpop.permute.xlu0 %1871
    %v1873 = vsel %vm309, %v1866, 0
    %v1875 = vsel %vm309, %v1868, 0
    %v1877 = vsel %vm309, %v1870, 0
    %v1879 = vsel %vm309, %v1872, 0
    %1881 = vmatpush.xpose.msra.mxu0 0.0
    %1882 = vmatpush.xpose.msra.mxu0 0.0
    %1883 = vmatpush.xpose.msra.mxu0 0.0
    %1884 = vmatpush.xpose.msra.mxu0 0.0
    %1885 = vmatpush.xpose.msra.mxu0 0.0
    %1886 = vmatpush.xpose.msra.mxu0 0.0
    %1887 = vmatpush.xpose.msra.mxu0 0.0
    %1888 = vmatpush.xpose.msra.mxu0 0.0
    %1889 = vmatpush.xpose.msra.mxu0 0.0
    %1890 = vmatpush.xpose.msra.mxu0 0.0
    %1891 = vmatpush.xpose.msra.mxu0 0.0
    %1892 = vmatpush.xpose.msra.mxu0 0.0
    %1893 = vmatpush.xpose.msra.mxu0 0.0
    %1894 = vmatpush.xpose.msra.mxu0 0.0
    %1895 = vmatpush.xpose.msra.mxu0 %v1879
    %1896 = vmatpush.xpose.msra.mxu0 %v1877
    %1897 = vmatmul.f32.gmra.mxu0 %v1873
    %v1898 = vpop.f32.mrf.mxu0
    %v1899 = vadd.f32 0.0, %v1898
    %1900 = vmatmul.f32.gmra.mxu0 %v1875
    %v1901 = vpop.f32.mrf.mxu0
    %v1902 = vadd.f32 0.0, %v1901
    %1903 = vdwg.mxu0
    %v1904 = vmul.f32 %v1899, 0.35355338
    %v1905 = vmul.f32 %v1902, 0.35355338
    %v1906 = vadd.f32 %v1904, %v217
    %v1907 = vadd.f32 %v1905, %v218
    %v1908 = vsel %vm229, %v1906, -inf
    %1909 = vmax.xlane.f32.xlu0 %v1908
    %v1910 = vpop.xlane.xlu0 %1909
    %v1911 = vsel %vm229, %v1907, -inf
    %1912 = vmax.xlane.f32.xlu0 %v1911
    %v1913 = vpop.xlane.xlu0 %1912
    %v1914 = vsub.f32 %v1906, %v1910
    %v1915 = vsub.f32 %v1907, %v1913
    %v1916 = vmul.f32 %v1914, 1.442695
    %v1917 = vpow.pop %v1916
    %v1918 = vmul.f32 %v1915, 1.442695
    %v1919 = vpow.pop %v1918
    %v1920 = vsel %vm229, %v1917, 0.0
    %1921 = vadd.xlane.f32.xlu0 %v1920
    %v1922 = vpop.xlane.xlu0 %1921
    %v1923 = vsel %vm229, %v1919, 0.0
    %1924 = vadd.xlane.f32.xlu0 %v1923
    %v1925 = vpop.xlane.xlu0 %1924
    %v1926 = vrcp.pop %v1922
    %v1927 = vrcp.pop %v1925
    %v1928 = vmul.f32 %v1917, %v1926
    %v1929 = vmul.f32 %v1919, %v1927
    %1930 = vrot.lane.b32.xlu0 %v1762, 56
    %v1931 = vpop.permute.xlu0 %1930
    %1932 = vrot.lane.b32.xlu0 %v1765, 56
    %v1933 = vpop.permute.xlu0 %1932
    %v1937 = vsel %vm229, %v1928, 0
    %v1940 = vsel %vm229, %v1929, 0
    %1942 = vmatpush.msra.mxu0 0.0
    %1943 = vmatpush.msra.mxu0 0.0
    %1944 = vmatpush.msra.mxu0 0.0
    %1945 = vmatpush.msra.mxu0 0.0
    %1946 = vmatpush.msra.mxu0 0.0
    %1947 = vmatpush.msra.mxu0 0.0
    %1948 = vmatpush.msra.mxu0 0.0
    %1949 = vmatpush.msra.mxu0 0.0
    %1950 = vmatpush.msra.mxu0 0.0
    %1951 = vmatpush.msra.mxu0 0.0
    %1952 = vmatpush.msra.mxu0 0.0
    %1953 = vmatpush.msra.mxu0 0.0
    %1954 = vmatpush.msra.mxu0 0.0
    %1955 = vmatpush.msra.mxu0 0.0
    %1956 = vmatpush.msra.mxu0 %v1933
    %1957 = vmatpush.msra.mxu0 %v1931
    %1958 = vmatmul.f32.gmra.mxu0 %v1937
    %v1959 = vpop.f32.mrf.mxu0
    %v1960 = vadd.f32 0.0, %v1959
    %1961 = vmatmul.f32.gmra.mxu0 %v1940
    %v1962 = vpop.f32.mrf.mxu0
    %v1963 = vadd.f32 0.0, %v1962
    %1964 = vdwg.mxu0
    %1965 = vrot.lane.b32.xlu0 %v1762, 112
    %v1966 = vpop.permute.xlu0 %1965
    %1967 = vrot.lane.b32.xlu0 %v1765, 112
    %v1968 = vpop.permute.xlu0 %1967
    %1969 = vrot.lane.b32.xlu0 %v1762, 80
    %v1970 = vpop.permute.xlu0 %1969
    %1971 = vrot.lane.b32.xlu0 %v1765, 80
    %v1972 = vpop.permute.xlu0 %1971
    %v1973 = vsel %vm309, %v1966, 0
    %v1975 = vsel %vm309, %v1968, 0
    %v1977 = vsel %vm309, %v1970, 0
    %v1979 = vsel %vm309, %v1972, 0
    %1981 = vmatpush.xpose.msra.mxu0 0.0
    %1982 = vmatpush.xpose.msra.mxu0 0.0
    %1983 = vmatpush.xpose.msra.mxu0 0.0
    %1984 = vmatpush.xpose.msra.mxu0 0.0
    %1985 = vmatpush.xpose.msra.mxu0 0.0
    %1986 = vmatpush.xpose.msra.mxu0 0.0
    %1987 = vmatpush.xpose.msra.mxu0 0.0
    %1988 = vmatpush.xpose.msra.mxu0 0.0
    %1989 = vmatpush.xpose.msra.mxu0 0.0
    %1990 = vmatpush.xpose.msra.mxu0 0.0
    %1991 = vmatpush.xpose.msra.mxu0 0.0
    %1992 = vmatpush.xpose.msra.mxu0 0.0
    %1993 = vmatpush.xpose.msra.mxu0 0.0
    %1994 = vmatpush.xpose.msra.mxu0 0.0
    %1995 = vmatpush.xpose.msra.mxu0 %v1979
    %1996 = vmatpush.xpose.msra.mxu0 %v1977
    %1997 = vmatmul.f32.gmra.mxu0 %v1973
    %v1998 = vpop.f32.mrf.mxu0
    %v1999 = vadd.f32 0.0, %v1998
    %2000 = vmatmul.f32.gmra.mxu0 %v1975
    %v2001 = vpop.f32.mrf.mxu0
    %v2002 = vadd.f32 0.0, %v2001
    %2003 = vdwg.mxu0
    %v2004 = vmul.f32 %v1999, 0.35355338
    %v2005 = vmul.f32 %v2002, 0.35355338
    %v2006 = vadd.f32 %v2004, %v217
    %v2007 = vadd.f32 %v2005, %v218
    %v2008 = vsel %vm229, %v2006, -inf
    %2009 = vmax.xlane.f32.xlu0 %v2008
    %v2010 = vpop.xlane.xlu0 %2009
    %v2011 = vsel %vm229, %v2007, -inf
    %2012 = vmax.xlane.f32.xlu0 %v2011
    %v2013 = vpop.xlane.xlu0 %2012
    %v2014 = vsub.f32 %v2006, %v2010
    %v2015 = vsub.f32 %v2007, %v2013
    %v2016 = vmul.f32 %v2014, 1.442695
    %v2017 = vpow.pop %v2016
    %v2018 = vmul.f32 %v2015, 1.442695
    %v2019 = vpow.pop %v2018
    %v2020 = vsel %vm229, %v2017, 0.0
    %2021 = vadd.xlane.f32.xlu0 %v2020
    %v2022 = vpop.xlane.xlu0 %2021
    %v2023 = vsel %vm229, %v2019, 0.0
    %2024 = vadd.xlane.f32.xlu0 %v2023
    %v2025 = vpop.xlane.xlu0 %2024
    %v2026 = vrcp.pop %v2022
    %v2027 = vrcp.pop %v2025
    %v2028 = vmul.f32 %v2017, %v2026
    %v2029 = vmul.f32 %v2019, %v2027
    %2030 = vrot.lane.b32.xlu0 %v1762, 48
    %v2031 = vpop.permute.xlu0 %2030
    %2032 = vrot.lane.b32.xlu0 %v1765, 48
    %v2033 = vpop.permute.xlu0 %2032
    %v2037 = vsel %vm229, %v2028, 0
    %v2040 = vsel %vm229, %v2029, 0
    %2042 = vmatpush.msra.mxu0 0.0
    %2043 = vmatpush.msra.mxu0 0.0
    %2044 = vmatpush.msra.mxu0 0.0
    %2045 = vmatpush.msra.mxu0 0.0
    %2046 = vmatpush.msra.mxu0 0.0
    %2047 = vmatpush.msra.mxu0 0.0
    %2048 = vmatpush.msra.mxu0 0.0
    %2049 = vmatpush.msra.mxu0 0.0
    %2050 = vmatpush.msra.mxu0 0.0
    %2051 = vmatpush.msra.mxu0 0.0
    %2052 = vmatpush.msra.mxu0 0.0
    %2053 = vmatpush.msra.mxu0 0.0
    %2054 = vmatpush.msra.mxu0 0.0
    %2055 = vmatpush.msra.mxu0 0.0
    %2056 = vmatpush.msra.mxu0 %v2033
    %2057 = vmatpush.msra.mxu0 %v2031
    %2058 = vmatmul.f32.gmra.mxu0 %v2037
    %v2059 = vpop.f32.mrf.mxu0
    %v2060 = vadd.f32 0.0, %v2059
    %2061 = vmatmul.f32.gmra.mxu0 %v2040
    %v2062 = vpop.f32.mrf.mxu0
    %v2063 = vadd.f32 0.0, %v2062
    %2064 = vdwg.mxu0
    %2065 = vrot.lane.b32.xlu0 %v1762, 104
    %v2066 = vpop.permute.xlu0 %2065
    %2067 = vrot.lane.b32.xlu0 %v1765, 104
    %v2068 = vpop.permute.xlu0 %2067
    %2069 = vrot.lane.b32.xlu0 %v1762, 72
    %v2070 = vpop.permute.xlu0 %2069
    %2071 = vrot.lane.b32.xlu0 %v1765, 72
    %v2072 = vpop.permute.xlu0 %2071
    %v2073 = vsel %vm309, %v2066, 0
    %v2075 = vsel %vm309, %v2068, 0
    %v2077 = vsel %vm309, %v2070, 0
    %v2079 = vsel %vm309, %v2072, 0
    %2081 = vmatpush.xpose.msra.mxu0 0.0
    %2082 = vmatpush.xpose.msra.mxu0 0.0
    %2083 = vmatpush.xpose.msra.mxu0 0.0
    %2084 = vmatpush.xpose.msra.mxu0 0.0
    %2085 = vmatpush.xpose.msra.mxu0 0.0
    %2086 = vmatpush.xpose.msra.mxu0 0.0
    %2087 = vmatpush.xpose.msra.mxu0 0.0
    %2088 = vmatpush.xpose.msra.mxu0 0.0
    %2089 = vmatpush.xpose.msra.mxu0 0.0
    %2090 = vmatpush.xpose.msra.mxu0 0.0
    %2091 = vmatpush.xpose.msra.mxu0 0.0
    %2092 = vmatpush.xpose.msra.mxu0 0.0
    %2093 = vmatpush.xpose.msra.mxu0 0.0
    %2094 = vmatpush.xpose.msra.mxu0 0.0
    %2095 = vmatpush.xpose.msra.mxu0 %v2079
    %2096 = vmatpush.xpose.msra.mxu0 %v2077
    %2097 = vmatmul.f32.gmra.mxu0 %v2073
    %v2098 = vpop.f32.mrf.mxu0
    %v2099 = vadd.f32 0.0, %v2098
    %2100 = vmatmul.f32.gmra.mxu0 %v2075
    %v2101 = vpop.f32.mrf.mxu0
    %v2102 = vadd.f32 0.0, %v2101
    %2103 = vdwg.mxu0
    %v2104 = vmul.f32 %v2099, 0.35355338
    %v2105 = vmul.f32 %v2102, 0.35355338
    %v2106 = vadd.f32 %v2104, %v217
    %v2107 = vadd.f32 %v2105, %v218
    %v2108 = vsel %vm229, %v2106, -inf
    %2109 = vmax.xlane.f32.xlu0 %v2108
    %v2110 = vpop.xlane.xlu0 %2109
    %v2111 = vsel %vm229, %v2107, -inf
    %2112 = vmax.xlane.f32.xlu0 %v2111
    %v2113 = vpop.xlane.xlu0 %2112
    %v2114 = vsub.f32 %v2106, %v2110
    %v2115 = vsub.f32 %v2107, %v2113
    %v2116 = vmul.f32 %v2114, 1.442695
    %v2117 = vpow.pop %v2116
    %v2118 = vmul.f32 %v2115, 1.442695
    %v2119 = vpow.pop %v2118
    %v2120 = vsel %vm229, %v2117, 0.0
    %2121 = vadd.xlane.f32.xlu0 %v2120
    %v2122 = vpop.xlane.xlu0 %2121
    %v2123 = vsel %vm229, %v2119, 0.0
    %2124 = vadd.xlane.f32.xlu0 %v2123
    %v2125 = vpop.xlane.xlu0 %2124
    %v2126 = vrcp.pop %v2122
    %v2127 = vrcp.pop %v2125
    %v2128 = vmul.f32 %v2117, %v2126
    %v2129 = vmul.f32 %v2119, %v2127
    %2130 = vrot.lane.b32.xlu0 %v1762, 40
    %v2131 = vpop.permute.xlu0 %2130
    %2132 = vrot.lane.b32.xlu0 %v1765, 40
    %v2133 = vpop.permute.xlu0 %2132
    %v2137 = vsel %vm229, %v2128, 0
    %v2140 = vsel %vm229, %v2129, 0
    %2142 = vmatpush.msra.mxu0 0.0
    %2143 = vmatpush.msra.mxu0 0.0
    %2144 = vmatpush.msra.mxu0 0.0
    %2145 = vmatpush.msra.mxu0 0.0
    %2146 = vmatpush.msra.mxu0 0.0
    %2147 = vmatpush.msra.mxu0 0.0
    %2148 = vmatpush.msra.mxu0 0.0
    %2149 = vmatpush.msra.mxu0 0.0
    %2150 = vmatpush.msra.mxu0 0.0
    %2151 = vmatpush.msra.mxu0 0.0
    %2152 = vmatpush.msra.mxu0 0.0
    %2153 = vmatpush.msra.mxu0 0.0
    %2154 = vmatpush.msra.mxu0 0.0
    %2155 = vmatpush.msra.mxu0 0.0
    %2156 = vmatpush.msra.mxu0 %v2133
    %2157 = vmatpush.msra.mxu0 %v2131
    %2158 = vmatmul.f32.gmra.mxu0 %v2137
    %v2159 = vpop.f32.mrf.mxu0
    %v2160 = vadd.f32 0.0, %v2159
    %2161 = vmatmul.f32.gmra.mxu0 %v2140
    %v2162 = vpop.f32.mrf.mxu0
    %v2163 = vadd.f32 0.0, %v2162
    %2164 = vdwg.mxu0
    %2167 = vrot.lane.b32.xlu0 %v1960, 8
    %v2168 = vpop.permute.xlu0 %2167
    %2169 = vrot.lane.b32.xlu0 %v1963, 8
    %v2170 = vpop.permute.xlu0 %2169
    %2175 = vrot.lane.b32.xlu0 %v2060, 16
    %v2176 = vpop.permute.xlu0 %2175
    %2177 = vrot.lane.b32.xlu0 %v2063, 16
    %v2178 = vpop.permute.xlu0 %2177
    %2183 = vrot.lane.b32.xlu0 %v2160, 24
    %v2184 = vpop.permute.xlu0 %2183
    %2185 = vrot.lane.b32.xlu0 %v2163, 24
    %v2186 = vpop.permute.xlu0 %2185
    %v2189 = vsel %vm309, %v1860, %v2168
    %v2190 = vsel %vm309, %v1863, %v2170
    %v2191 = vsel %vm229, %v2189, %v2176
    %v2192 = vsel %vm229, %v2190, %v2178
    %v2193 = vsel %vm730, %v2191, %v2184
    %v2194 = vsel %vm730, %v2192, %v2186
    %v2195 = vld [vmem:[%s51] sm:$0xff]
    %v2196 = vld [vmem:[%s51 + $0x8] sm:$0xff]
    %v2197 = vld [vmem:[%s51 + $0x10] sm:$0xff]
    %v2198 = vld [vmem:[%s51 + $0x18] sm:$0xff]
    %v2199 = vld [vmem:[%s53] sm:$0x1]
    %v2201 = vperm.slane %v2199, 0
    %v2204 = vsel %vm273, %v2193, 0
    %v2207 = vsel %vm273, %v2194, 0
    %2209 = vmatpush.msra.mxu0 0.0
    %2210 = vmatpush.msra.mxu0 0.0
    %2211 = vmatpush.msra.mxu0 0.0
    %2212 = vmatpush.msra.mxu0 0.0
    %2213 = vmatpush.msra.mxu0 0.0
    %2214 = vmatpush.msra.mxu0 0.0
    %2215 = vmatpush.msra.mxu0 0.0
    %2216 = vmatpush.msra.mxu0 0.0
    %2217 = vmatpush.msra.mxu0 0.0
    %2218 = vmatpush.msra.mxu0 0.0
    %2219 = vmatpush.msra.mxu0 0.0
    %2220 = vmatpush.msra.mxu0 0.0
    %2221 = vmatpush.msra.mxu0 %v2198
    %2222 = vmatpush.msra.mxu0 %v2197
    %2223 = vmatpush.msra.mxu0 %v2196
    %2224 = vmatpush.msra.mxu0 %v2195
    %2225 = vmatmul.f32.gmra.mxu0 %v2204
    %v2226 = vpop.f32.mrf.mxu0
    %v2227 = vadd.f32 %v2201, %v2226
    %2228 = vmatmul.f32.gmra.mxu0 %v2207
    %v2229 = vpop.f32.mrf.mxu0
    %v2230 = vadd.f32 %v2201, %v2229
    %2231 = vdwg.mxu0
    %v2232 = vadd.f32 %v1728, %v2227
    %v2233 = vadd.f32 %v1729, %v2230
    %v2234 = vld [vmem:[%s55] sm:$0x1]
    %v2235 = vld [vmem:[%s57] sm:$0x1]
    %v2236 = vsel %vm273, %v2232, 0.0
    %2237 = vadd.xlane.f32.xlu0 %v2236
    %v2238 = vpop.xlane.xlu0 %2237
    %v2239 = vsel %vm273, %v2233, 0.0
    %2240 = vadd.xlane.f32.xlu0 %v2239
    %v2241 = vpop.xlane.xlu0 %2240
    %v2242 = vmul.f32 %v2238, %v786
    %v2243 = vmul.f32 %v2241, %v786
    %v2244 = vsub.f32 %v2232, %v2242
    %v2245 = vsub.f32 %v2233, %v2243
    %v2246 = vmul.f32 %v2244, %v2244
    %v2247 = vmul.f32 %v2245, %v2245
    %v2248 = vsel %vm273, %v2246, 0.0
    %2249 = vadd.xlane.f32.xlu0 %v2248
    %v2250 = vpop.xlane.xlu0 %2249
    %v2251 = vsel %vm273, %v2247, 0.0
    %2252 = vadd.xlane.f32.xlu0 %v2251
    %v2253 = vpop.xlane.xlu0 %2252
    %v2254 = vmul.f32 %v2250, %v786
    %v2255 = vmul.f32 %v2253, %v786
    %v2256 = vadd.f32 %v2254, 1e-05
    %v2257 = vadd.f32 %v2255, 1e-05
    %v2258 = vrsqrt.pop %v2256
    %v2259 = vmul.f32 %v2258, %v2256
    %v2260 = vmul.f32 %v2259, %v2258
    %v2261 = vmul.f32 0.5, %v2260
    %v2262 = vsub.f32 1.5, %v2261
    %v2263 = vmul.f32 %v2258, %v2262
    %vm2264 = vweird.f32 %v2256
    %vm2265 = vweird.f32 %v2258
    %vm2266 = vmor %vm2264, %vm2265
    %v2267 = vsel %vm2266, %v2258, %v2263
    %v2268 = vrsqrt.pop %v2257
    %v2269 = vmul.f32 %v2268, %v2257
    %v2270 = vmul.f32 %v2269, %v2268
    %v2271 = vmul.f32 0.5, %v2270
    %v2272 = vsub.f32 1.5, %v2271
    %v2273 = vmul.f32 %v2268, %v2272
    %vm2274 = vweird.f32 %v2257
    %vm2275 = vweird.f32 %v2268
    %vm2276 = vmor %vm2274, %vm2275
    %v2277 = vsel %vm2276, %v2268, %v2273
    %v2278 = vmul.f32 %v2244, %v2267
    %v2279 = vmul.f32 %v2245, %v2277
    %v2281 = vperm.slane %v2234, 0
    %v2283 = vmul.f32 %v2278, %v2281
    %v2284 = vmul.f32 %v2279, %v2281
    %v2286 = vperm.slane %v2235, 0
    %v2288 = vadd.f32 %v2283, %v2286
    %v2289 = vadd.f32 %v2284, %v2286
    %v2290 = vld [vmem:[%s59] sm:$0xff]
    %v2291 = vld [vmem:[%s59 + $0x8] sm:$0xff]
    %v2292 = vld [vmem:[%s59 + $0x10] sm:$0xff]
    %v2293 = vld [vmem:[%s59 + $0x18] sm:$0xff]
    %v2294 = vld [vmem:[%s61] sm:$0x1]
    %v2296 = vperm.slane %v2294, 0
    %v2299 = vsel %vm273, %v2288, 0
    %v2302 = vsel %vm273, %v2289, 0
    %2304 = vmatpush.msra.mxu0 0.0
    %2305 = vmatpush.msra.mxu0 0.0
    %2306 = vmatpush.msra.mxu0 0.0
    %2307 = vmatpush.msra.mxu0 0.0
    %2308 = vmatpush.msra.mxu0 0.0
    %2309 = vmatpush.msra.mxu0 0.0
    %2310 = vmatpush.msra.mxu0 0.0
    %2311 = vmatpush.msra.mxu0 0.0
    %2312 = vmatpush.msra.mxu0 0.0
    %2313 = vmatpush.msra.mxu0 0.0
    %2314 = vmatpush.msra.mxu0 0.0
    %2315 = vmatpush.msra.mxu0 0.0
    %2316 = vmatpush.msra.mxu0 %v2293
    %2317 = vmatpush.msra.mxu0 %v2292
    %2318 = vmatpush.msra.mxu0 %v2291
    %2319 = vmatpush.msra.mxu0 %v2290
    %2320 = vmatmul.f32.gmra.mxu0 %v2299
    %v2321 = vpop.f32.mrf.mxu0
    %v2322 = vadd.f32 %v2296, %v2321
    %2323 = vmatmul.f32.gmra.mxu0 %v2302
    %v2324 = vpop.f32.mrf.mxu0
    %v2325 = vadd.f32 %v2296, %v2324
    %2326 = vdwg.mxu0
    %v2327 = vld [vmem:[%s63] sm:$0xff]
    %v2328 = vld [vmem:[%s63 + $0x8] sm:$0xff]
    %v2329 = vld [vmem:[%s63 + $0x10] sm:$0xff]
    %v2330 = vld [vmem:[%s63 + $0x18] sm:$0xff]
    %v2331 = vld [vmem:[%s65] sm:$0x1]
    %v2333 = vperm.slane %v2331, 0
    %v2336 = vsel %vm273, %v1685, 0
    %v2339 = vsel %vm273, %v1686, 0
    %2341 = vmatpush.msra.mxu0 0.0
    %2342 = vmatpush.msra.mxu0 0.0
    %2343 = vmatpush.msra.mxu0 0.0
    %2344 = vmatpush.msra.mxu0 0.0
    %2345 = vmatpush.msra.mxu0 0.0
    %2346 = vmatpush.msra.mxu0 0.0
    %2347 = vmatpush.msra.mxu0 0.0
    %2348 = vmatpush.msra.mxu0 0.0
    %2349 = vmatpush.msra.mxu0 0.0
    %2350 = vmatpush.msra.mxu0 0.0
    %2351 = vmatpush.msra.mxu0 0.0
    %2352 = vmatpush.msra.mxu0 0.0
    %2353 = vmatpush.msra.mxu0 %v2330
    %2354 = vmatpush.msra.mxu0 %v2329
    %2355 = vmatpush.msra.mxu0 %v2328
    %2356 = vmatpush.msra.mxu0 %v2327
    %2357 = vmatmul.f32.gmra.mxu0 %v2336
    %v2358 = vpop.f32.mrf.mxu0
    %v2359 = vadd.f32 %v2333, %v2358
    %2360 = vmatmul.f32.gmra.mxu0 %v2339
    %v2361 = vpop.f32.mrf.mxu0
    %v2362 = vadd.f32 %v2333, %v2361
    %2363 = vdwg.mxu0
    %v2365 = vsel %vm309, %v2322, 0
    %v2368 = vsel %vm309, %v2325, 0
    %v2371 = vsel %vm309, %v2359, 0
    %v2374 = vsel %vm309, %v2362, 0
    %2376 = vmatpush.xpose.msra.mxu0 0.0
    %2377 = vmatpush.xpose.msra.mxu0 0.0
    %2378 = vmatpush.xpose.msra.mxu0 0.0
    %2379 = vmatpush.xpose.msra.mxu0 0.0
    %2380 = vmatpush.xpose.msra.mxu0 0.0
    %2381 = vmatpush.xpose.msra.mxu0 0.0
    %2382 = vmatpush.xpose.msra.mxu0 0.0
    %2383 = vmatpush.xpose.msra.mxu0 0.0
    %2384 = vmatpush.xpose.msra.mxu0 0.0
    %2385 = vmatpush.xpose.msra.mxu0 0.0
    %2386 = vmatpush.xpose.msra.mxu0 0.0
    %2387 = vmatpush.xpose.msra.mxu0 0.0
    %2388 = vmatpush.xpose.msra.mxu0 0.0
    %2389 = vmatpush.xpose.msra.mxu0 0.0
    %2390 = vmatpush.xpose.msra.mxu0 %v2374
    %2391 = vmatpush.xpose.msra.mxu0 %v2371
    %2392 = vmatmul.f32.gmra.mxu0 %v2365
    %v2393 = vpop.f32.mrf.mxu0
    %v2394 = vadd.f32 0.0, %v2393
    %2395 = vmatmul.f32.gmra.mxu0 %v2368
    %v2396 = vpop.f32.mrf.mxu0
    %v2397 = vadd.f32 0.0, %v2396
    %2398 = vdwg.mxu0
    %v2399 = vmul.f32 %v2394, 0.35355338
    %v2400 = vmul.f32 %v2397, 0.35355338
    %v2401 = vadd.f32 %v2399, %v219
    %v2402 = vadd.f32 %v2400, %v220
    %v2403 = vsel %vm229, %v2401, -inf
    %2404 = vmax.xlane.f32.xlu0 %v2403
    %v2405 = vpop.xlane.xlu0 %2404
    %v2406 = vsel %vm229, %v2402, -inf
    %2407 = vmax.xlane.f32.xlu0 %v2406
    %v2408 = vpop.xlane.xlu0 %2407
    %v2409 = vsub.f32 %v2401, %v2405
    %v2410 = vsub.f32 %v2402, %v2408
    %v2411 = vmul.f32 %v2409, 1.442695
    %v2412 = vpow.pop %v2411
    %v2413 = vmul.f32 %v2410, 1.442695
    %v2414 = vpow.pop %v2413
    %v2415 = vsel %vm229, %v2412, 0.0
    %2416 = vadd.xlane.f32.xlu0 %v2415
    %v2417 = vpop.xlane.xlu0 %2416
    %v2418 = vsel %vm229, %v2414, 0.0
    %2419 = vadd.xlane.f32.xlu0 %v2418
    %v2420 = vpop.xlane.xlu0 %2419
    %v2421 = vrcp.pop %v2417
    %v2422 = vrcp.pop %v2420
    %v2423 = vmul.f32 %v2412, %v2421
    %v2424 = vmul.f32 %v2414, %v2422
    %2425 = vrot.lane.b32.xlu0 %v2359, 96
    %v2426 = vpop.permute.xlu0 %2425
    %2427 = vrot.lane.b32.xlu0 %v2362, 96
    %v2428 = vpop.permute.xlu0 %2427
    %v2432 = vsel %vm229, %v2423, 0
    %v2435 = vsel %vm229, %v2424, 0
    %2437 = vmatpush.msra.mxu0 0.0
    %2438 = vmatpush.msra.mxu0 0.0
    %2439 = vmatpush.msra.mxu0 0.0
    %2440 = vmatpush.msra.mxu0 0.0
    %2441 = vmatpush.msra.mxu0 0.0
    %2442 = vmatpush.msra.mxu0 0.0
    %2443 = vmatpush.msra.mxu0 0.0
    %2444 = vmatpush.msra.mxu0 0.0
    %2445 = vmatpush.msra.mxu0 0.0
    %2446 = vmatpush.msra.mxu0 0.0
    %2447 = vmatpush.msra.mxu0 0.0
    %2448 = vmatpush.msra.mxu0 0.0
    %2449 = vmatpush.msra.mxu0 0.0
    %2450 = vmatpush.msra.mxu0 0.0
    %2451 = vmatpush.msra.mxu0 %v2428
    %2452 = vmatpush.msra.mxu0 %v2426
    %2453 = vmatmul.f32.gmra.mxu0 %v2432
    %v2454 = vpop.f32.mrf.mxu0
    %v2455 = vadd.f32 0.0, %v2454
    %2456 = vmatmul.f32.gmra.mxu0 %v2435
    %v2457 = vpop.f32.mrf.mxu0
    %v2458 = vadd.f32 0.0, %v2457
    %2459 = vdwg.mxu0
    %2460 = vrot.lane.b32.xlu0 %v2322, 120
    %v2461 = vpop.permute.xlu0 %2460
    %2462 = vrot.lane.b32.xlu0 %v2325, 120
    %v2463 = vpop.permute.xlu0 %2462
    %2464 = vrot.lane.b32.xlu0 %v2359, 120
    %v2465 = vpop.permute.xlu0 %2464
    %2466 = vrot.lane.b32.xlu0 %v2362, 120
    %v2467 = vpop.permute.xlu0 %2466
    %v2468 = vsel %vm309, %v2461, 0
    %v2470 = vsel %vm309, %v2463, 0
    %v2472 = vsel %vm309, %v2465, 0
    %v2474 = vsel %vm309, %v2467, 0
    %2476 = vmatpush.xpose.msra.mxu0 0.0
    %2477 = vmatpush.xpose.msra.mxu0 0.0
    %2478 = vmatpush.xpose.msra.mxu0 0.0
    %2479 = vmatpush.xpose.msra.mxu0 0.0
    %2480 = vmatpush.xpose.msra.mxu0 0.0
    %2481 = vmatpush.xpose.msra.mxu0 0.0
    %2482 = vmatpush.xpose.msra.mxu0 0.0
    %2483 = vmatpush.xpose.msra.mxu0 0.0
    %2484 = vmatpush.xpose.msra.mxu0 0.0
    %2485 = vmatpush.xpose.msra.mxu0 0.0
    %2486 = vmatpush.xpose.msra.mxu0 0.0
    %2487 = vmatpush.xpose.msra.mxu0 0.0
    %2488 = vmatpush.xpose.msra.mxu0 0.0
    %2489 = vmatpush.xpose.msra.mxu0 0.0
    %2490 = vmatpush.xpose.msra.mxu0 %v2474
    %2491 = vmatpush.xpose.msra.mxu0 %v2472
    %2492 = vmatmul.f32.gmra.mxu0 %v2468
    %v2493 = vpop.f32.mrf.mxu0
    %v2494 = vadd.f32 0.0, %v2493
    %2495 = vmatmul.f32.gmra.mxu0 %v2470
    %v2496 = vpop.f32.mrf.mxu0
    %v2497 = vadd.f32 0.0, %v2496
    %2498 = vdwg.mxu0
    %v2499 = vmul.f32 %v2494, 0.35355338
    %v2500 = vmul.f32 %v2497, 0.35355338
    %v2501 = vadd.f32 %v2499, %v219
    %v2502 = vadd.f32 %v2500, %v220
    %v2503 = vsel %vm229, %v2501, -inf
    %2504 = vmax.xlane.f32.xlu0 %v2503
    %v2505 = vpop.xlane.xlu0 %2504
    %v2506 = vsel %vm229, %v2502, -inf
    %2507 = vmax.xlane.f32.xlu0 %v2506
    %v2508 = vpop.xlane.xlu0 %2507
    %v2509 = vsub.f32 %v2501, %v2505
    %v2510 = vsub.f32 %v2502, %v2508
    %v2511 = vmul.f32 %v2509, 1.442695
    %v2512 = vpow.pop %v2511
    %v2513 = vmul.f32 %v2510, 1.442695
    %v2514 = vpow.pop %v2513
    %v2515 = vsel %vm229, %v2512, 0.0
    %2516 = vadd.xlane.f32.xlu0 %v2515
    %v2517 = vpop.xlane.xlu0 %2516
    %v2518 = vsel %vm229, %v2514, 0.0
    %2519 = vadd.xlane.f32.xlu0 %v2518
    %v2520 = vpop.xlane.xlu0 %2519
    %v2521 = vrcp.pop %v2517
    %v2522 = vrcp.pop %v2520
    %v2523 = vmul.f32 %v2512, %v2521
    %v2524 = vmul.f32 %v2514, %v2522
    %2525 = vrot.lane.b32.xlu0 %v2359, 88
    %v2526 = vpop.permute.xlu0 %2525
    %2527 = vrot.lane.b32.xlu0 %v2362, 88
    %v2528 = vpop.permute.xlu0 %2527
    %v2532 = vsel %vm229, %v2523, 0
    %v2535 = vsel %vm229, %v2524, 0
    %2537 = vmatpush.msra.mxu0 0.0
    %2538 = vmatpush.msra.mxu0 0.0
    %2539 = vmatpush.msra.mxu0 0.0
    %2540 = vmatpush.msra.mxu0 0.0
    %2541 = vmatpush.msra.mxu0 0.0
    %2542 = vmatpush.msra.mxu0 0.0
    %2543 = vmatpush.msra.mxu0 0.0
    %2544 = vmatpush.msra.mxu0 0.0
    %2545 = vmatpush.msra.mxu0 0.0
    %2546 = vmatpush.msra.mxu0 0.0
    %2547 = vmatpush.msra.mxu0 0.0
    %2548 = vmatpush.msra.mxu0 0.0
    %2549 = vmatpush.msra.mxu0 0.0
    %2550 = vmatpush.msra.mxu0 0.0
    %2551 = vmatpush.msra.mxu0 %v2528
    %2552 = vmatpush.msra.mxu0 %v2526
    %2553 = vmatmul.f32.gmra.mxu0 %v2532
    %v2554 = vpop.f32.mrf.mxu0
    %v2555 = vadd.f32 0.0, %v2554
    %2556 = vmatmul.f32.gmra.mxu0 %v2535
    %v2557 = vpop.f32.mrf.mxu0
    %v2558 = vadd.f32 0.0, %v2557
    %2559 = vdwg.mxu0
    %2560 = vrot.lane.b32.xlu0 %v2322, 112
    %v2561 = vpop.permute.xlu0 %2560
    %2562 = vrot.lane.b32.xlu0 %v2325, 112
    %v2563 = vpop.permute.xlu0 %2562
    %2564 = vrot.lane.b32.xlu0 %v2359, 112
    %v2565 = vpop.permute.xlu0 %2564
    %2566 = vrot.lane.b32.xlu0 %v2362, 112
    %v2567 = vpop.permute.xlu0 %2566
    %v2568 = vsel %vm309, %v2561, 0
    %v2570 = vsel %vm309, %v2563, 0
    %v2572 = vsel %vm309, %v2565, 0
    %v2574 = vsel %vm309, %v2567, 0
    %2576 = vmatpush.xpose.msra.mxu0 0.0
    %2577 = vmatpush.xpose.msra.mxu0 0.0
    %2578 = vmatpush.xpose.msra.mxu0 0.0
    %2579 = vmatpush.xpose.msra.mxu0 0.0
    %2580 = vmatpush.xpose.msra.mxu0 0.0
    %2581 = vmatpush.xpose.msra.mxu0 0.0
    %2582 = vmatpush.xpose.msra.mxu0 0.0
    %2583 = vmatpush.xpose.msra.mxu0 0.0
    %2584 = vmatpush.xpose.msra.mxu0 0.0
    %2585 = vmatpush.xpose.msra.mxu0 0.0
    %2586 = vmatpush.xpose.msra.mxu0 0.0
    %2587 = vmatpush.xpose.msra.mxu0 0.0
    %2588 = vmatpush.xpose.msra.mxu0 0.0
    %2589 = vmatpush.xpose.msra.mxu0 0.0
    %2590 = vmatpush.xpose.msra.mxu0 %v2574
    %2591 = vmatpush.xpose.msra.mxu0 %v2572
    %2592 = vmatmul.f32.gmra.mxu0 %v2568
    %v2593 = vpop.f32.mrf.mxu0
    %v2594 = vadd.f32 0.0, %v2593
    %2595 = vmatmul.f32.gmra.mxu0 %v2570
    %v2596 = vpop.f32.mrf.mxu0
    %v2597 = vadd.f32 0.0, %v2596
    %2598 = vdwg.mxu0
    %v2599 = vmul.f32 %v2594, 0.35355338
    %v2600 = vmul.f32 %v2597, 0.35355338
    %v2601 = vadd.f32 %v2599, %v219
    %v2602 = vadd.f32 %v2600, %v220
    %v2603 = vsel %vm229, %v2601, -inf
    %2604 = vmax.xlane.f32.xlu0 %v2603
    %v2605 = vpop.xlane.xlu0 %2604
    %v2606 = vsel %vm229, %v2602, -inf
    %2607 = vmax.xlane.f32.xlu0 %v2606
    %v2608 = vpop.xlane.xlu0 %2607
    %v2609 = vsub.f32 %v2601, %v2605
    %v2610 = vsub.f32 %v2602, %v2608
    %v2611 = vmul.f32 %v2609, 1.442695
    %v2612 = vpow.pop %v2611
    %v2613 = vmul.f32 %v2610, 1.442695
    %v2614 = vpow.pop %v2613
    %v2615 = vsel %vm229, %v2612, 0.0
    %2616 = vadd.xlane.f32.xlu0 %v2615
    %v2617 = vpop.xlane.xlu0 %2616
    %v2618 = vsel %vm229, %v2614, 0.0
    %2619 = vadd.xlane.f32.xlu0 %v2618
    %v2620 = vpop.xlane.xlu0 %2619
    %v2621 = vrcp.pop %v2617
    %v2622 = vrcp.pop %v2620
    %v2623 = vmul.f32 %v2612, %v2621
    %v2624 = vmul.f32 %v2614, %v2622
    %2625 = vrot.lane.b32.xlu0 %v2359, 80
    %v2626 = vpop.permute.xlu0 %2625
    %2627 = vrot.lane.b32.xlu0 %v2362, 80
    %v2628 = vpop.permute.xlu0 %2627
    %v2632 = vsel %vm229, %v2623, 0
    %v2635 = vsel %vm229, %v2624, 0
    %2637 = vmatpush.msra.mxu0 0.0
    %2638 = vmatpush.msra.mxu0 0.0
    %2639 = vmatpush.msra.mxu0 0.0
    %2640 = vmatpush.msra.mxu0 0.0
    %2641 = vmatpush.msra.mxu0 0.0
    %2642 = vmatpush.msra.mxu0 0.0
    %2643 = vmatpush.msra.mxu0 0.0
    %2644 = vmatpush.msra.mxu0 0.0
    %2645 = vmatpush.msra.mxu0 0.0
    %2646 = vmatpush.msra.mxu0 0.0
    %2647 = vmatpush.msra.mxu0 0.0
    %2648 = vmatpush.msra.mxu0 0.0
    %2649 = vmatpush.msra.mxu0 0.0
    %2650 = vmatpush.msra.mxu0 0.0
    %2651 = vmatpush.msra.mxu0 %v2628
    %2652 = vmatpush.msra.mxu0 %v2626
    %2653 = vmatmul.f32.gmra.mxu0 %v2632
    %v2654 = vpop.f32.mrf.mxu0
    %v2655 = vadd.f32 0.0, %v2654
    %2656 = vmatmul.f32.gmra.mxu0 %v2635
    %v2657 = vpop.f32.mrf.mxu0
    %v2658 = vadd.f32 0.0, %v2657
    %2659 = vdwg.mxu0
    %2660 = vrot.lane.b32.xlu0 %v2322, 104
    %v2661 = vpop.permute.xlu0 %2660
    %2662 = vrot.lane.b32.xlu0 %v2325, 104
    %v2663 = vpop.permute.xlu0 %2662
    %2664 = vrot.lane.b32.xlu0 %v2359, 104
    %v2665 = vpop.permute.xlu0 %2664
    %2666 = vrot.lane.b32.xlu0 %v2362, 104
    %v2667 = vpop.permute.xlu0 %2666
    %v2668 = vsel %vm309, %v2661, 0
    %v2670 = vsel %vm309, %v2663, 0
    %v2672 = vsel %vm309, %v2665, 0
    %v2674 = vsel %vm309, %v2667, 0
    %2676 = vmatpush.xpose.msra.mxu0 0.0
    %2677 = vmatpush.xpose.msra.mxu0 0.0
    %2678 = vmatpush.xpose.msra.mxu0 0.0
    %2679 = vmatpush.xpose.msra.mxu0 0.0
    %2680 = vmatpush.xpose.msra.mxu0 0.0
    %2681 = vmatpush.xpose.msra.mxu0 0.0
    %2682 = vmatpush.xpose.msra.mxu0 0.0
    %2683 = vmatpush.xpose.msra.mxu0 0.0
    %2684 = vmatpush.xpose.msra.mxu0 0.0
    %2685 = vmatpush.xpose.msra.mxu0 0.0
    %2686 = vmatpush.xpose.msra.mxu0 0.0
    %2687 = vmatpush.xpose.msra.mxu0 0.0
    %2688 = vmatpush.xpose.msra.mxu0 0.0
    %2689 = vmatpush.xpose.msra.mxu0 0.0
    %2690 = vmatpush.xpose.msra.mxu0 %v2674
    %2691 = vmatpush.xpose.msra.mxu0 %v2672
    %2692 = vmatmul.f32.gmra.mxu0 %v2668
    %v2693 = vpop.f32.mrf.mxu0
    %v2694 = vadd.f32 0.0, %v2693
    %2695 = vmatmul.f32.gmra.mxu0 %v2670
    %v2696 = vpop.f32.mrf.mxu0
    %v2697 = vadd.f32 0.0, %v2696
    %2698 = vdwg.mxu0
    %v2699 = vmul.f32 %v2694, 0.35355338
    %v2700 = vmul.f32 %v2697, 0.35355338
    %v2701 = vadd.f32 %v2699, %v219
    %v2702 = vadd.f32 %v2700, %v220
    %v2703 = vsel %vm229, %v2701, -inf
    %2704 = vmax.xlane.f32.xlu0 %v2703
    %v2705 = vpop.xlane.xlu0 %2704
    %v2706 = vsel %vm229, %v2702, -inf
    %2707 = vmax.xlane.f32.xlu0 %v2706
    %v2708 = vpop.xlane.xlu0 %2707
    %v2709 = vsub.f32 %v2701, %v2705
    %v2710 = vsub.f32 %v2702, %v2708
    %v2711 = vmul.f32 %v2709, 1.442695
    %v2712 = vpow.pop %v2711
    %v2713 = vmul.f32 %v2710, 1.442695
    %v2714 = vpow.pop %v2713
    %v2715 = vsel %vm229, %v2712, 0.0
    %2716 = vadd.xlane.f32.xlu0 %v2715
    %v2717 = vpop.xlane.xlu0 %2716
    %v2718 = vsel %vm229, %v2714, 0.0
    %2719 = vadd.xlane.f32.xlu0 %v2718
    %v2720 = vpop.xlane.xlu0 %2719
    %v2721 = vrcp.pop %v2717
    %v2722 = vrcp.pop %v2720
    %v2723 = vmul.f32 %v2712, %v2721
    %v2724 = vmul.f32 %v2714, %v2722
    %2725 = vrot.lane.b32.xlu0 %v2359, 72
    %v2726 = vpop.permute.xlu0 %2725
    %2727 = vrot.lane.b32.xlu0 %v2362, 72
    %v2728 = vpop.permute.xlu0 %2727
    %v2732 = vsel %vm229, %v2723, 0
    %v2735 = vsel %vm229, %v2724, 0
    %2737 = vmatpush.msra.mxu0 0.0
    %2738 = vmatpush.msra.mxu0 0.0
    %2739 = vmatpush.msra.mxu0 0.0
    %2740 = vmatpush.msra.mxu0 0.0
    %2741 = vmatpush.msra.mxu0 0.0
    %2742 = vmatpush.msra.mxu0 0.0
    %2743 = vmatpush.msra.mxu0 0.0
    %2744 = vmatpush.msra.mxu0 0.0
    %2745 = vmatpush.msra.mxu0 0.0
    %2746 = vmatpush.msra.mxu0 0.0
    %2747 = vmatpush.msra.mxu0 0.0
    %2748 = vmatpush.msra.mxu0 0.0
    %2749 = vmatpush.msra.mxu0 0.0
    %2750 = vmatpush.msra.mxu0 0.0
    %2751 = vmatpush.msra.mxu0 %v2728
    %2752 = vmatpush.msra.mxu0 %v2726
    %2753 = vmatmul.f32.gmra.mxu0 %v2732
    %v2754 = vpop.f32.mrf.mxu0
    %v2755 = vadd.f32 0.0, %v2754
    %2756 = vmatmul.f32.gmra.mxu0 %v2735
    %v2757 = vpop.f32.mrf.mxu0
    %v2758 = vadd.f32 0.0, %v2757
    %2759 = vdwg.mxu0
    %2762 = vrot.lane.b32.xlu0 %v2555, 8
    %v2763 = vpop.permute.xlu0 %2762
    %2764 = vrot.lane.b32.xlu0 %v2558, 8
    %v2765 = vpop.permute.xlu0 %2764
    %2770 = vrot.lane.b32.xlu0 %v2655, 16
    %v2771 = vpop.permute.xlu0 %2770
    %2772 = vrot.lane.b32.xlu0 %v2658, 16
    %v2773 = vpop.permute.xlu0 %2772
    %2778 = vrot.lane.b32.xlu0 %v2755, 24
    %v2779 = vpop.permute.xlu0 %2778
    %2780 = vrot.lane.b32.xlu0 %v2758, 24
    %v2781 = vpop.permute.xlu0 %2780
    %v2784 = vsel %vm309, %v2455, %v2763
    %v2785 = vsel %vm309, %v2458, %v2765
    %v2786 = vsel %vm229, %v2784, %v2771
    %v2787 = vsel %vm229, %v2785, %v2773
    %v2788 = vsel %vm730, %v2786, %v2779
    %v2789 = vsel %vm730, %v2787, %v2781
    %v2790 = vld [vmem:[%s67] sm:$0xff]
    %v2791 = vld [vmem:[%s67 + $0x8] sm:$0xff]
    %v2792 = vld [vmem:[%s67 + $0x10] sm:$0xff]
    %v2793 = vld [vmem:[%s67 + $0x18] sm:$0xff]
    %v2794 = vld [vmem:[%s69] sm:$0x1]
    %v2796 = vperm.slane %v2794, 0
    %v2799 = vsel %vm273, %v2788, 0
    %v2802 = vsel %vm273, %v2789, 0
    %2804 = vmatpush.msra.mxu0 0.0
    %2805 = vmatpush.msra.mxu0 0.0
    %2806 = vmatpush.msra.mxu0 0.0
    %2807 = vmatpush.msra.mxu0 0.0
    %2808 = vmatpush.msra.mxu0 0.0
    %2809 = vmatpush.msra.mxu0 0.0
    %2810 = vmatpush.msra.mxu0 0.0
    %2811 = vmatpush.msra.mxu0 0.0
    %2812 = vmatpush.msra.mxu0 0.0
    %2813 = vmatpush.msra.mxu0 0.0
    %2814 = vmatpush.msra.mxu0 0.0
    %2815 = vmatpush.msra.mxu0 0.0
    %2816 = vmatpush.msra.mxu0 %v2793
    %2817 = vmatpush.msra.mxu0 %v2792
    %2818 = vmatpush.msra.mxu0 %v2791
    %2819 = vmatpush.msra.mxu0 %v2790
    %2820 = vmatmul.f32.gmra.mxu0 %v2799
    %v2821 = vpop.f32.mrf.mxu0
    %v2822 = vadd.f32 %v2796, %v2821
    %2823 = vmatmul.f32.gmra.mxu0 %v2802
    %v2824 = vpop.f32.mrf.mxu0
    %v2825 = vadd.f32 %v2796, %v2824
    %2826 = vdwg.mxu0
    %v2827 = vadd.f32 %v2288, %v2822
    %v2828 = vadd.f32 %v2289, %v2825
    %v2829 = vld [vmem:[%s71] sm:$0x1]
    %v2830 = vld [vmem:[%s73] sm:$0x1]
    %v2831 = vsel %vm273, %v2827, 0.0
    %2832 = vadd.xlane.f32.xlu0 %v2831
    %v2833 = vpop.xlane.xlu0 %2832
    %v2834 = vsel %vm273, %v2828, 0.0
    %2835 = vadd.xlane.f32.xlu0 %v2834
    %v2836 = vpop.xlane.xlu0 %2835
    %v2837 = vmul.f32 %v2833, %v786
    %v2838 = vmul.f32 %v2836, %v786
    %v2839 = vsub.f32 %v2827, %v2837
    %v2840 = vsub.f32 %v2828, %v2838
    %v2841 = vmul.f32 %v2839, %v2839
    %v2842 = vmul.f32 %v2840, %v2840
    %v2843 = vsel %vm273, %v2841, 0.0
    %2844 = vadd.xlane.f32.xlu0 %v2843
    %v2845 = vpop.xlane.xlu0 %2844
    %v2846 = vsel %vm273, %v2842, 0.0
    %2847 = vadd.xlane.f32.xlu0 %v2846
    %v2848 = vpop.xlane.xlu0 %2847
    %v2849 = vmul.f32 %v2845, %v786
    %v2850 = vmul.f32 %v2848, %v786
    %v2851 = vadd.f32 %v2849, 1e-05
    %v2852 = vadd.f32 %v2850, 1e-05
    %v2853 = vrsqrt.pop %v2851
    %v2854 = vmul.f32 %v2853, %v2851
    %v2855 = vmul.f32 %v2854, %v2853
    %v2856 = vmul.f32 0.5, %v2855
    %v2857 = vsub.f32 1.5, %v2856
    %v2858 = vmul.f32 %v2853, %v2857
    %vm2859 = vweird.f32 %v2851
    %vm2860 = vweird.f32 %v2853
    %vm2861 = vmor %vm2859, %vm2860
    %v2862 = vsel %vm2861, %v2853, %v2858
    %v2863 = vrsqrt.pop %v2852
    %v2864 = vmul.f32 %v2863, %v2852
    %v2865 = vmul.f32 %v2864, %v2863
    %v2866 = vmul.f32 0.5, %v2865
    %v2867 = vsub.f32 1.5, %v2866
    %v2868 = vmul.f32 %v2863, %v2867
    %vm2869 = vweird.f32 %v2852
    %vm2870 = vweird.f32 %v2863
    %vm2871 = vmor %vm2869, %vm2870
    %v2872 = vsel %vm2871, %v2863, %v2868
    %v2873 = vmul.f32 %v2839, %v2862
    %v2874 = vmul.f32 %v2840, %v2872
    %v2876 = vperm.slane %v2829, 0
    %v2878 = vmul.f32 %v2873, %v2876
    %v2879 = vmul.f32 %v2874, %v2876
    %v2881 = vperm.slane %v2830, 0
    %v2883 = vadd.f32 %v2878, %v2881
    %v2884 = vadd.f32 %v2879, %v2881
    %v2885 = vld [vmem:[%s75] sm:$0xff]
    %v2886 = vld [vmem:[%s75 + $0x8] sm:$0xff]
    %v2887 = vld [vmem:[%s75 + $0x10] sm:$0xff]
    %v2888 = vld [vmem:[%s75 + $0x18] sm:$0xff]
    %v2889 = vld [vmem:[%s77] sm:$0x1]
    %v2891 = vperm.slane %v2889, 0
    %v2894 = vsel %vm273, %v2883, 0
    %v2897 = vsel %vm273, %v2884, 0
    %2899 = vmatpush.msra.mxu0 0.0
    %2900 = vmatpush.msra.mxu0 0.0
    %2901 = vmatpush.msra.mxu0 0.0
    %2902 = vmatpush.msra.mxu0 0.0
    %2903 = vmatpush.msra.mxu0 0.0
    %2904 = vmatpush.msra.mxu0 0.0
    %2905 = vmatpush.msra.mxu0 0.0
    %2906 = vmatpush.msra.mxu0 0.0
    %2907 = vmatpush.msra.mxu0 0.0
    %2908 = vmatpush.msra.mxu0 0.0
    %2909 = vmatpush.msra.mxu0 0.0
    %2910 = vmatpush.msra.mxu0 0.0
    %2911 = vmatpush.msra.mxu0 %v2888
    %2912 = vmatpush.msra.mxu0 %v2887
    %2913 = vmatpush.msra.mxu0 %v2886
    %2914 = vmatpush.msra.mxu0 %v2885
    %2915 = vmatmul.f32.gmra.mxu0 %v2894
    %v2916 = vpop.f32.mrf.mxu0
    %v2917 = vadd.f32 %v2891, %v2916
    %2918 = vmatmul.f32.gmra.mxu0 %v2897
    %v2919 = vpop.f32.mrf.mxu0
    %v2920 = vadd.f32 %v2891, %v2919
    %2921 = vdwg.mxu0
    %v2922 = vmax.f32 %v2917, 0.0
    %v2923 = vmax.f32 %v2920, 0.0
    %v2924 = vld [vmem:[%s79] sm:$0xff]
    %v2925 = vld [vmem:[%s79 + $0x8] sm:$0xff]
    %v2926 = vld [vmem:[%s79 + $0x10] sm:$0xff]
    %v2927 = vld [vmem:[%s79 + $0x18] sm:$0xff]
    %v2928 = vld [vmem:[%s79 + $0x20] sm:$0xff]
    %v2929 = vld [vmem:[%s79 + $0x28] sm:$0xff]
    %v2930 = vld [vmem:[%s79 + $0x30] sm:$0xff]
    %v2931 = vld [vmem:[%s79 + $0x38] sm:$0xff]
    %v2932 = vld [vmem:[%s79 + $0x40] sm:$0xff]
    %v2933 = vld [vmem:[%s79 + $0x48] sm:$0xff]
    %v2934 = vld [vmem:[%s79 + $0x50] sm:$0xff]
    %v2935 = vld [vmem:[%s79 + $0x58] sm:$0xff]
    %v2936 = vld [vmem:[%s79 + $0x60] sm:$0xff]
    %v2937 = vld [vmem:[%s79 + $0x68] sm:$0xff]
    %v2938 = vld [vmem:[%s79 + $0x70] sm:$0xff]
    %v2939 = vld [vmem:[%s79 + $0x78] sm:$0xff]
    %v2940 = vld [vmem:[%s81] sm:$0x1]
    %v2942 = vperm.slane %v2940, 0
    %2944 = vmatpush.msra.mxu0 %v2939
    %2945 = vmatpush.msra.mxu0 %v2938
    %2946 = vmatpush.msra.mxu0 %v2937
    %2947 = vmatpush.msra.mxu0 %v2936
    %2948 = vmatpush.msra.mxu0 %v2935
    %2949 = vmatpush.msra.mxu0 %v2934
    %2950 = vmatpush.msra.mxu0 %v2933
    %2951 = vmatpush.msra.mxu0 %v2932
    %2952 = vmatpush.msra.mxu0 %v2931
    %2953 = vmatpush.msra.mxu0 %v2930
    %2954 = vmatpush.msra.mxu0 %v2929
    %2955 = vmatpush.msra.mxu0 %v2928
    %2956 = vmatpush.msra.mxu0 %v2927
    %2957 = vmatpush.msra.mxu0 %v2926
    %2958 = vmatpush.msra.mxu0 %v2925
    %2959 = vmatpush.msra.mxu0 %v2924
    %2960 = vmatmul.f32.gmra.mxu0 %v2922
    %v2961 = vpop.f32.mrf.mxu0
    %v2962 = vadd.f32 %v2942, %v2961
    %2963 = vmatmul.f32.gmra.mxu0 %v2923
    %v2964 = vpop.f32.mrf.mxu0
    %v2965 = vadd.f32 %v2942, %v2964
    %2966 = vdwg.mxu0
    %v2967 = vadd.f32 %v2883, %v2962
    %v2968 = vadd.f32 %v2884, %v2965
    %v2969 = vld [vmem:[%s83] sm:$0x1]
    %v2970 = vld [vmem:[%s85] sm:$0x1]
    %v2971 = vsel %vm273, %v2967, 0.0
    %2972 = vadd.xlane.f32.xlu0 %v2971
    %v2973 = vpop.xlane.xlu0 %2972
    %v2974 = vsel %vm273, %v2968, 0.0
    %2975 = vadd.xlane.f32.xlu0 %v2974
    %v2976 = vpop.xlane.xlu0 %2975
    %v2977 = vmul.f32 %v2973, %v786
    %v2978 = vmul.f32 %v2976, %v786
    %v2979 = vsub.f32 %v2967, %v2977
    %v2980 = vsub.f32 %v2968, %v2978
    %v2981 = vmul.f32 %v2979, %v2979
    %v2982 = vmul.f32 %v2980, %v2980
    %v2983 = vsel %vm273, %v2981, 0.0
    %2984 = vadd.xlane.f32.xlu0 %v2983
    %v2985 = vpop.xlane.xlu0 %2984
    %v2986 = vsel %vm273, %v2982, 0.0
    %2987 = vadd.xlane.f32.xlu0 %v2986
    %v2988 = vpop.xlane.xlu0 %2987
    %v2989 = vmul.f32 %v2985, %v786
    %v2990 = vmul.f32 %v2988, %v786
    %v2991 = vadd.f32 %v2989, 1e-05
    %v2992 = vadd.f32 %v2990, 1e-05
    %v2993 = vrsqrt.pop %v2991
    %v2994 = vmul.f32 %v2993, %v2991
    %v2995 = vmul.f32 %v2994, %v2993
    %v2996 = vmul.f32 0.5, %v2995
    %v2997 = vsub.f32 1.5, %v2996
    %v2998 = vmul.f32 %v2993, %v2997
    %vm2999 = vweird.f32 %v2991
    %vm3000 = vweird.f32 %v2993
    %vm3001 = vmor %vm2999, %vm3000
    %v3002 = vsel %vm3001, %v2993, %v2998
    %v3003 = vrsqrt.pop %v2992
    %v3004 = vmul.f32 %v3003, %v2992
    %v3005 = vmul.f32 %v3004, %v3003
    %v3006 = vmul.f32 0.5, %v3005
    %v3007 = vsub.f32 1.5, %v3006
    %v3008 = vmul.f32 %v3003, %v3007
    %vm3009 = vweird.f32 %v2992
    %vm3010 = vweird.f32 %v3003
    %vm3011 = vmor %vm3009, %vm3010
    %v3012 = vsel %vm3011, %v3003, %v3008
    %v3013 = vmul.f32 %v2979, %v3002
    %v3014 = vmul.f32 %v2980, %v3012
    %v3016 = vperm.slane %v2969, 0
    %v3018 = vmul.f32 %v3013, %v3016
    %v3019 = vmul.f32 %v3014, %v3016
    %v3021 = vperm.slane %v2970, 0
    %v3023 = vadd.f32 %v3018, %v3021
    %v3024 = vadd.f32 %v3019, %v3021
    %s3025 = scalar_lea.vmem %s47, 32
    %v3026 = vld [vmem:[%s3025] sm:$0xff]
    %v3027 = vld [vmem:[%s3025 + $0x8] sm:$0xff]
    %v3028 = vld [vmem:[%s3025 + $0x10] sm:$0xff]
    %v3029 = vld [vmem:[%s3025 + $0x18] sm:$0xff]
    %s3030 = scalar_lea.vmem %s49, 1
    %v3031 = vld [vmem:[%s3030] sm:$0x1]
    %v3033 = vperm.slane %v3031, 0
    %v3036 = vsel %vm273, %v3023, 0
    %v3039 = vsel %vm273, %v3024, 0
    %3041 = vmatpush.msra.mxu0 0.0
    %3042 = vmatpush.msra.mxu0 0.0
    %3043 = vmatpush.msra.mxu0 0.0
    %3044 = vmatpush.msra.mxu0 0.0
    %3045 = vmatpush.msra.mxu0 0.0
    %3046 = vmatpush.msra.mxu0 0.0
    %3047 = vmatpush.msra.mxu0 0.0
    %3048 = vmatpush.msra.mxu0 0.0
    %3049 = vmatpush.msra.mxu0 0.0
    %3050 = vmatpush.msra.mxu0 0.0
    %3051 = vmatpush.msra.mxu0 0.0
    %3052 = vmatpush.msra.mxu0 0.0
    %3053 = vmatpush.msra.mxu0 %v3029
    %3054 = vmatpush.msra.mxu0 %v3028
    %3055 = vmatpush.msra.mxu0 %v3027
    %3056 = vmatpush.msra.mxu0 %v3026
    %3057 = vmatmul.f32.gmra.mxu0 %v3036
    %v3058 = vpop.f32.mrf.mxu0
    %v3059 = vadd.f32 %v3033, %v3058
    %3060 = vmatmul.f32.gmra.mxu0 %v3039
    %v3061 = vpop.f32.mrf.mxu0
    %v3062 = vadd.f32 %v3033, %v3061
    %3063 = vdwg.mxu0
    %3066 = vrot.lane.b32.xlu0 %v3059, 96
    %v3067 = vpop.permute.xlu0 %3066
    %3068 = vrot.lane.b32.xlu0 %v3062, 96
    %v3069 = vpop.permute.xlu0 %3068
    %v3070 = vsel %vm309, %v3059, 0
    %v3072 = vsel %vm309, %v3062, 0
    %v3074 = vsel %vm309, %v3067, 0
    %v3076 = vsel %vm309, %v3069, 0
    %3078 = vmatpush.xpose.msra.mxu0 0.0
    %3079 = vmatpush.xpose.msra.mxu0 0.0
    %3080 = vmatpush.xpose.msra.mxu0 0.0
    %3081 = vmatpush.xpose.msra.mxu0 0.0
    %3082 = vmatpush.xpose.msra.mxu0 0.0
    %3083 = vmatpush.xpose.msra.mxu0 0.0
    %3084 = vmatpush.xpose.msra.mxu0 0.0
    %3085 = vmatpush.xpose.msra.mxu0 0.0
    %3086 = vmatpush.xpose.msra.mxu0 0.0
    %3087 = vmatpush.xpose.msra.mxu0 0.0
    %3088 = vmatpush.xpose.msra.mxu0 0.0
    %3089 = vmatpush.xpose.msra.mxu0 0.0
    %3090 = vmatpush.xpose.msra.mxu0 0.0
    %3091 = vmatpush.xpose.msra.mxu0 0.0
    %3092 = vmatpush.xpose.msra.mxu0 %v3076
    %3093 = vmatpush.xpose.msra.mxu0 %v3074
    %3094 = vmatmul.f32.gmra.mxu0 %v3070
    %v3095 = vpop.f32.mrf.mxu0
    %v3096 = vadd.f32 0.0, %v3095
    %3097 = vmatmul.f32.gmra.mxu0 %v3072
    %v3098 = vpop.f32.mrf.mxu0
    %v3099 = vadd.f32 0.0, %v3098
    %3100 = vdwg.mxu0
    %v3101 = vmul.f32 %v3096, 0.35355338
    %v3102 = vmul.f32 %v3099, 0.35355338
    %v3103 = vadd.f32 %v3101, %v217
    %v3104 = vadd.f32 %v3102, %v218
    %v3105 = vsel %vm229, %v3103, -inf
    %3106 = vmax.xlane.f32.xlu0 %v3105
    %v3107 = vpop.xlane.xlu0 %3106
    %v3108 = vsel %vm229, %v3104, -inf
    %3109 = vmax.xlane.f32.xlu0 %v3108
    %v3110 = vpop.xlane.xlu0 %3109
    %v3111 = vsub.f32 %v3103, %v3107
    %v3112 = vsub.f32 %v3104, %v3110
    %v3113 = vmul.f32 %v3111, 1.442695
    %v3114 = vpow.pop %v3113
    %v3115 = vmul.f32 %v3112, 1.442695
    %v3116 = vpow.pop %v3115
    %v3117 = vsel %vm229, %v3114, 0.0
    %3118 = vadd.xlane.f32.xlu0 %v3117
    %v3119 = vpop.xlane.xlu0 %3118
    %v3120 = vsel %vm229, %v3116, 0.0
    %3121 = vadd.xlane.f32.xlu0 %v3120
    %v3122 = vpop.xlane.xlu0 %3121
    %v3123 = vrcp.pop %v3119
    %v3124 = vrcp.pop %v3122
    %v3125 = vmul.f32 %v3114, %v3123
    %v3126 = vmul.f32 %v3116, %v3124
    %3127 = vrot.lane.b32.xlu0 %v3059, 64
    %v3128 = vpop.permute.xlu0 %3127
    %3129 = vrot.lane.b32.xlu0 %v3062, 64
    %v3130 = vpop.permute.xlu0 %3129
    %v3134 = vsel %vm229, %v3125, 0
    %v3137 = vsel %vm229, %v3126, 0
    %3139 = vmatpush.msra.mxu0 0.0
    %3140 = vmatpush.msra.mxu0 0.0
    %3141 = vmatpush.msra.mxu0 0.0
    %3142 = vmatpush.msra.mxu0 0.0
    %3143 = vmatpush.msra.mxu0 0.0
    %3144 = vmatpush.msra.mxu0 0.0
    %3145 = vmatpush.msra.mxu0 0.0
    %3146 = vmatpush.msra.mxu0 0.0
    %3147 = vmatpush.msra.mxu0 0.0
    %3148 = vmatpush.msra.mxu0 0.0
    %3149 = vmatpush.msra.mxu0 0.0
    %3150 = vmatpush.msra.mxu0 0.0
    %3151 = vmatpush.msra.mxu0 0.0
    %3152 = vmatpush.msra.mxu0 0.0
    %3153 = vmatpush.msra.mxu0 %v3130
    %3154 = vmatpush.msra.mxu0 %v3128
    %3155 = vmatmul.f32.gmra.mxu0 %v3134
    %v3156 = vpop.f32.mrf.mxu0
    %v3157 = vadd.f32 0.0, %v3156
    %3158 = vmatmul.f32.gmra.mxu0 %v3137
    %v3159 = vpop.f32.mrf.mxu0
    %v3160 = vadd.f32 0.0, %v3159
    %3161 = vdwg.mxu0
    %3162 = vrot.lane.b32.xlu0 %v3059, 120
    %v3163 = vpop.permute.xlu0 %3162
    %3164 = vrot.lane.b32.xlu0 %v3062, 120
    %v3165 = vpop.permute.xlu0 %3164
    %3166 = vrot.lane.b32.xlu0 %v3059, 88
    %v3167 = vpop.permute.xlu0 %3166
    %3168 = vrot.lane.b32.xlu0 %v3062, 88
    %v3169 = vpop.permute.xlu0 %3168
    %v3170 = vsel %vm309, %v3163, 0
    %v3172 = vsel %vm309, %v3165, 0
    %v3174 = vsel %vm309, %v3167, 0
    %v3176 = vsel %vm309, %v3169, 0
    %3178 = vmatpush.xpose.msra.mxu0 0.0
    %3179 = vmatpush.xpose.msra.mxu0 0.0
    %3180 = vmatpush.xpose.msra.mxu0 0.0
    %3181 = vmatpush.xpose.msra.mxu0 0.0
    %3182 = vmatpush.xpose.msra.mxu0 0.0
    %3183 = vmatpush.xpose.msra.mxu0 0.0
    %3184 = vmatpush.xpose.msra.mxu0 0.0
    %3185 = vmatpush.xpose.msra.mxu0 0.0
    %3186 = vmatpush.xpose.msra.mxu0 0.0
    %3187 = vmatpush.xpose.msra.mxu0 0.0
    %3188 = vmatpush.xpose.msra.mxu0 0.0
    %3189 = vmatpush.xpose.msra.mxu0 0.0
    %3190 = vmatpush.xpose.msra.mxu0 0.0
    %3191 = vmatpush.xpose.msra.mxu0 0.0
    %3192 = vmatpush.xpose.msra.mxu0 %v3176
    %3193 = vmatpush.xpose.msra.mxu0 %v3174
    %3194 = vmatmul.f32.gmra.mxu0 %v3170
    %v3195 = vpop.f32.mrf.mxu0
    %v3196 = vadd.f32 0.0, %v3195
    %3197 = vmatmul.f32.gmra.mxu0 %v3172
    %v3198 = vpop.f32.mrf.mxu0
    %v3199 = vadd.f32 0.0, %v3198
    %3200 = vdwg.mxu0
    %v3201 = vmul.f32 %v3196, 0.35355338
    %v3202 = vmul.f32 %v3199, 0.35355338
    %v3203 = vadd.f32 %v3201, %v217
    %v3204 = vadd.f32 %v3202, %v218
    %v3205 = vsel %vm229, %v3203, -inf
    %3206 = vmax.xlane.f32.xlu0 %v3205
    %v3207 = vpop.xlane.xlu0 %3206
    %v3208 = vsel %vm229, %v3204, -inf
    %3209 = vmax.xlane.f32.xlu0 %v3208
    %v3210 = vpop.xlane.xlu0 %3209
    %v3211 = vsub.f32 %v3203, %v3207
    %v3212 = vsub.f32 %v3204, %v3210
    %v3213 = vmul.f32 %v3211, 1.442695
    %v3214 = vpow.pop %v3213
    %v3215 = vmul.f32 %v3212, 1.442695
    %v3216 = vpow.pop %v3215
    %v3217 = vsel %vm229, %v3214, 0.0
    %3218 = vadd.xlane.f32.xlu0 %v3217
    %v3219 = vpop.xlane.xlu0 %3218
    %v3220 = vsel %vm229, %v3216, 0.0
    %3221 = vadd.xlane.f32.xlu0 %v3220
    %v3222 = vpop.xlane.xlu0 %3221
    %v3223 = vrcp.pop %v3219
    %v3224 = vrcp.pop %v3222
    %v3225 = vmul.f32 %v3214, %v3223
    %v3226 = vmul.f32 %v3216, %v3224
    %3227 = vrot.lane.b32.xlu0 %v3059, 56
    %v3228 = vpop.permute.xlu0 %3227
    %3229 = vrot.lane.b32.xlu0 %v3062, 56
    %v3230 = vpop.permute.xlu0 %3229
    %v3234 = vsel %vm229, %v3225, 0
    %v3237 = vsel %vm229, %v3226, 0
    %3239 = vmatpush.msra.mxu0 0.0
    %3240 = vmatpush.msra.mxu0 0.0
    %3241 = vmatpush.msra.mxu0 0.0
    %3242 = vmatpush.msra.mxu0 0.0
    %3243 = vmatpush.msra.mxu0 0.0
    %3244 = vmatpush.msra.mxu0 0.0
    %3245 = vmatpush.msra.mxu0 0.0
    %3246 = vmatpush.msra.mxu0 0.0
    %3247 = vmatpush.msra.mxu0 0.0
    %3248 = vmatpush.msra.mxu0 0.0
    %3249 = vmatpush.msra.mxu0 0.0
    %3250 = vmatpush.msra.mxu0 0.0
    %3251 = vmatpush.msra.mxu0 0.0
    %3252 = vmatpush.msra.mxu0 0.0
    %3253 = vmatpush.msra.mxu0 %v3230
    %3254 = vmatpush.msra.mxu0 %v3228
    %3255 = vmatmul.f32.gmra.mxu0 %v3234
    %v3256 = vpop.f32.mrf.mxu0
    %v3257 = vadd.f32 0.0, %v3256
    %3258 = vmatmul.f32.gmra.mxu0 %v3237
    %v3259 = vpop.f32.mrf.mxu0
    %v3260 = vadd.f32 0.0, %v3259
    %3261 = vdwg.mxu0
    %3262 = vrot.lane.b32.xlu0 %v3059, 112
    %v3263 = vpop.permute.xlu0 %3262
    %3264 = vrot.lane.b32.xlu0 %v3062, 112
    %v3265 = vpop.permute.xlu0 %3264
    %3266 = vrot.lane.b32.xlu0 %v3059, 80
    %v3267 = vpop.permute.xlu0 %3266
    %3268 = vrot.lane.b32.xlu0 %v3062, 80
    %v3269 = vpop.permute.xlu0 %3268
    %v3270 = vsel %vm309, %v3263, 0
    %v3272 = vsel %vm309, %v3265, 0
    %v3274 = vsel %vm309, %v3267, 0
    %v3276 = vsel %vm309, %v3269, 0
    %3278 = vmatpush.xpose.msra.mxu0 0.0
    %3279 = vmatpush.xpose.msra.mxu0 0.0
    %3280 = vmatpush.xpose.msra.mxu0 0.0
    %3281 = vmatpush.xpose.msra.mxu0 0.0
    %3282 = vmatpush.xpose.msra.mxu0 0.0
    %3283 = vmatpush.xpose.msra.mxu0 0.0
    %3284 = vmatpush.xpose.msra.mxu0 0.0
    %3285 = vmatpush.xpose.msra.mxu0 0.0
    %3286 = vmatpush.xpose.msra.mxu0 0.0
    %3287 = vmatpush.xpose.msra.mxu0 0.0
    %3288 = vmatpush.xpose.msra.mxu0 0.0
    %3289 = vmatpush.xpose.msra.mxu0 0.0
    %3290 = vmatpush.xpose.msra.mxu0 0.0
    %3291 = vmatpush.xpose.msra.mxu0 0.0
    %3292 = vmatpush.xpose.msra.mxu0 %v3276
    %3293 = vmatpush.xpose.msra.mxu0 %v3274
    %3294 = vmatmul.f32.gmra.mxu0 %v3270
    %v3295 = vpop.f32.mrf.mxu0
    %v3296 = vadd.f32 0.0, %v3295
    %3297 = vmatmul.f32.gmra.mxu0 %v3272
    %v3298 = vpop.f32.mrf.mxu0
    %v3299 = vadd.f32 0.0, %v3298
    %3300 = vdwg.mxu0
    %v3301 = vmul.f32 %v3296, 0.35355338
    %v3302 = vmul.f32 %v3299, 0.35355338
    %v3303 = vadd.f32 %v3301, %v217
    %v3304 = vadd.f32 %v3302, %v218
    %v3305 = vsel %vm229, %v3303, -inf
    %3306 = vmax.xlane.f32.xlu0 %v3305
    %v3307 = vpop.xlane.xlu0 %3306
    %v3308 = vsel %vm229, %v3304, -inf
    %3309 = vmax.xlane.f32.xlu0 %v3308
    %v3310 = vpop.xlane.xlu0 %3309
    %v3311 = vsub.f32 %v3303, %v3307
    %v3312 = vsub.f32 %v3304, %v3310
    %v3313 = vmul.f32 %v3311, 1.442695
    %v3314 = vpow.pop %v3313
    %v3315 = vmul.f32 %v3312, 1.442695
    %v3316 = vpow.pop %v3315
    %v3317 = vsel %vm229, %v3314, 0.0
    %3318 = vadd.xlane.f32.xlu0 %v3317
    %v3319 = vpop.xlane.xlu0 %3318
    %v3320 = vsel %vm229, %v3316, 0.0
    %3321 = vadd.xlane.f32.xlu0 %v3320
    %v3322 = vpop.xlane.xlu0 %3321
    %v3323 = vrcp.pop %v3319
    %v3324 = vrcp.pop %v3322
    %v3325 = vmul.f32 %v3314, %v3323
    %v3326 = vmul.f32 %v3316, %v3324
    %3327 = vrot.lane.b32.xlu0 %v3059, 48
    %v3328 = vpop.permute.xlu0 %3327
    %3329 = vrot.lane.b32.xlu0 %v3062, 48
    %v3330 = vpop.permute.xlu0 %3329
    %v3334 = vsel %vm229, %v3325, 0
    %v3337 = vsel %vm229, %v3326, 0
    %3339 = vmatpush.msra.mxu0 0.0
    %3340 = vmatpush.msra.mxu0 0.0
    %3341 = vmatpush.msra.mxu0 0.0
    %3342 = vmatpush.msra.mxu0 0.0
    %3343 = vmatpush.msra.mxu0 0.0
    %3344 = vmatpush.msra.mxu0 0.0
    %3345 = vmatpush.msra.mxu0 0.0
    %3346 = vmatpush.msra.mxu0 0.0
    %3347 = vmatpush.msra.mxu0 0.0
    %3348 = vmatpush.msra.mxu0 0.0
    %3349 = vmatpush.msra.mxu0 0.0
    %3350 = vmatpush.msra.mxu0 0.0
    %3351 = vmatpush.msra.mxu0 0.0
    %3352 = vmatpush.msra.mxu0 0.0
    %3353 = vmatpush.msra.mxu0 %v3330
    %3354 = vmatpush.msra.mxu0 %v3328
    %3355 = vmatmul.f32.gmra.mxu0 %v3334
    %v3356 = vpop.f32.mrf.mxu0
    %v3357 = vadd.f32 0.0, %v3356
    %3358 = vmatmul.f32.gmra.mxu0 %v3337
    %v3359 = vpop.f32.mrf.mxu0
    %v3360 = vadd.f32 0.0, %v3359
    %3361 = vdwg.mxu0
    %3362 = vrot.lane.b32.xlu0 %v3059, 104
    %v3363 = vpop.permute.xlu0 %3362
    %3364 = vrot.lane.b32.xlu0 %v3062, 104
    %v3365 = vpop.permute.xlu0 %3364
    %3366 = vrot.lane.b32.xlu0 %v3059, 72
    %v3367 = vpop.permute.xlu0 %3366
    %3368 = vrot.lane.b32.xlu0 %v3062, 72
    %v3369 = vpop.permute.xlu0 %3368
    %v3370 = vsel %vm309, %v3363, 0
    %v3372 = vsel %vm309, %v3365, 0
    %v3374 = vsel %vm309, %v3367, 0
    %v3376 = vsel %vm309, %v3369, 0
    %3378 = vmatpush.xpose.msra.mxu0 0.0
    %3379 = vmatpush.xpose.msra.mxu0 0.0
    %3380 = vmatpush.xpose.msra.mxu0 0.0
    %3381 = vmatpush.xpose.msra.mxu0 0.0
    %3382 = vmatpush.xpose.msra.mxu0 0.0
    %3383 = vmatpush.xpose.msra.mxu0 0.0
    %3384 = vmatpush.xpose.msra.mxu0 0.0
    %3385 = vmatpush.xpose.msra.mxu0 0.0
    %3386 = vmatpush.xpose.msra.mxu0 0.0
    %3387 = vmatpush.xpose.msra.mxu0 0.0
    %3388 = vmatpush.xpose.msra.mxu0 0.0
    %3389 = vmatpush.xpose.msra.mxu0 0.0
    %3390 = vmatpush.xpose.msra.mxu0 0.0
    %3391 = vmatpush.xpose.msra.mxu0 0.0
    %3392 = vmatpush.xpose.msra.mxu0 %v3376
    %3393 = vmatpush.xpose.msra.mxu0 %v3374
    %3394 = vmatmul.f32.gmra.mxu0 %v3370
    %v3395 = vpop.f32.mrf.mxu0
    %v3396 = vadd.f32 0.0, %v3395
    %3397 = vmatmul.f32.gmra.mxu0 %v3372
    %v3398 = vpop.f32.mrf.mxu0
    %v3399 = vadd.f32 0.0, %v3398
    %3400 = vdwg.mxu0
    %v3401 = vmul.f32 %v3396, 0.35355338
    %v3402 = vmul.f32 %v3399, 0.35355338
    %v3403 = vadd.f32 %v3401, %v217
    %v3404 = vadd.f32 %v3402, %v218
    %v3405 = vsel %vm229, %v3403, -inf
    %3406 = vmax.xlane.f32.xlu0 %v3405
    %v3407 = vpop.xlane.xlu0 %3406
    %v3408 = vsel %vm229, %v3404, -inf
    %3409 = vmax.xlane.f32.xlu0 %v3408
    %v3410 = vpop.xlane.xlu0 %3409
    %v3411 = vsub.f32 %v3403, %v3407
    %v3412 = vsub.f32 %v3404, %v3410
    %v3413 = vmul.f32 %v3411, 1.442695
    %v3414 = vpow.pop %v3413
    %v3415 = vmul.f32 %v3412, 1.442695
    %v3416 = vpow.pop %v3415
    %v3417 = vsel %vm229, %v3414, 0.0
    %3418 = vadd.xlane.f32.xlu0 %v3417
    %v3419 = vpop.xlane.xlu0 %3418
    %v3420 = vsel %vm229, %v3416, 0.0
    %3421 = vadd.xlane.f32.xlu0 %v3420
    %v3422 = vpop.xlane.xlu0 %3421
    %v3423 = vrcp.pop %v3419
    %v3424 = vrcp.pop %v3422
    %v3425 = vmul.f32 %v3414, %v3423
    %v3426 = vmul.f32 %v3416, %v3424
    %3427 = vrot.lane.b32.xlu0 %v3059, 40
    %v3428 = vpop.permute.xlu0 %3427
    %3429 = vrot.lane.b32.xlu0 %v3062, 40
    %v3430 = vpop.permute.xlu0 %3429
    %v3434 = vsel %vm229, %v3425, 0
    %v3437 = vsel %vm229, %v3426, 0
    %3439 = vmatpush.msra.mxu0 0.0
    %3440 = vmatpush.msra.mxu0 0.0
    %3441 = vmatpush.msra.mxu0 0.0
    %3442 = vmatpush.msra.mxu0 0.0
    %3443 = vmatpush.msra.mxu0 0.0
    %3444 = vmatpush.msra.mxu0 0.0
    %3445 = vmatpush.msra.mxu0 0.0
    %3446 = vmatpush.msra.mxu0 0.0
    %3447 = vmatpush.msra.mxu0 0.0
    %3448 = vmatpush.msra.mxu0 0.0
    %3449 = vmatpush.msra.mxu0 0.0
    %3450 = vmatpush.msra.mxu0 0.0
    %3451 = vmatpush.msra.mxu0 0.0
    %3452 = vmatpush.msra.mxu0 0.0
    %3453 = vmatpush.msra.mxu0 %v3430
    %3454 = vmatpush.msra.mxu0 %v3428
    %3455 = vmatmul.f32.gmra.mxu0 %v3434
    %v3456 = vpop.f32.mrf.mxu0
    %v3457 = vadd.f32 0.0, %v3456
    %3458 = vmatmul.f32.gmra.mxu0 %v3437
    %v3459 = vpop.f32.mrf.mxu0
    %v3460 = vadd.f32 0.0, %v3459
    %3461 = vdwg.mxu0
    %3464 = vrot.lane.b32.xlu0 %v3257, 8
    %v3465 = vpop.permute.xlu0 %3464
    %3466 = vrot.lane.b32.xlu0 %v3260, 8
    %v3467 = vpop.permute.xlu0 %3466
    %3472 = vrot.lane.b32.xlu0 %v3357, 16
    %v3473 = vpop.permute.xlu0 %3472
    %3474 = vrot.lane.b32.xlu0 %v3360, 16
    %v3475 = vpop.permute.xlu0 %3474
    %3480 = vrot.lane.b32.xlu0 %v3457, 24
    %v3481 = vpop.permute.xlu0 %3480
    %3482 = vrot.lane.b32.xlu0 %v3460, 24
    %v3483 = vpop.permute.xlu0 %3482
    %v3486 = vsel %vm309, %v3157, %v3465
    %v3487 = vsel %vm309, %v3160, %v3467
    %v3488 = vsel %vm229, %v3486, %v3473
    %v3489 = vsel %vm229, %v3487, %v3475
    %v3490 = vsel %vm730, %v3488, %v3481
    %v3491 = vsel %vm730, %v3489, %v3483
    %s3492 = scalar_lea.vmem %s51, 32
    %v3493 = vld [vmem:[%s3492] sm:$0xff]
    %v3494 = vld [vmem:[%s3492 + $0x8] sm:$0xff]
    %v3495 = vld [vmem:[%s3492 + $0x10] sm:$0xff]
    %v3496 = vld [vmem:[%s3492 + $0x18] sm:$0xff]
    %s3497 = scalar_lea.vmem %s53, 1
    %v3498 = vld [vmem:[%s3497] sm:$0x1]
    %v3500 = vperm.slane %v3498, 0
    %v3503 = vsel %vm273, %v3490, 0
    %v3506 = vsel %vm273, %v3491, 0
    %3508 = vmatpush.msra.mxu0 0.0
    %3509 = vmatpush.msra.mxu0 0.0
    %3510 = vmatpush.msra.mxu0 0.0
    %3511 = vmatpush.msra.mxu0 0.0
    %3512 = vmatpush.msra.mxu0 0.0
    %3513 = vmatpush.msra.mxu0 0.0
    %3514 = vmatpush.msra.mxu0 0.0
    %3515 = vmatpush.msra.mxu0 0.0
    %3516 = vmatpush.msra.mxu0 0.0
    %3517 = vmatpush.msra.mxu0 0.0
    %3518 = vmatpush.msra.mxu0 0.0
    %3519 = vmatpush.msra.mxu0 0.0
    %3520 = vmatpush.msra.mxu0 %v3496
    %3521 = vmatpush.msra.mxu0 %v3495
    %3522 = vmatpush.msra.mxu0 %v3494
    %3523 = vmatpush.msra.mxu0 %v3493
    %3524 = vmatmul.f32.gmra.mxu0 %v3503
    %v3525 = vpop.f32.mrf.mxu0
    %v3526 = vadd.f32 %v3500, %v3525
    %3527 = vmatmul.f32.gmra.mxu0 %v3506
    %v3528 = vpop.f32.mrf.mxu0
    %v3529 = vadd.f32 %v3500, %v3528
    %3530 = vdwg.mxu0
    %v3531 = vadd.f32 %v3023, %v3526
    %v3532 = vadd.f32 %v3024, %v3529
    %s3533 = scalar_lea.vmem %s55, 1
    %v3534 = vld [vmem:[%s3533] sm:$0x1]
    %s3535 = scalar_lea.vmem %s57, 1
    %v3536 = vld [vmem:[%s3535] sm:$0x1]
    %v3537 = vsel %vm273, %v3531, 0.0
    %3538 = vadd.xlane.f32.xlu0 %v3537
    %v3539 = vpop.xlane.xlu0 %3538
    %v3540 = vsel %vm273, %v3532, 0.0
    %3541 = vadd.xlane.f32.xlu0 %v3540
    %v3542 = vpop.xlane.xlu0 %3541
    %v3543 = vmul.f32 %v3539, %v786
    %v3544 = vmul.f32 %v3542, %v786
    %v3545 = vsub.f32 %v3531, %v3543
    %v3546 = vsub.f32 %v3532, %v3544
    %v3547 = vmul.f32 %v3545, %v3545
    %v3548 = vmul.f32 %v3546, %v3546
    %v3549 = vsel %vm273, %v3547, 0.0
    %3550 = vadd.xlane.f32.xlu0 %v3549
    %v3551 = vpop.xlane.xlu0 %3550
    %v3552 = vsel %vm273, %v3548, 0.0
    %3553 = vadd.xlane.f32.xlu0 %v3552
    %v3554 = vpop.xlane.xlu0 %3553
    %v3555 = vmul.f32 %v3551, %v786
    %v3556 = vmul.f32 %v3554, %v786
    %v3557 = vadd.f32 %v3555, 1e-05
    %v3558 = vadd.f32 %v3556, 1e-05
    %v3559 = vrsqrt.pop %v3557
    %v3560 = vmul.f32 %v3559, %v3557
    %v3561 = vmul.f32 %v3560, %v3559
    %v3562 = vmul.f32 0.5, %v3561
    %v3563 = vsub.f32 1.5, %v3562
    %v3564 = vmul.f32 %v3559, %v3563
    %vm3565 = vweird.f32 %v3557
    %vm3566 = vweird.f32 %v3559
    %vm3567 = vmor %vm3565, %vm3566
    %v3568 = vsel %vm3567, %v3559, %v3564
    %v3569 = vrsqrt.pop %v3558
    %v3570 = vmul.f32 %v3569, %v3558
    %v3571 = vmul.f32 %v3570, %v3569
    %v3572 = vmul.f32 0.5, %v3571
    %v3573 = vsub.f32 1.5, %v3572
    %v3574 = vmul.f32 %v3569, %v3573
    %vm3575 = vweird.f32 %v3558
    %vm3576 = vweird.f32 %v3569
    %vm3577 = vmor %vm3575, %vm3576
    %v3578 = vsel %vm3577, %v3569, %v3574
    %v3579 = vmul.f32 %v3545, %v3568
    %v3580 = vmul.f32 %v3546, %v3578
    %v3582 = vperm.slane %v3534, 0
    %v3584 = vmul.f32 %v3579, %v3582
    %v3585 = vmul.f32 %v3580, %v3582
    %v3587 = vperm.slane %v3536, 0
    %v3589 = vadd.f32 %v3584, %v3587
    %v3590 = vadd.f32 %v3585, %v3587
    %s3591 = scalar_lea.vmem %s59, 32
    %v3592 = vld [vmem:[%s3591] sm:$0xff]
    %v3593 = vld [vmem:[%s3591 + $0x8] sm:$0xff]
    %v3594 = vld [vmem:[%s3591 + $0x10] sm:$0xff]
    %v3595 = vld [vmem:[%s3591 + $0x18] sm:$0xff]
    %s3596 = scalar_lea.vmem %s61, 1
    %v3597 = vld [vmem:[%s3596] sm:$0x1]
    %v3599 = vperm.slane %v3597, 0
    %v3602 = vsel %vm273, %v3589, 0
    %v3605 = vsel %vm273, %v3590, 0
    %3607 = vmatpush.msra.mxu0 0.0
    %3608 = vmatpush.msra.mxu0 0.0
    %3609 = vmatpush.msra.mxu0 0.0
    %3610 = vmatpush.msra.mxu0 0.0
    %3611 = vmatpush.msra.mxu0 0.0
    %3612 = vmatpush.msra.mxu0 0.0
    %3613 = vmatpush.msra.mxu0 0.0
    %3614 = vmatpush.msra.mxu0 0.0
    %3615 = vmatpush.msra.mxu0 0.0
    %3616 = vmatpush.msra.mxu0 0.0
    %3617 = vmatpush.msra.mxu0 0.0
    %3618 = vmatpush.msra.mxu0 0.0
    %3619 = vmatpush.msra.mxu0 %v3595
    %3620 = vmatpush.msra.mxu0 %v3594
    %3621 = vmatpush.msra.mxu0 %v3593
    %3622 = vmatpush.msra.mxu0 %v3592
    %3623 = vmatmul.f32.gmra.mxu0 %v3602
    %v3624 = vpop.f32.mrf.mxu0
    %v3625 = vadd.f32 %v3599, %v3624
    %3626 = vmatmul.f32.gmra.mxu0 %v3605
    %v3627 = vpop.f32.mrf.mxu0
    %v3628 = vadd.f32 %v3599, %v3627
    %3629 = vdwg.mxu0
    %s3630 = scalar_lea.vmem %s63, 32
    %v3631 = vld [vmem:[%s3630] sm:$0xff]
    %v3632 = vld [vmem:[%s3630 + $0x8] sm:$0xff]
    %v3633 = vld [vmem:[%s3630 + $0x10] sm:$0xff]
    %v3634 = vld [vmem:[%s3630 + $0x18] sm:$0xff]
    %s3635 = scalar_lea.vmem %s65, 1
    %v3636 = vld [vmem:[%s3635] sm:$0x1]
    %v3638 = vperm.slane %v3636, 0
    %3640 = vmatpush.msra.mxu0 0.0
    %3641 = vmatpush.msra.mxu0 0.0
    %3642 = vmatpush.msra.mxu0 0.0
    %3643 = vmatpush.msra.mxu0 0.0
    %3644 = vmatpush.msra.mxu0 0.0
    %3645 = vmatpush.msra.mxu0 0.0
    %3646 = vmatpush.msra.mxu0 0.0
    %3647 = vmatpush.msra.mxu0 0.0
    %3648 = vmatpush.msra.mxu0 0.0
    %3649 = vmatpush.msra.mxu0 0.0
    %3650 = vmatpush.msra.mxu0 0.0
    %3651 = vmatpush.msra.mxu0 0.0
    %3652 = vmatpush.msra.mxu0 %v3634
    %3653 = vmatpush.msra.mxu0 %v3633
    %3654 = vmatpush.msra.mxu0 %v3632
    %3655 = vmatpush.msra.mxu0 %v3631
    %3656 = vmatmul.f32.gmra.mxu0 %v2336
    %v3657 = vpop.f32.mrf.mxu0
    %v3658 = vadd.f32 %v3638, %v3657
    %3659 = vmatmul.f32.gmra.mxu0 %v2339
    %v3660 = vpop.f32.mrf.mxu0
    %v3661 = vadd.f32 %v3638, %v3660
    %3662 = vdwg.mxu0
    %v3664 = vsel %vm309, %v3625, 0
    %v3667 = vsel %vm309, %v3628, 0
    %v3670 = vsel %vm309, %v3658, 0
    %v3673 = vsel %vm309, %v3661, 0
    %3675 = vmatpush.xpose.msra.mxu0 0.0
    %3676 = vmatpush.xpose.msra.mxu0 0.0
    %3677 = vmatpush.xpose.msra.mxu0 0.0
    %3678 = vmatpush.xpose.msra.mxu0 0.0
    %3679 = vmatpush.xpose.msra.mxu0 0.0
    %3680 = vmatpush.xpose.msra.mxu0 0.0
    %3681 = vmatpush.xpose.msra.mxu0 0.0
    %3682 = vmatpush.xpose.msra.mxu0 0.0
    %3683 = vmatpush.xpose.msra.mxu0 0.0
    %3684 = vmatpush.xpose.msra.mxu0 0.0
    %3685 = vmatpush.xpose.msra.mxu0 0.0
    %3686 = vmatpush.xpose.msra.mxu0 0.0
    %3687 = vmatpush.xpose.msra.mxu0 0.0
    %3688 = vmatpush.xpose.msra.mxu0 0.0
    %3689 = vmatpush.xpose.msra.mxu0 %v3673
    %3690 = vmatpush.xpose.msra.mxu0 %v3670
    %3691 = vmatmul.f32.gmra.mxu0 %v3664
    %v3692 = vpop.f32.mrf.mxu0
    %v3693 = vadd.f32 0.0, %v3692
    %3694 = vmatmul.f32.gmra.mxu0 %v3667
    %v3695 = vpop.f32.mrf.mxu0
    %v3696 = vadd.f32 0.0, %v3695
    %3697 = vdwg.mxu0
    %v3698 = vmul.f32 %v3693, 0.35355338
    %v3699 = vmul.f32 %v3696, 0.35355338
    %v3700 = vadd.f32 %v3698, %v219
    %v3701 = vadd.f32 %v3699, %v220
    %v3702 = vsel %vm229, %v3700, -inf
    %3703 = vmax.xlane.f32.xlu0 %v3702
    %v3704 = vpop.xlane.xlu0 %3703
    %v3705 = vsel %vm229, %v3701, -inf
    %3706 = vmax.xlane.f32.xlu0 %v3705
    %v3707 = vpop.xlane.xlu0 %3706
    %v3708 = vsub.f32 %v3700, %v3704
    %v3709 = vsub.f32 %v3701, %v3707
    %v3710 = vmul.f32 %v3708, 1.442695
    %v3711 = vpow.pop %v3710
    %v3712 = vmul.f32 %v3709, 1.442695
    %v3713 = vpow.pop %v3712
    %v3714 = vsel %vm229, %v3711, 0.0
    %3715 = vadd.xlane.f32.xlu0 %v3714
    %v3716 = vpop.xlane.xlu0 %3715
    %v3717 = vsel %vm229, %v3713, 0.0
    %3718 = vadd.xlane.f32.xlu0 %v3717
    %v3719 = vpop.xlane.xlu0 %3718
    %v3720 = vrcp.pop %v3716
    %v3721 = vrcp.pop %v3719
    %v3722 = vmul.f32 %v3711, %v3720
    %v3723 = vmul.f32 %v3713, %v3721
    %3724 = vrot.lane.b32.xlu0 %v3658, 96
    %v3725 = vpop.permute.xlu0 %3724
    %3726 = vrot.lane.b32.xlu0 %v3661, 96
    %v3727 = vpop.permute.xlu0 %3726
    %v3731 = vsel %vm229, %v3722, 0
    %v3734 = vsel %vm229, %v3723, 0
    %3736 = vmatpush.msra.mxu0 0.0
    %3737 = vmatpush.msra.mxu0 0.0
    %3738 = vmatpush.msra.mxu0 0.0
    %3739 = vmatpush.msra.mxu0 0.0
    %3740 = vmatpush.msra.mxu0 0.0
    %3741 = vmatpush.msra.mxu0 0.0
    %3742 = vmatpush.msra.mxu0 0.0
    %3743 = vmatpush.msra.mxu0 0.0
    %3744 = vmatpush.msra.mxu0 0.0
    %3745 = vmatpush.msra.mxu0 0.0
    %3746 = vmatpush.msra.mxu0 0.0
    %3747 = vmatpush.msra.mxu0 0.0
    %3748 = vmatpush.msra.mxu0 0.0
    %3749 = vmatpush.msra.mxu0 0.0
    %3750 = vmatpush.msra.mxu0 %v3727
    %3751 = vmatpush.msra.mxu0 %v3725
    %3752 = vmatmul.f32.gmra.mxu0 %v3731
    %v3753 = vpop.f32.mrf.mxu0
    %v3754 = vadd.f32 0.0, %v3753
    %3755 = vmatmul.f32.gmra.mxu0 %v3734
    %v3756 = vpop.f32.mrf.mxu0
    %v3757 = vadd.f32 0.0, %v3756
    %3758 = vdwg.mxu0
    %3759 = vrot.lane.b32.xlu0 %v3625, 120
    %v3760 = vpop.permute.xlu0 %3759
    %3761 = vrot.lane.b32.xlu0 %v3628, 120
    %v3762 = vpop.permute.xlu0 %3761
    %3763 = vrot.lane.b32.xlu0 %v3658, 120
    %v3764 = vpop.permute.xlu0 %3763
    %3765 = vrot.lane.b32.xlu0 %v3661, 120
    %v3766 = vpop.permute.xlu0 %3765
    %v3767 = vsel %vm309, %v3760, 0
    %v3769 = vsel %vm309, %v3762, 0
    %v3771 = vsel %vm309, %v3764, 0
    %v3773 = vsel %vm309, %v3766, 0
    %3775 = vmatpush.xpose.msra.mxu0 0.0
    %3776 = vmatpush.xpose.msra.mxu0 0.0
    %3777 = vmatpush.xpose.msra.mxu0 0.0
    %3778 = vmatpush.xpose.msra.mxu0 0.0
    %3779 = vmatpush.xpose.msra.mxu0 0.0
    %3780 = vmatpush.xpose.msra.mxu0 0.0
    %3781 = vmatpush.xpose.msra.mxu0 0.0
    %3782 = vmatpush.xpose.msra.mxu0 0.0
    %3783 = vmatpush.xpose.msra.mxu0 0.0
    %3784 = vmatpush.xpose.msra.mxu0 0.0
    %3785 = vmatpush.xpose.msra.mxu0 0.0
    %3786 = vmatpush.xpose.msra.mxu0 0.0
    %3787 = vmatpush.xpose.msra.mxu0 0.0
    %3788 = vmatpush.xpose.msra.mxu0 0.0
    %3789 = vmatpush.xpose.msra.mxu0 %v3773
    %3790 = vmatpush.xpose.msra.mxu0 %v3771
    %3791 = vmatmul.f32.gmra.mxu0 %v3767
    %v3792 = vpop.f32.mrf.mxu0
    %v3793 = vadd.f32 0.0, %v3792
    %3794 = vmatmul.f32.gmra.mxu0 %v3769
    %v3795 = vpop.f32.mrf.mxu0
    %v3796 = vadd.f32 0.0, %v3795
    %3797 = vdwg.mxu0
    %v3798 = vmul.f32 %v3793, 0.35355338
    %v3799 = vmul.f32 %v3796, 0.35355338
    %v3800 = vadd.f32 %v3798, %v219
    %v3801 = vadd.f32 %v3799, %v220
    %v3802 = vsel %vm229, %v3800, -inf
    %3803 = vmax.xlane.f32.xlu0 %v3802
    %v3804 = vpop.xlane.xlu0 %3803
    %v3805 = vsel %vm229, %v3801, -inf
    %3806 = vmax.xlane.f32.xlu0 %v3805
    %v3807 = vpop.xlane.xlu0 %3806
    %v3808 = vsub.f32 %v3800, %v3804
    %v3809 = vsub.f32 %v3801, %v3807
    %v3810 = vmul.f32 %v3808, 1.442695
    %v3811 = vpow.pop %v3810
    %v3812 = vmul.f32 %v3809, 1.442695
    %v3813 = vpow.pop %v3812
    %v3814 = vsel %vm229, %v3811, 0.0
    %3815 = vadd.xlane.f32.xlu0 %v3814
    %v3816 = vpop.xlane.xlu0 %3815
    %v3817 = vsel %vm229, %v3813, 0.0
    %3818 = vadd.xlane.f32.xlu0 %v3817
    %v3819 = vpop.xlane.xlu0 %3818
    %v3820 = vrcp.pop %v3816
    %v3821 = vrcp.pop %v3819
    %v3822 = vmul.f32 %v3811, %v3820
    %v3823 = vmul.f32 %v3813, %v3821
    %3824 = vrot.lane.b32.xlu0 %v3658, 88
    %v3825 = vpop.permute.xlu0 %3824
    %3826 = vrot.lane.b32.xlu0 %v3661, 88
    %v3827 = vpop.permute.xlu0 %3826
    %v3831 = vsel %vm229, %v3822, 0
    %v3834 = vsel %vm229, %v3823, 0
    %3836 = vmatpush.msra.mxu0 0.0
    %3837 = vmatpush.msra.mxu0 0.0
    %3838 = vmatpush.msra.mxu0 0.0
    %3839 = vmatpush.msra.mxu0 0.0
    %3840 = vmatpush.msra.mxu0 0.0
    %3841 = vmatpush.msra.mxu0 0.0
    %3842 = vmatpush.msra.mxu0 0.0
    %3843 = vmatpush.msra.mxu0 0.0
    %3844 = vmatpush.msra.mxu0 0.0
    %3845 = vmatpush.msra.mxu0 0.0
    %3846 = vmatpush.msra.mxu0 0.0
    %3847 = vmatpush.msra.mxu0 0.0
    %3848 = vmatpush.msra.mxu0 0.0
    %3849 = vmatpush.msra.mxu0 0.0
    %3850 = vmatpush.msra.mxu0 %v3827
    %3851 = vmatpush.msra.mxu0 %v3825
    %3852 = vmatmul.f32.gmra.mxu0 %v3831
    %v3853 = vpop.f32.mrf.mxu0
    %v3854 = vadd.f32 0.0, %v3853
    %3855 = vmatmul.f32.gmra.mxu0 %v3834
    %v3856 = vpop.f32.mrf.mxu0
    %v3857 = vadd.f32 0.0, %v3856
    %3858 = vdwg.mxu0
    %3859 = vrot.lane.b32.xlu0 %v3625, 112
    %v3860 = vpop.permute.xlu0 %3859
    %3861 = vrot.lane.b32.xlu0 %v3628, 112
    %v3862 = vpop.permute.xlu0 %3861
    %3863 = vrot.lane.b32.xlu0 %v3658, 112
    %v3864 = vpop.permute.xlu0 %3863
    %3865 = vrot.lane.b32.xlu0 %v3661, 112
    %v3866 = vpop.permute.xlu0 %3865
    %v3867 = vsel %vm309, %v3860, 0
    %v3869 = vsel %vm309, %v3862, 0
    %v3871 = vsel %vm309, %v3864, 0
    %v3873 = vsel %vm309, %v3866, 0
    %3875 = vmatpush.xpose.msra.mxu0 0.0
    %3876 = vmatpush.xpose.msra.mxu0 0.0
    %3877 = vmatpush.xpose.msra.mxu0 0.0
    %3878 = vmatpush.xpose.msra.mxu0 0.0
    %3879 = vmatpush.xpose.msra.mxu0 0.0
    %3880 = vmatpush.xpose.msra.mxu0 0.0
    %3881 = vmatpush.xpose.msra.mxu0 0.0
    %3882 = vmatpush.xpose.msra.mxu0 0.0
    %3883 = vmatpush.xpose.msra.mxu0 0.0
    %3884 = vmatpush.xpose.msra.mxu0 0.0
    %3885 = vmatpush.xpose.msra.mxu0 0.0
    %3886 = vmatpush.xpose.msra.mxu0 0.0
    %3887 = vmatpush.xpose.msra.mxu0 0.0
    %3888 = vmatpush.xpose.msra.mxu0 0.0
    %3889 = vmatpush.xpose.msra.mxu0 %v3873
    %3890 = vmatpush.xpose.msra.mxu0 %v3871
    %3891 = vmatmul.f32.gmra.mxu0 %v3867
    %v3892 = vpop.f32.mrf.mxu0
    %v3893 = vadd.f32 0.0, %v3892
    %3894 = vmatmul.f32.gmra.mxu0 %v3869
    %v3895 = vpop.f32.mrf.mxu0
    %v3896 = vadd.f32 0.0, %v3895
    %3897 = vdwg.mxu0
    %v3898 = vmul.f32 %v3893, 0.35355338
    %v3899 = vmul.f32 %v3896, 0.35355338
    %v3900 = vadd.f32 %v3898, %v219
    %v3901 = vadd.f32 %v3899, %v220
    %v3902 = vsel %vm229, %v3900, -inf
    %3903 = vmax.xlane.f32.xlu0 %v3902
    %v3904 = vpop.xlane.xlu0 %3903
    %v3905 = vsel %vm229, %v3901, -inf
    %3906 = vmax.xlane.f32.xlu0 %v3905
    %v3907 = vpop.xlane.xlu0 %3906
    %v3908 = vsub.f32 %v3900, %v3904
    %v3909 = vsub.f32 %v3901, %v3907
    %v3910 = vmul.f32 %v3908, 1.442695
    %v3911 = vpow.pop %v3910
    %v3912 = vmul.f32 %v3909, 1.442695
    %v3913 = vpow.pop %v3912
    %v3914 = vsel %vm229, %v3911, 0.0
    %3915 = vadd.xlane.f32.xlu0 %v3914
    %v3916 = vpop.xlane.xlu0 %3915
    %v3917 = vsel %vm229, %v3913, 0.0
    %3918 = vadd.xlane.f32.xlu0 %v3917
    %v3919 = vpop.xlane.xlu0 %3918
    %v3920 = vrcp.pop %v3916
    %v3921 = vrcp.pop %v3919
    %v3922 = vmul.f32 %v3911, %v3920
    %v3923 = vmul.f32 %v3913, %v3921
    %3924 = vrot.lane.b32.xlu0 %v3658, 80
    %v3925 = vpop.permute.xlu0 %3924
    %3926 = vrot.lane.b32.xlu0 %v3661, 80
    %v3927 = vpop.permute.xlu0 %3926
    %v3931 = vsel %vm229, %v3922, 0
    %v3934 = vsel %vm229, %v3923, 0
    %3936 = vmatpush.msra.mxu0 0.0
    %3937 = vmatpush.msra.mxu0 0.0
    %3938 = vmatpush.msra.mxu0 0.0
    %3939 = vmatpush.msra.mxu0 0.0
    %3940 = vmatpush.msra.mxu0 0.0
    %3941 = vmatpush.msra.mxu0 0.0
    %3942 = vmatpush.msra.mxu0 0.0
    %3943 = vmatpush.msra.mxu0 0.0
    %3944 = vmatpush.msra.mxu0 0.0
    %3945 = vmatpush.msra.mxu0 0.0
    %3946 = vmatpush.msra.mxu0 0.0
    %3947 = vmatpush.msra.mxu0 0.0
    %3948 = vmatpush.msra.mxu0 0.0
    %3949 = vmatpush.msra.mxu0 0.0
    %3950 = vmatpush.msra.mxu0 %v3927
    %3951 = vmatpush.msra.mxu0 %v3925
    %3952 = vmatmul.f32.gmra.mxu0 %v3931
    %v3953 = vpop.f32.mrf.mxu0
    %v3954 = vadd.f32 0.0, %v3953
    %3955 = vmatmul.f32.gmra.mxu0 %v3934
    %v3956 = vpop.f32.mrf.mxu0
    %v3957 = vadd.f32 0.0, %v3956
    %3958 = vdwg.mxu0
    %3959 = vrot.lane.b32.xlu0 %v3625, 104
    %v3960 = vpop.permute.xlu0 %3959
    %3961 = vrot.lane.b32.xlu0 %v3628, 104
    %v3962 = vpop.permute.xlu0 %3961
    %3963 = vrot.lane.b32.xlu0 %v3658, 104
    %v3964 = vpop.permute.xlu0 %3963
    %3965 = vrot.lane.b32.xlu0 %v3661, 104
    %v3966 = vpop.permute.xlu0 %3965
    %v3967 = vsel %vm309, %v3960, 0
    %v3969 = vsel %vm309, %v3962, 0
    %v3971 = vsel %vm309, %v3964, 0
    %v3973 = vsel %vm309, %v3966, 0
    %3975 = vmatpush.xpose.msra.mxu0 0.0
    %3976 = vmatpush.xpose.msra.mxu0 0.0
    %3977 = vmatpush.xpose.msra.mxu0 0.0
    %3978 = vmatpush.xpose.msra.mxu0 0.0
    %3979 = vmatpush.xpose.msra.mxu0 0.0
    %3980 = vmatpush.xpose.msra.mxu0 0.0
    %3981 = vmatpush.xpose.msra.mxu0 0.0
    %3982 = vmatpush.xpose.msra.mxu0 0.0
    %3983 = vmatpush.xpose.msra.mxu0 0.0
    %3984 = vmatpush.xpose.msra.mxu0 0.0
    %3985 = vmatpush.xpose.msra.mxu0 0.0
    %3986 = vmatpush.xpose.msra.mxu0 0.0
    %3987 = vmatpush.xpose.msra.mxu0 0.0
    %3988 = vmatpush.xpose.msra.mxu0 0.0
    %3989 = vmatpush.xpose.msra.mxu0 %v3973
    %3990 = vmatpush.xpose.msra.mxu0 %v3971
    %3991 = vmatmul.f32.gmra.mxu0 %v3967
    %v3992 = vpop.f32.mrf.mxu0
    %v3993 = vadd.f32 0.0, %v3992
    %3994 = vmatmul.f32.gmra.mxu0 %v3969
    %v3995 = vpop.f32.mrf.mxu0
    %v3996 = vadd.f32 0.0, %v3995
    %3997 = vdwg.mxu0
    %v3998 = vmul.f32 %v3993, 0.35355338
    %v3999 = vmul.f32 %v3996, 0.35355338
    %v4000 = vadd.f32 %v3998, %v219
    %v4001 = vadd.f32 %v3999, %v220
    %v4002 = vsel %vm229, %v4000, -inf
    %4003 = vmax.xlane.f32.xlu0 %v4002
    %v4004 = vpop.xlane.xlu0 %4003
    %v4005 = vsel %vm229, %v4001, -inf
    %4006 = vmax.xlane.f32.xlu0 %v4005
    %v4007 = vpop.xlane.xlu0 %4006
    %v4008 = vsub.f32 %v4000, %v4004
    %v4009 = vsub.f32 %v4001, %v4007
    %v4010 = vmul.f32 %v4008, 1.442695
    %v4011 = vpow.pop %v4010
    %v4012 = vmul.f32 %v4009, 1.442695
    %v4013 = vpow.pop %v4012
    %v4014 = vsel %vm229, %v4011, 0.0
    %4015 = vadd.xlane.f32.xlu0 %v4014
    %v4016 = vpop.xlane.xlu0 %4015
    %v4017 = vsel %vm229, %v4013, 0.0
    %4018 = vadd.xlane.f32.xlu0 %v4017
    %v4019 = vpop.xlane.xlu0 %4018
    %v4020 = vrcp.pop %v4016
    %v4021 = vrcp.pop %v4019
    %v4022 = vmul.f32 %v4011, %v4020
    %v4023 = vmul.f32 %v4013, %v4021
    %4024 = vrot.lane.b32.xlu0 %v3658, 72
    %v4025 = vpop.permute.xlu0 %4024
    %4026 = vrot.lane.b32.xlu0 %v3661, 72
    %v4027 = vpop.permute.xlu0 %4026
    %v4031 = vsel %vm229, %v4022, 0
    %v4034 = vsel %vm229, %v4023, 0
    %4036 = vmatpush.msra.mxu0 0.0
    %4037 = vmatpush.msra.mxu0 0.0
    %4038 = vmatpush.msra.mxu0 0.0
    %4039 = vmatpush.msra.mxu0 0.0
    %4040 = vmatpush.msra.mxu0 0.0
    %4041 = vmatpush.msra.mxu0 0.0
    %4042 = vmatpush.msra.mxu0 0.0
    %4043 = vmatpush.msra.mxu0 0.0
    %4044 = vmatpush.msra.mxu0 0.0
    %4045 = vmatpush.msra.mxu0 0.0
    %4046 = vmatpush.msra.mxu0 0.0
    %4047 = vmatpush.msra.mxu0 0.0
    %4048 = vmatpush.msra.mxu0 0.0
    %4049 = vmatpush.msra.mxu0 0.0
    %4050 = vmatpush.msra.mxu0 %v4027
    %4051 = vmatpush.msra.mxu0 %v4025
    %4052 = vmatmul.f32.gmra.mxu0 %v4031
    %v4053 = vpop.f32.mrf.mxu0
    %v4054 = vadd.f32 0.0, %v4053
    %4055 = vmatmul.f32.gmra.mxu0 %v4034
    %v4056 = vpop.f32.mrf.mxu0
    %v4057 = vadd.f32 0.0, %v4056
    %4058 = vdwg.mxu0
    %4061 = vrot.lane.b32.xlu0 %v3854, 8
    %v4062 = vpop.permute.xlu0 %4061
    %4063 = vrot.lane.b32.xlu0 %v3857, 8
    %v4064 = vpop.permute.xlu0 %4063
    %4069 = vrot.lane.b32.xlu0 %v3954, 16
    %v4070 = vpop.permute.xlu0 %4069
    %4071 = vrot.lane.b32.xlu0 %v3957, 16
    %v4072 = vpop.permute.xlu0 %4071
    %4077 = vrot.lane.b32.xlu0 %v4054, 24
    %v4078 = vpop.permute.xlu0 %4077
    %4079 = vrot.lane.b32.xlu0 %v4057, 24
    %v4080 = vpop.permute.xlu0 %4079
    %v4083 = vsel %vm309, %v3754, %v4062
    %v4084 = vsel %vm309, %v3757, %v4064
    %v4085 = vsel %vm229, %v4083, %v4070
    %v4086 = vsel %vm229, %v4084, %v4072
    %v4087 = vsel %vm730, %v4085, %v4078
    %v4088 = vsel %vm730, %v4086, %v4080
    %s4089 = scalar_lea.vmem %s67, 32
    %v4090 = vld [vmem:[%s4089] sm:$0xff]
    %v4091 = vld [vmem:[%s4089 + $0x8] sm:$0xff]
    %v4092 = vld [vmem:[%s4089 + $0x10] sm:$0xff]
    %v4093 = vld [vmem:[%s4089 + $0x18] sm:$0xff]
    %s4094 = scalar_lea.vmem %s69, 1
    %v4095 = vld [vmem:[%s4094] sm:$0x1]
    %v4097 = vperm.slane %v4095, 0
    %v4100 = vsel %vm273, %v4087, 0
    %v4103 = vsel %vm273, %v4088, 0
    %4105 = vmatpush.msra.mxu0 0.0
    %4106 = vmatpush.msra.mxu0 0.0
    %4107 = vmatpush.msra.mxu0 0.0
    %4108 = vmatpush.msra.mxu0 0.0
    %4109 = vmatpush.msra.mxu0 0.0
    %4110 = vmatpush.msra.mxu0 0.0
    %4111 = vmatpush.msra.mxu0 0.0
    %4112 = vmatpush.msra.mxu0 0.0
    %4113 = vmatpush.msra.mxu0 0.0
    %4114 = vmatpush.msra.mxu0 0.0
    %4115 = vmatpush.msra.mxu0 0.0
    %4116 = vmatpush.msra.mxu0 0.0
    %4117 = vmatpush.msra.mxu0 %v4093
    %4118 = vmatpush.msra.mxu0 %v4092
    %4119 = vmatpush.msra.mxu0 %v4091
    %4120 = vmatpush.msra.mxu0 %v4090
    %4121 = vmatmul.f32.gmra.mxu0 %v4100
    %v4122 = vpop.f32.mrf.mxu0
    %v4123 = vadd.f32 %v4097, %v4122
    %4124 = vmatmul.f32.gmra.mxu0 %v4103
    %v4125 = vpop.f32.mrf.mxu0
    %v4126 = vadd.f32 %v4097, %v4125
    %4127 = vdwg.mxu0
    %v4128 = vadd.f32 %v3589, %v4123
    %v4129 = vadd.f32 %v3590, %v4126
    %s4130 = scalar_lea.vmem %s71, 1
    %v4131 = vld [vmem:[%s4130] sm:$0x1]
    %s4132 = scalar_lea.vmem %s73, 1
    %v4133 = vld [vmem:[%s4132] sm:$0x1]
    %v4134 = vsel %vm273, %v4128, 0.0
    %4135 = vadd.xlane.f32.xlu0 %v4134
    %v4136 = vpop.xlane.xlu0 %4135
    %v4137 = vsel %vm273, %v4129, 0.0
    %4138 = vadd.xlane.f32.xlu0 %v4137
    %v4139 = vpop.xlane.xlu0 %4138
    %v4140 = vmul.f32 %v4136, %v786
    %v4141 = vmul.f32 %v4139, %v786
    %v4142 = vsub.f32 %v4128, %v4140
    %v4143 = vsub.f32 %v4129, %v4141
    %v4144 = vmul.f32 %v4142, %v4142
    %v4145 = vmul.f32 %v4143, %v4143
    %v4146 = vsel %vm273, %v4144, 0.0
    %4147 = vadd.xlane.f32.xlu0 %v4146
    %v4148 = vpop.xlane.xlu0 %4147
    %v4149 = vsel %vm273, %v4145, 0.0
    %4150 = vadd.xlane.f32.xlu0 %v4149
    %v4151 = vpop.xlane.xlu0 %4150
    %v4152 = vmul.f32 %v4148, %v786
    %v4153 = vmul.f32 %v4151, %v786
    %v4154 = vadd.f32 %v4152, 1e-05
    %v4155 = vadd.f32 %v4153, 1e-05
    %v4156 = vrsqrt.pop %v4154
    %v4157 = vmul.f32 %v4156, %v4154
    %v4158 = vmul.f32 %v4157, %v4156
    %v4159 = vmul.f32 0.5, %v4158
    %v4160 = vsub.f32 1.5, %v4159
    %v4161 = vmul.f32 %v4156, %v4160
    %vm4162 = vweird.f32 %v4154
    %vm4163 = vweird.f32 %v4156
    %vm4164 = vmor %vm4162, %vm4163
    %v4165 = vsel %vm4164, %v4156, %v4161
    %v4166 = vrsqrt.pop %v4155
    %v4167 = vmul.f32 %v4166, %v4155
    %v4168 = vmul.f32 %v4167, %v4166
    %v4169 = vmul.f32 0.5, %v4168
    %v4170 = vsub.f32 1.5, %v4169
    %v4171 = vmul.f32 %v4166, %v4170
    %vm4172 = vweird.f32 %v4155
    %vm4173 = vweird.f32 %v4166
    %vm4174 = vmor %vm4172, %vm4173
    %v4175 = vsel %vm4174, %v4166, %v4171
    %v4176 = vmul.f32 %v4142, %v4165
    %v4177 = vmul.f32 %v4143, %v4175
    %v4179 = vperm.slane %v4131, 0
    %v4181 = vmul.f32 %v4176, %v4179
    %v4182 = vmul.f32 %v4177, %v4179
    %v4184 = vperm.slane %v4133, 0
    %v4186 = vadd.f32 %v4181, %v4184
    %v4187 = vadd.f32 %v4182, %v4184
    %s4188 = scalar_lea.vmem %s75, 32
    %v4189 = vld [vmem:[%s4188] sm:$0xff]
    %v4190 = vld [vmem:[%s4188 + $0x8] sm:$0xff]
    %v4191 = vld [vmem:[%s4188 + $0x10] sm:$0xff]
    %v4192 = vld [vmem:[%s4188 + $0x18] sm:$0xff]
    %s4193 = scalar_lea.vmem %s77, 1
    %v4194 = vld [vmem:[%s4193] sm:$0x1]
    %v4196 = vperm.slane %v4194, 0
    %v4199 = vsel %vm273, %v4186, 0
    %v4202 = vsel %vm273, %v4187, 0
    %4204 = vmatpush.msra.mxu0 0.0
    %4205 = vmatpush.msra.mxu0 0.0
    %4206 = vmatpush.msra.mxu0 0.0
    %4207 = vmatpush.msra.mxu0 0.0
    %4208 = vmatpush.msra.mxu0 0.0
    %4209 = vmatpush.msra.mxu0 0.0
    %4210 = vmatpush.msra.mxu0 0.0
    %4211 = vmatpush.msra.mxu0 0.0
    %4212 = vmatpush.msra.mxu0 0.0
    %4213 = vmatpush.msra.mxu0 0.0
    %4214 = vmatpush.msra.mxu0 0.0
    %4215 = vmatpush.msra.mxu0 0.0
    %4216 = vmatpush.msra.mxu0 %v4192
    %4217 = vmatpush.msra.mxu0 %v4191
    %4218 = vmatpush.msra.mxu0 %v4190
    %4219 = vmatpush.msra.mxu0 %v4189
    %4220 = vmatmul.f32.gmra.mxu0 %v4199
    %v4221 = vpop.f32.mrf.mxu0
    %v4222 = vadd.f32 %v4196, %v4221
    %4223 = vmatmul.f32.gmra.mxu0 %v4202
    %v4224 = vpop.f32.mrf.mxu0
    %v4225 = vadd.f32 %v4196, %v4224
    %4226 = vdwg.mxu0
    %v4227 = vmax.f32 %v4222, 0.0
    %v4228 = vmax.f32 %v4225, 0.0
    %s4229 = scalar_lea.vmem %s79, 128
    %v4230 = vld [vmem:[%s4229] sm:$0xff]
    %v4231 = vld [vmem:[%s4229 + $0x8] sm:$0xff]
    %v4232 = vld [vmem:[%s4229 + $0x10] sm:$0xff]
    %v4233 = vld [vmem:[%s4229 + $0x18] sm:$0xff]
    %v4234 = vld [vmem:[%s4229 + $0x20] sm:$0xff]
    %v4235 = vld [vmem:[%s4229 + $0x28] sm:$0xff]
    %v4236 = vld [vmem:[%s4229 + $0x30] sm:$0xff]
    %v4237 = vld [vmem:[%s4229 + $0x38] sm:$0xff]
    %v4238 = vld [vmem:[%s4229 + $0x40] sm:$0xff]
    %v4239 = vld [vmem:[%s4229 + $0x48] sm:$0xff]
    %v4240 = vld [vmem:[%s4229 + $0x50] sm:$0xff]
    %v4241 = vld [vmem:[%s4229 + $0x58] sm:$0xff]
    %v4242 = vld [vmem:[%s4229 + $0x60] sm:$0xff]
    %v4243 = vld [vmem:[%s4229 + $0x68] sm:$0xff]
    %v4244 = vld [vmem:[%s4229 + $0x70] sm:$0xff]
    %v4245 = vld [vmem:[%s4229 + $0x78] sm:$0xff]
    %s4246 = scalar_lea.vmem %s81, 1
    %v4247 = vld [vmem:[%s4246] sm:$0x1]
    %v4249 = vperm.slane %v4247, 0
    %4251 = vmatpush.msra.mxu0 %v4245
    %4252 = vmatpush.msra.mxu0 %v4244
    %4253 = vmatpush.msra.mxu0 %v4243
    %4254 = vmatpush.msra.mxu0 %v4242
    %4255 = vmatpush.msra.mxu0 %v4241
    %4256 = vmatpush.msra.mxu0 %v4240
    %4257 = vmatpush.msra.mxu0 %v4239
    %4258 = vmatpush.msra.mxu0 %v4238
    %4259 = vmatpush.msra.mxu0 %v4237
    %4260 = vmatpush.msra.mxu0 %v4236
    %4261 = vmatpush.msra.mxu0 %v4235
    %4262 = vmatpush.msra.mxu0 %v4234
    %4263 = vmatpush.msra.mxu0 %v4233
    %4264 = vmatpush.msra.mxu0 %v4232
    %4265 = vmatpush.msra.mxu0 %v4231
    %4266 = vmatpush.msra.mxu0 %v4230
    %4267 = vmatmul.f32.gmra.mxu0 %v4227
    %v4268 = vpop.f32.mrf.mxu0
    %v4269 = vadd.f32 %v4249, %v4268
    %4270 = vmatmul.f32.gmra.mxu0 %v4228
    %v4271 = vpop.f32.mrf.mxu0
    %v4272 = vadd.f32 %v4249, %v4271
    %4273 = vdwg.mxu0
    %v4274 = vadd.f32 %v4186, %v4269
    %v4275 = vadd.f32 %v4187, %v4272
    %s4276 = scalar_lea.vmem %s83, 1
    %v4277 = vld [vmem:[%s4276] sm:$0x1]
    %s4278 = scalar_lea.vmem %s85, 1
    %v4279 = vld [vmem:[%s4278] sm:$0x1]
    %v4280 = vsel %vm273, %v4274, 0.0
    %4281 = vadd.xlane.f32.xlu0 %v4280
    %v4282 = vpop.xlane.xlu0 %4281
    %v4283 = vsel %vm273, %v4275, 0.0
    %4284 = vadd.xlane.f32.xlu0 %v4283
    %v4285 = vpop.xlane.xlu0 %4284
    %v4286 = vmul.f32 %v4282, %v786
    %v4287 = vmul.f32 %v4285, %v786
    %v4288 = vsub.f32 %v4274, %v4286
    %v4289 = vsub.f32 %v4275, %v4287
    %v4290 = vmul.f32 %v4288, %v4288
    %v4291 = vmul.f32 %v4289, %v4289
    %v4292 = vsel %vm273, %v4290, 0.0
    %4293 = vadd.xlane.f32.xlu0 %v4292
    %v4294 = vpop.xlane.xlu0 %4293
    %v4295 = vsel %vm273, %v4291, 0.0
    %4296 = vadd.xlane.f32.xlu0 %v4295
    %v4297 = vpop.xlane.xlu0 %4296
    %v4298 = vmul.f32 %v4294, %v786
    %v4299 = vmul.f32 %v4297, %v786
    %v4300 = vadd.f32 %v4298, 1e-05
    %v4301 = vadd.f32 %v4299, 1e-05
    %v4302 = vrsqrt.pop %v4300
    %v4303 = vmul.f32 %v4302, %v4300
    %v4304 = vmul.f32 %v4303, %v4302
    %v4305 = vmul.f32 0.5, %v4304
    %v4306 = vsub.f32 1.5, %v4305
    %v4307 = vmul.f32 %v4302, %v4306
    %vm4308 = vweird.f32 %v4300
    %vm4309 = vweird.f32 %v4302
    %vm4310 = vmor %vm4308, %vm4309
    %v4311 = vsel %vm4310, %v4302, %v4307
    %v4312 = vrsqrt.pop %v4301
    %v4313 = vmul.f32 %v4312, %v4301
    %v4314 = vmul.f32 %v4313, %v4312
    %v4315 = vmul.f32 0.5, %v4314
    %v4316 = vsub.f32 1.5, %v4315
    %v4317 = vmul.f32 %v4312, %v4316
    %vm4318 = vweird.f32 %v4301
    %vm4319 = vweird.f32 %v4312
    %vm4320 = vmor %vm4318, %vm4319
    %v4321 = vsel %vm4320, %v4312, %v4317
    %v4322 = vmul.f32 %v4288, %v4311
    %v4323 = vmul.f32 %v4289, %v4321
    %v4325 = vperm.slane %v4277, 0
    %v4327 = vmul.f32 %v4322, %v4325
    %v4328 = vmul.f32 %v4323, %v4325
    %v4330 = vperm.slane %v4279, 0
    %v4332 = vadd.f32 %v4327, %v4330
    %v4333 = vadd.f32 %v4328, %v4330
    %v4334 = vld [vmem:[%s87] sm:$0xff]
    %v4335 = vld [vmem:[%s87 + $0x8] sm:$0xff]
    %v4336 = vld [vmem:[%s87 + $0x10] sm:$0xff]
    %v4337 = vld [vmem:[%s87 + $0x18] sm:$0xff]
    %v4338 = vld [vmem:[#allocation5] sm:$0x1]
    %v4340 = vperm.slane %v4338, 0
    %v4343 = vsel %vm273, %v4332, 0
    %v4346 = vsel %vm273, %v4333, 0
    %4348 = vmatpush.msra.mxu0 0.0
    %4349 = vmatpush.msra.mxu0 0.0
    %4350 = vmatpush.msra.mxu0 0.0
    %4351 = vmatpush.msra.mxu0 0.0
    %4352 = vmatpush.msra.mxu0 0.0
    %4353 = vmatpush.msra.mxu0 0.0
    %4354 = vmatpush.msra.mxu0 0.0
    %4355 = vmatpush.msra.mxu0 0.0
    %4356 = vmatpush.msra.mxu0 0.0
    %4357 = vmatpush.msra.mxu0 0.0
    %4358 = vmatpush.msra.mxu0 0.0
    %4359 = vmatpush.msra.mxu0 0.0
    %4360 = vmatpush.msra.mxu0 %v4337
    %4361 = vmatpush.msra.mxu0 %v4336
    %4362 = vmatpush.msra.mxu0 %v4335
    %4363 = vmatpush.msra.mxu0 %v4334
    %4364 = vmatmul.f32.gmra.mxu0 %v4343
    %v4365 = vpop.f32.mrf.mxu0
    %v4366 = vadd.f32 %v4340, %v4365
    %4367 = vmatmul.f32.gmra.mxu0 %v4346
    %v4368 = vpop.f32.mrf.mxu0
    %v4369 = vadd.f32 %v4340, %v4368
    %4370 = vdwg.mxu0
    %4371 = vst.msk [vmem:[#allocation7] sm:$0xff] %vm229, %v4366
    %4372 = vst.msk [vmem:[#allocation7 + $0x8] sm:$0xff] %vm229, %v4369
    // Predicated region
    $region190: #{seq2seq_transformer_forward.1} parent=1 // pred_check
      _
    $region191: #{seq2seq_transformer_forward.1} parent=1 // pred_check_branch
      %4374 = sbr.rel (0) target = $region193
    $region192: #{seq2seq_transformer_forward.1} parent=1 // pred_region
      %4376 = vsyncadd [#allocation4], 0
      %s4377 = sshll.u32 [#allocation7], 4
      %s4378 = int_to_ptr.vmem [resolvable:$true] %s4377
      %s4379 = sshll.u32 %s91, 4
      %s4380 = int_to_ptr.hbm [resolvable:$true] %s4379
      %4385 = dma.vmem_to_hbm [thread:$0]  %s4378, 256, %s4380, [#allocation4], 128, 128, 8
    $region193: #{seq2seq_transformer_forward.1} parent=1 // pred_fallthru
      _
    // Predicated region
    $region194: #{seq2seq_transformer_forward.1} parent=1 // pred_check
      _
    $region195: #{seq2seq_transformer_forward.1} parent=1 // pred_check_branch
      %4387 = sbr.rel (0) target = $region197
    $region196: #{seq2seq_transformer_forward.1} parent=1 // pred_region
      %4389 = dma.done [#allocation4], 256
    $region197: #{seq2seq_transformer_forward.1} parent=1 // pred_fallthru
      _
    %4390 = vsyncpa [#allocation3], 1
    %4391 = vsyncpa [#allocation6], 1
    %4392 = vsyncpa [#allocation4], 1

</llo_original>
